<compile_context>
chip_gen: v7x
topology: tpu7x:2x2x1
jax: 0.10.0
libtpu: 0.0.40
codegen_flags: <defaults>
</compile_context>

<pallas_src>
import jax
import jax.numpy as jnp
from jax import lax
from jax.experimental import pallas as pl
from jax.experimental.pallas import tpu as pltpu


# ------------------------------- helpers ------------------------------------

def _round_up(x, m):
    return (x + m - 1) // m * m


def _col_tile(k, n_cols):
    # ~2 MB of bf16 im2col slab per block (4 pool positions * k * tile * 2 B),
    # clamped to [128, 8192] and to the (128-rounded) problem size.
    cap = (1 << 21) // (4 * k * 2)
    cap = max(128, min(8192, cap // 128 * 128))
    return min(cap, _round_up(n_cols, 128))


# ----------------------------- Pallas kernels --------------------------------

def _conv_bn_relu_pool_kernel(x_ref, w_ref, bias_ref, o_ref):
    # x_ref:    (4, K, T) bf16 -- transposed im2col slab; slab q holds, for the
    #           conv-output pixels at 2x2-pool position q (q = 2*qy + qx), the
    #           im2col vectors of a T-wide tile of pooled pixels (lane axis).
    # w_ref:    (Cout, K) bf16 -- 3x3 weights, BN scale folded, K=(cin, dy, dx).
    # bias_ref: (Cout, 1) f32  -- folded conv bias + BatchNorm bias.
    # o_ref:    (Cout, T) bf16 -- pooled activations (channel-major layout).
    w = w_ref[...]
    m = None
    for q in range(4):                       # static unroll: 4 pool positions
        z = jnp.dot(w, x_ref[q], preferred_element_type=jnp.float32)
        m = z if m is None else jnp.maximum(m, z)       # fused 2x2 max-pool
    # bias + ReLU once, after the max (exact: scale already folded into w,
    # max commutes with +bias, ReLU monotone) -- no per-q epilogue/broadcasts.
    o_ref[...] = jnp.maximum(m + bias_ref[...], 0.0).astype(o_ref.dtype)


def _mlp_kernel(x_ref, w1_ref, b1_ref, w2_ref, b2_ref, o_ref):
    # fc1 (bf16 x bf16 -> f32 acc) + ReLU + fc2 (f32, lane-padded to 128) fused.
    h = jnp.dot(x_ref[...], w1_ref[...], preferred_element_type=jnp.float32)
    h = jnp.maximum(h + b1_ref[...], 0.0)
    o_ref[...] = jnp.dot(h, w2_ref[...],
                         preferred_element_type=jnp.float32) + b2_ref[...]


# --------------------------- pallas_call wrappers ----------------------------

def _conv_stage(slab, wT, bias):
    """conv(3x3, pad 1) + BN + ReLU + 2x2/stride-2 max-pool, one pallas_call."""
    _, k, n_cols = slab.shape
    cout = wT.shape[0]
    tile = _col_tile(k, n_cols)
    n_pad = _round_up(n_cols, tile)
    if n_pad != n_cols:
        slab = jnp.pad(slab, ((0, 0), (0, 0), (0, n_pad - n_cols)))
    cost = pl.CostEstimate(
        flops=2 * 4 * cout * k * n_pad,
        transcendentals=0,
        bytes_accessed=4 * k * n_pad * 2 + cout * k * 2 + cout * 4
                       + cout * n_pad * 2,
    )
    out = pl.pallas_call(
        _conv_bn_relu_pool_kernel,
        out_shape=jax.ShapeDtypeStruct((cout, n_pad), jnp.bfloat16),
        grid=(n_pad // tile,),
        in_specs=[
            pl.BlockSpec((4, k, tile), lambda c: (0, 0, c)),     # streamed
            pl.BlockSpec((cout, k), lambda c: (0, 0)),           # resident
            pl.BlockSpec((cout, 1), lambda c: (0, 0)),           # resident
        ],
        out_specs=pl.BlockSpec((cout, tile), lambda c: (0, c)),  # lane-dense
        compiler_params=pltpu.CompilerParams(
            dimension_semantics=("parallel",)),
        cost_estimate=cost,
    )(slab, wT, bias)
    return out[:, :n_cols] if n_pad != n_cols else out


def _mlp_stage(x, w1, b1, w2, b2):
    """fc1 + ReLU + fc2 fused; logits lane-padded to 128, sliced back here."""
    n, d = x.shape
    hdim = w1.shape[1]
    o = w2.shape[1]
    o_pad = _round_up(o, 128)                       # lane-dense logits store
    if o_pad != o:
        w2 = jnp.pad(w2, ((0, 0), (0, o_pad - o)))
        b2 = jnp.pad(b2, ((0, 0), (0, o_pad - o)))
    tile = min(256, _round_up(n, 8))
    n_pad = _round_up(n, tile)
    if n_pad != n:
        x = jnp.pad(x, ((0, n_pad - n), (0, 0)))
    cost = pl.CostEstimate(
        flops=2 * n_pad * (d * hdim + hdim * o_pad),
        transcendentals=0,
        bytes_accessed=n_pad * d * 2 + d * hdim * 2 + hdim * 4
                       + hdim * o_pad * 4 + o_pad * 4 + n_pad * o_pad * 4,
    )
    out = pl.pallas_call(
        _mlp_kernel,
        out_shape=jax.ShapeDtypeStruct((n_pad, o_pad), jnp.float32),
        grid=(n_pad // tile,),
        in_specs=[
            pl.BlockSpec((tile, d), lambda i: (i, 0)),           # streamed
            pl.BlockSpec((d, hdim), lambda i: (0, 0)),           # resident
            pl.BlockSpec((1, hdim), lambda i: (0, 0)),
            pl.BlockSpec((hdim, o_pad), lambda i: (0, 0)),
            pl.BlockSpec((1, o_pad), lambda i: (0, 0)),
        ],
        out_specs=pl.BlockSpec((tile, o_pad), lambda i: (i, 0)),
        compiler_params=pltpu.CompilerParams(
            dimension_semantics=("parallel",)),
        cost_estimate=cost,
    )(x.astype(jnp.bfloat16), w1, b1, w2, b2)
    return out[:n, :o]


# --------------------------------- glue --------------------------------------

def _im2col_T(x_cnhw):
    """Transposed im2col for 3x3/pad-1 conv fused with 2x2/stride-2 pooling.

    (C, N, H, W) -> (4, 9*C, N*(H//2)*(W//2)) bf16.  Slab q = 2*qy + qx holds
    the im2col vectors of conv-output pixels (2i+qy, 2j+qx); K ordered
    (c, dy, dx); columns ordered (n, i, j).  bf16 cast happens before padding
    and the pool split happens inside each tap slice (no full-res f32 slab).
    """
    c, n, h, w = x_cnhw.shape
    ho, wo = h // 2, w // 2
    xp = jnp.pad(x_cnhw.astype(jnp.bfloat16), ((0, 0), (0, 0), (1, 1), (1, 1)))
    slabs = []
    for qy in range(2):
        for qx in range(2):
            taps = [
                xp[:, :, qy + dy: qy + dy + 2 * ho: 2,
                   qx + dx: qx + dx + 2 * wo: 2].reshape(c, 1, n * ho * wo)
                for dy in range(3) for dx in range(3)
            ]
            slabs.append(jnp.concatenate(taps, axis=1).reshape(9 * c, n * ho * wo))
    return jnp.stack(slabs, axis=0)                   # (4, 9*C, Np)


def _conv_wT(w_hwio, scale):
    """HWIO -> (Cout, 9*Cin) transposed weight with eval-BN scale folded in."""
    kh, kw, cin, cout = w_hwio.shape
    wk = jnp.transpose(w_hwio, (2, 0, 1, 3)).reshape(kh * kw * cin, cout)
    return (wk * scale[None, :]).T.astype(jnp.bfloat16)


def prepare_params(p, eps=1e-5):
    """One-time param prep: fold eval-mode BN into conv weights/bias, transpose."""
    def fold(conv_b, g, b, m, v):
        scale = (g / jnp.sqrt(v + eps)).astype(jnp.float32)
        bias = ((conv_b - m) * scale + b).reshape(-1, 1).astype(jnp.float32)
        return scale, bias

    s1, b1 = fold(p["conv1_b"], p["bn1_g"], p["bn1_b"], p["bn1_m"], p["bn1_v"])
    s2, b2 = fold(p["conv2_b"], p["bn2_g"], p["bn2_b"], p["bn2_m"], p["bn2_v"])
    return {
        "w1": _conv_wT(p["conv1_w"], s1), "b1": b1,
        "w2": _conv_wT(p["conv2_w"], s2), "b2": b2,
        "fc1_w": p["fc1_w"].astype(jnp.bfloat16),          # NCHW-flatten order
        "fc1_b": p["fc1_b"].reshape(1, -1).astype(jnp.float32),
        "fc2_w": p["fc2_w"].astype(jnp.float32),
        "fc2_b": p["fc2_b"].reshape(1, -1).astype(jnp.float32),
    }


@jax.jit
def cnn_forward(x_nchw, q):
    """Pallas implementation of CNN.forward (default MNIST config, eval-mode BN)."""
    n, _, h, w = x_nchw.shape
    c1, c2 = q["w1"].shape[0], q["w2"].shape[0]
    x = jnp.transpose(x_nchw.astype(jnp.bfloat16), (1, 0, 2, 3))   # (C=1, N, H, W)
    # stage 1: 1x28x28 -> 32x14x14 (conv + bn + relu + pool, one kernel)
    y1 = _conv_stage(_im2col_T(x), q["w1"], q["b1"])               # (32, N*196)
    y1 = y1.reshape(c1, n, h // 2, w // 2)
    # stage 2: 32x14x14 -> 64x7x7
    y2 = _conv_stage(_im2col_T(y1), q["w2"], q["b2"])              # (64, N*49)
    # channel-major layout == PyTorch NCHW flatten order -> fc1 used unpermuted
    flat = jnp.transpose(y2.reshape(c2, n, (h // 4) * (w // 4)),
                         (1, 0, 2)).reshape(n, -1)
    return _mlp_stage(flat, q["fc1_w"], q["fc1_b"], q["fc2_w"], q["fc2_b"])


# ------------------------- pure-JAX reference check --------------------------

def reference_forward(x_nchw, p, eps=1e-5):
    x = jnp.transpose(x_nchw, (0, 2, 3, 1)).astype(jnp.float32)

    def block(x, w, cb, g, b, m, v):
        y = lax.conv_general_dilated(x, w, (1, 1), "SAME",
                                     dimension_numbers=("NHWC", "HWIO", "NHWC"))
        y = y + cb
        y = (y - m) / jnp.sqrt(v + eps) * g + b
        y = jnp.maximum(y, 0.0)
        return lax.reduce_window(y, -jnp.inf, lax.max,
                                 (1, 2, 2, 1), (1, 2, 2, 1), "VALID")

    y = block(x, p["conv1_w"], p["conv1_b"], p["bn1_g"], p["bn1_b"],
              p["bn1_m"], p["bn1_v"])
    y = block(y, p["conv2_w"], p["conv2_b"], p["bn2_g"], p["bn2_b"],
              p["bn2_m"], p["bn2_v"])
    n = y.shape[0]
    flat = jnp.transpose(y, (0, 3, 1, 2)).reshape(n, -1)   # PyTorch NCHW flatten
    h = jnp.maximum(flat @ p["fc1_w"] + p["fc1_b"], 0.0)
    return h @ p["fc2_w"] + p["fc2_b"]


# --------------------------- deterministic params ----------------------------

def init_params(key):
    ks = jax.random.split(key, 16)
    f = jnp.float32
    return {
        "conv1_w": jax.random.normal(ks[0], (3, 3, 1, 32), f) * 0.1,   # HWIO
        "conv1_b": jax.random.normal(ks[1], (32,), f) * 0.05,
        "bn1_g": 1.0 + 0.05 * jax.random.normal(ks[2], (32,), f),
        "bn1_b": 0.05 * jax.random.normal(ks[3], (32,), f),
        "bn1_m": 0.05 * jax.random.normal(ks[4], (32,), f),
        "bn1_v": 1.0 + 0.1 * jax.random.uniform(ks[5], (32,), f),
        "conv2_w": jax.random.normal(ks[6], (3, 3, 32, 64), f) * 0.05,
        "conv2_b": jax.random.normal(ks[7], (64,), f) * 0.05,
        "bn2_g": 1.0 + 0.05 * jax.random.normal(ks[8], (64,), f),
        "bn2_b": 0.05 * jax.random.normal(ks[9], (64,), f),
        "bn2_m": 0.05 * jax.random.normal(ks[10], (64,), f),
        "bn2_v": 1.0 + 0.1 * jax.random.uniform(ks[11], (64,), f),
        "fc1_w": jax.random.normal(ks[12], (64 * 7 * 7, 128), f) * 0.02,
        "fc1_b": jax.random.normal(ks[13], (128,), f) * 0.05,
        "fc2_w": jax.random.normal(ks[14], (128, 10), f) * 0.1,
        "fc2_b": jax.random.normal(ks[15], (10,), f) * 0.05,
    }


if __name__ == "__main__":
    params = init_params(jax.random.PRNGKey(42))
    prepared = prepare_params(params)
    # MNIST-like input implied by the module (1x28x28 -> 64*7*7 fc1), small batch.
    x = jax.random.normal(jax.random.PRNGKey(0), (2, 1, 28, 28), jnp.float32)

    out = jax.block_until_ready(cnn_forward(x, prepared))
    ref = jax.block_until_ready(reference_forward(x, params))

    assert out.shape == (2, 10), out.shape
    max_err = float(jnp.max(jnp.abs(out - ref)))
    # bf16 MXU inputs with f32 accumulation; typical max abs err ~1e-2 here.
    assert max_err < 3e-2, f"mismatch vs reference: max abs err = {max_err}"
    print("KERNEL_OK")
</pallas_src>

<mosaic_0001>
module attributes {stable_mosaic.version = 11 : i64} {
  func.func @_conv_bn_relu_pool_kernel(%arg0: i32, %arg1: memref<4x9x512xbf16, #tpu.memory_space<vmem>>, %arg2: memref<32x9xbf16, #tpu.memory_space<vmem>>, %arg3: memref<32x1xf32, #tpu.memory_space<vmem>>, %arg4: memref<32x512xbf16, #tpu.memory_space<vmem>>) attributes {dimension_semantics = [#tpu.dimension_semantics<parallel>], iteration_bounds = array<i64: 1>, scalar_prefetch = 0 : i64, scratch_operands = 0 : i64, tpu.core_type = #tpu.core_type<tc>, window_params = [{transform_indices = @transform_0, window_bounds = array<i64: 4, 9, 512>}, {pipeline_mode = #tpu.pipeline_mode<synchronous>, transform_indices = @transform_1, window_bounds = array<i64: 32, 9>}, {pipeline_mode = #tpu.pipeline_mode<synchronous>, transform_indices = @transform_2, window_bounds = array<i64: 32, 1>}, {transform_indices = @transform_3, window_bounds = array<i64: 32, 512>}]} {
    %c0 = arith.constant 0 : index
    %c0_0 = arith.constant 0 : index
    %0 = vector.load %arg2[%c0, %c0_0] : memref<32x9xbf16, #tpu.memory_space<vmem>>, vector<32x9xbf16>
    %c0_1 = arith.constant 0 : index
    %c0_2 = arith.constant 0 : index
    %c0_3 = arith.constant 0 : index
    %1 = vector.load %arg1[%c0_1, %c0_2, %c0_3] : memref<4x9x512xbf16, #tpu.memory_space<vmem>>, vector<1x9x512xbf16>
    %2 = vector.shape_cast %1 : vector<1x9x512xbf16> to vector<9x512xbf16>
    %cst = arith.constant dense<0.000000e+00> : vector<32x512xf32>
    %3 = tpu.matmul %0, %2, %cst {dimension_numbers = #tpu.dot_dimension_numbers<[1], [0], [0], [1], [0, 0, 1, 1], [], []>} : vector<32x9xbf16>, vector<9x512xbf16>, vector<32x512xf32> -> vector<32x512xf32>
    %c1 = arith.constant 1 : index
    %c0_4 = arith.constant 0 : index
    %c0_5 = arith.constant 0 : index
    %4 = vector.load %arg1[%c1, %c0_4, %c0_5] : memref<4x9x512xbf16, #tpu.memory_space<vmem>>, vector<1x9x512xbf16>
    %5 = vector.shape_cast %4 : vector<1x9x512xbf16> to vector<9x512xbf16>
    %cst_6 = arith.constant dense<0.000000e+00> : vector<32x512xf32>
    %6 = tpu.matmul %0, %5, %cst_6 {dimension_numbers = #tpu.dot_dimension_numbers<[1], [0], [0], [1], [0, 0, 1, 1], [], []>} : vector<32x9xbf16>, vector<9x512xbf16>, vector<32x512xf32> -> vector<32x512xf32>
    %7 = arith.maximumf %3, %6 : vector<32x512xf32>
    %c2 = arith.constant 2 : index
    %c0_7 = arith.constant 0 : index
    %c0_8 = arith.constant 0 : index
    %8 = vector.load %arg1[%c2, %c0_7, %c0_8] : memref<4x9x512xbf16, #tpu.memory_space<vmem>>, vector<1x9x512xbf16>
    %9 = vector.shape_cast %8 : vector<1x9x512xbf16> to vector<9x512xbf16>
    %cst_9 = arith.constant dense<0.000000e+00> : vector<32x512xf32>
    %10 = tpu.matmul %0, %9, %cst_9 {dimension_numbers = #tpu.dot_dimension_numbers<[1], [0], [0], [1], [0, 0, 1, 1], [], []>} : vector<32x9xbf16>, vector<9x512xbf16>, vector<32x512xf32> -> vector<32x512xf32>
    %11 = arith.maximumf %7, %10 : vector<32x512xf32>
    %c3 = arith.constant 3 : index
    %c0_10 = arith.constant 0 : index
    %c0_11 = arith.constant 0 : index
    %12 = vector.load %arg1[%c3, %c0_10, %c0_11] : memref<4x9x512xbf16, #tpu.memory_space<vmem>>, vector<1x9x512xbf16>
    %13 = vector.shape_cast %12 : vector<1x9x512xbf16> to vector<9x512xbf16>
    %cst_12 = arith.constant dense<0.000000e+00> : vector<32x512xf32>
    %14 = tpu.matmul %0, %13, %cst_12 {dimension_numbers = #tpu.dot_dimension_numbers<[1], [0], [0], [1], [0, 0, 1, 1], [], []>} : vector<32x9xbf16>, vector<9x512xbf16>, vector<32x512xf32> -> vector<32x512xf32>
    %15 = arith.maximumf %11, %14 : vector<32x512xf32>
    %c0_13 = arith.constant 0 : index
    %c0_14 = arith.constant 0 : index
    %16 = vector.load %arg3[%c0_13, %c0_14] : memref<32x1xf32, #tpu.memory_space<vmem>>, vector<32x1xf32>
    %17 = vector.broadcast %16 : vector<32x1xf32> to vector<32x512xf32>
    %18 = arith.addf %15, %17 : vector<32x512xf32>
    %cst_15 = arith.constant 0.000000e+00 : f32
    %19 = vector.broadcast %cst_15 : f32 to vector<32x512xf32>
    %20 = arith.maximumf %18, %19 : vector<32x512xf32>
    %21 = arith.truncf %20 : vector<32x512xf32> to vector<32x512xbf16>
    %c0_16 = arith.constant 0 : index
    %c0_17 = arith.constant 0 : index
    %22 = vector.load %arg4[%c0_16, %c0_17] : memref<32x512xbf16, #tpu.memory_space<vmem>>, vector<32x512xbf16>
    tpu.vector_store %arg4[%c0_16, %c0_17], %21 {strides = array<i32>} : memref<32x512xbf16, #tpu.memory_space<vmem>>, vector<32x512xbf16>,
    return
  }
  func.func @transform_0(%arg0: i32) -> (i32, i32, i32) {
    %c0_i32 = arith.constant 0 : i32
    %c0_i32_0 = arith.constant 0 : i32
    %c0_i32_1 = arith.constant 0 : i32
    return %c0_i32, %c0_i32_0, %arg0 : i32, i32, i32
  }
  func.func @transform_1(%arg0: i32) -> (i32, i32) {
    %c0_i32 = arith.constant 0 : i32
    %c0_i32_0 = arith.constant 0 : i32
    %c0_i32_1 = arith.constant 0 : i32
    return %c0_i32, %c0_i32_0 : i32, i32
  }
  func.func @transform_2(%arg0: i32) -> (i32, i32) {
    %c0_i32 = arith.constant 0 : i32
    %c0_i32_0 = arith.constant 0 : i32
    %c0_i32_1 = arith.constant 0 : i32
    return %c0_i32, %c0_i32_0 : i32, i32
  }
  func.func @transform_3(%arg0: i32) -> (i32, i32) {
    %c0_i32 = arith.constant 0 : i32
    %c0_i32_0 = arith.constant 0 : i32
    return %c0_i32, %arg0 : i32, i32
  }
}

module attributes {stable_mosaic.version = 11 : i64} {
  func.func @_conv_bn_relu_pool_kernel(%arg0: i32, %arg1: memref<4x288x128xbf16, #tpu.memory_space<vmem>>, %arg2: memref<64x288xbf16, #tpu.memory_space<vmem>>, %arg3: memref<64x1xf32, #tpu.memory_space<vmem>>, %arg4: memref<64x128xbf16, #tpu.memory_space<vmem>>) attributes {dimension_semantics = [#tpu.dimension_semantics<parallel>], iteration_bounds = array<i64: 1>, scalar_prefetch = 0 : i64, scratch_operands = 0 : i64, tpu.core_type = #tpu.core_type<tc>, window_params = [{transform_indices = @transform_0, window_bounds = array<i64: 4, 288, 128>}, {pipeline_mode = #tpu.pipeline_mode<synchronous>, transform_indices = @transform_1, window_bounds = array<i64: 64, 288>}, {pipeline_mode = #tpu.pipeline_mode<synchronous>, transform_indices = @transform_2, window_bounds = array<i64: 64, 1>}, {transform_indices = @transform_3, window_bounds = array<i64: 64, 128>}]} {
    %c0 = arith.constant 0 : index
    %c0_0 = arith.constant 0 : index
    %0 = vector.load %arg2[%c0, %c0_0] : memref<64x288xbf16, #tpu.memory_space<vmem>>, vector<64x288xbf16>
    %c0_1 = arith.constant 0 : index
    %c0_2 = arith.constant 0 : index
    %c0_3 = arith.constant 0 : index
    %1 = vector.load %arg1[%c0_1, %c0_2, %c0_3] : memref<4x288x128xbf16, #tpu.memory_space<vmem>>, vector<1x288x128xbf16>
    %2 = vector.shape_cast %1 : vector<1x288x128xbf16> to vector<288x128xbf16>
    %cst = arith.constant dense<0.000000e+00> : vector<64x128xf32>
    %3 = tpu.matmul %0, %2, %cst {dimension_numbers = #tpu.dot_dimension_numbers<[1], [0], [0], [1], [0, 0, 1, 1], [], []>} : vector<64x288xbf16>, vector<288x128xbf16>, vector<64x128xf32> -> vector<64x128xf32>
    %c1 = arith.constant 1 : index
    %c0_4 = arith.constant 0 : index
    %c0_5 = arith.constant 0 : index
    %4 = vector.load %arg1[%c1, %c0_4, %c0_5] : memref<4x288x128xbf16, #tpu.memory_space<vmem>>, vector<1x288x128xbf16>
    %5 = vector.shape_cast %4 : vector<1x288x128xbf16> to vector<288x128xbf16>
    %cst_6 = arith.constant dense<0.000000e+00> : vector<64x128xf32>
    %6 = tpu.matmul %0, %5, %cst_6 {dimension_numbers = #tpu.dot_dimension_numbers<[1], [0], [0], [1], [0, 0, 1, 1], [], []>} : vector<64x288xbf16>, vector<288x128xbf16>, vector<64x128xf32> -> vector<64x128xf32>
    %7 = arith.maximumf %3, %6 : vector<64x128xf32>
    %c2 = arith.constant 2 : index
    %c0_7 = arith.constant 0 : index
    %c0_8 = arith.constant 0 : index
    %8 = vector.load %arg1[%c2, %c0_7, %c0_8] : memref<4x288x128xbf16, #tpu.memory_space<vmem>>, vector<1x288x128xbf16>
    %9 = vector.shape_cast %8 : vector<1x288x128xbf16> to vector<288x128xbf16>
    %cst_9 = arith.constant dense<0.000000e+00> : vector<64x128xf32>
    %10 = tpu.matmul %0, %9, %cst_9 {dimension_numbers = #tpu.dot_dimension_numbers<[1], [0], [0], [1], [0, 0, 1, 1], [], []>} : vector<64x288xbf16>, vector<288x128xbf16>, vector<64x128xf32> -> vector<64x128xf32>
    %11 = arith.maximumf %7, %10 : vector<64x128xf32>
    %c3 = arith.constant 3 : index
    %c0_10 = arith.constant 0 : index
    %c0_11 = arith.constant 0 : index
    %12 = vector.load %arg1[%c3, %c0_10, %c0_11] : memref<4x288x128xbf16, #tpu.memory_space<vmem>>, vector<1x288x128xbf16>
    %13 = vector.shape_cast %12 : vector<1x288x128xbf16> to vector<288x128xbf16>
    %cst_12 = arith.constant dense<0.000000e+00> : vector<64x128xf32>
    %14 = tpu.matmul %0, %13, %cst_12 {dimension_numbers = #tpu.dot_dimension_numbers<[1], [0], [0], [1], [0, 0, 1, 1], [], []>} : vector<64x288xbf16>, vector<288x128xbf16>, vector<64x128xf32> -> vector<64x128xf32>
    %15 = arith.maximumf %11, %14 : vector<64x128xf32>
    %c0_13 = arith.constant 0 : index
    %c0_14 = arith.constant 0 : index
    %16 = vector.load %arg3[%c0_13, %c0_14] : memref<64x1xf32, #tpu.memory_space<vmem>>, vector<64x1xf32>
    %17 = vector.broadcast %16 : vector<64x1xf32> to vector<64x128xf32>
    %18 = arith.addf %15, %17 : vector<64x128xf32>
    %cst_15 = arith.constant 0.000000e+00 : f32
    %19 = vector.broadcast %cst_15 : f32 to vector<64x128xf32>
    %20 = arith.maximumf %18, %19 : vector<64x128xf32>
    %21 = arith.truncf %20 : vector<64x128xf32> to vector<64x128xbf16>
    %c0_16 = arith.constant 0 : index
    %c0_17 = arith.constant 0 : index
    %22 = vector.load %arg4[%c0_16, %c0_17] : memref<64x128xbf16, #tpu.memory_space<vmem>>, vector<64x128xbf16>
    tpu.vector_store %arg4[%c0_16, %c0_17], %21 {strides = array<i32>} : memref<64x128xbf16, #tpu.memory_space<vmem>>, vector<64x128xbf16>,
    return
  }
  func.func @transform_0(%arg0: i32) -> (i32, i32, i32) {
    %c0_i32 = arith.constant 0 : i32
    %c0_i32_0 = arith.constant 0 : i32
    %c0_i32_1 = arith.constant 0 : i32
    return %c0_i32, %c0_i32_0, %arg0 : i32, i32, i32
  }
  func.func @transform_1(%arg0: i32) -> (i32, i32) {
    %c0_i32 = arith.constant 0 : i32
    %c0_i32_0 = arith.constant 0 : i32
    %c0_i32_1 = arith.constant 0 : i32
    return %c0_i32, %c0_i32_0 : i32, i32
  }
  func.func @transform_2(%arg0: i32) -> (i32, i32) {
    %c0_i32 = arith.constant 0 : i32
    %c0_i32_0 = arith.constant 0 : i32
    %c0_i32_1 = arith.constant 0 : i32
    return %c0_i32, %c0_i32_0 : i32, i32
  }
  func.func @transform_3(%arg0: i32) -> (i32, i32) {
    %c0_i32 = arith.constant 0 : i32
    %c0_i32_0 = arith.constant 0 : i32
    return %c0_i32, %arg0 : i32, i32
  }
}

module attributes {stable_mosaic.version = 11 : i64} {
  func.func @_mlp_kernel(%arg0: i32, %arg1: memref<8x3136xbf16, #tpu.memory_space<vmem>>, %arg2: memref<3136x128xbf16, #tpu.memory_space<vmem>>, %arg3: memref<1x128xf32, #tpu.memory_space<vmem>>, %arg4: memref<128x128xf32, #tpu.memory_space<vmem>>, %arg5: memref<1x128xf32, #tpu.memory_space<vmem>>, %arg6: memref<8x128xf32, #tpu.memory_space<vmem>>) attributes {dimension_semantics = [#tpu.dimension_semantics<parallel>], iteration_bounds = array<i64: 1>, scalar_prefetch = 0 : i64, scratch_operands = 0 : i64, tpu.core_type = #tpu.core_type<tc>, window_params = [{transform_indices = @transform_0, window_bounds = array<i64: 8, 3136>}, {pipeline_mode = #tpu.pipeline_mode<synchronous>, transform_indices = @transform_1, window_bounds = array<i64: 3136, 128>}, {pipeline_mode = #tpu.pipeline_mode<synchronous>, transform_indices = @transform_2, window_bounds = array<i64: 1, 128>}, {pipeline_mode = #tpu.pipeline_mode<synchronous>, transform_indices = @transform_3, window_bounds = array<i64: 128, 128>}, {pipeline_mode = #tpu.pipeline_mode<synchronous>, transform_indices = @transform_4, window_bounds = array<i64: 1, 128>}, {transform_indices = @transform_5, window_bounds = array<i64: 8, 128>}]} {
    %c0 = arith.constant 0 : index
    %c0_0 = arith.constant 0 : index
    %0 = vector.load %arg1[%c0, %c0_0] : memref<8x3136xbf16, #tpu.memory_space<vmem>>, vector<8x3136xbf16>
    %c0_1 = arith.constant 0 : index
    %c0_2 = arith.constant 0 : index
    %1 = vector.load %arg2[%c0_1, %c0_2] : memref<3136x128xbf16, #tpu.memory_space<vmem>>, vector<3136x128xbf16>
    %cst = arith.constant dense<0.000000e+00> : vector<8x128xf32>
    %2 = tpu.matmul %0, %1, %cst {dimension_numbers = #tpu.dot_dimension_numbers<[1], [0], [0], [1], [0, 0, 1, 1], [], []>} : vector<8x3136xbf16>, vector<3136x128xbf16>, vector<8x128xf32> -> vector<8x128xf32>
    %c0_3 = arith.constant 0 : index
    %c0_4 = arith.constant 0 : index
    %3 = vector.load %arg3[%c0_3, %c0_4] : memref<1x128xf32, #tpu.memory_space<vmem>>, vector<1x128xf32>
    %4 = vector.broadcast %3 : vector<1x128xf32> to vector<8x128xf32>
    %5 = arith.addf %2, %4 : vector<8x128xf32>
    %cst_5 = arith.constant 0.000000e+00 : f32
    %6 = vector.broadcast %cst_5 : f32 to vector<8x128xf32>
    %7 = arith.maximumf %5, %6 : vector<8x128xf32>
    %c0_6 = arith.constant 0 : index
    %c0_7 = arith.constant 0 : index
    %8 = vector.load %arg4[%c0_6, %c0_7] : memref<128x128xf32, #tpu.memory_space<vmem>>, vector<128x128xf32>
    %cst_8 = arith.constant dense<0.000000e+00> : vector<8x128xf32>
    %9 = tpu.matmul %7, %8, %cst_8 {dimension_numbers = #tpu.dot_dimension_numbers<[1], [0], [0], [1], [0, 0, 1, 1], [], []>} : vector<8x128xf32>, vector<128x128xf32>, vector<8x128xf32> -> vector<8x128xf32>
    %c0_9 = arith.constant 0 : index
    %c0_10 = arith.constant 0 : index
    %10 = vector.load %arg5[%c0_9, %c0_10] : memref<1x128xf32, #tpu.memory_space<vmem>>, vector<1x128xf32>
    %11 = vector.broadcast %10 : vector<1x128xf32> to vector<8x128xf32>
    %12 = arith.addf %9, %11 : vector<8x128xf32>
    %c0_11 = arith.constant 0 : index
    %c0_12 = arith.constant 0 : index
    %13 = vector.load %arg6[%c0_11, %c0_12] : memref<8x128xf32, #tpu.memory_space<vmem>>, vector<8x128xf32>
    tpu.vector_store %arg6[%c0_11, %c0_12], %12 {strides = array<i32>} : memref<8x128xf32, #tpu.memory_space<vmem>>, vector<8x128xf32>,
    return
  }
  func.func @transform_0(%arg0: i32) -> (i32, i32) {
    %c0_i32 = arith.constant 0 : i32
    %c0_i32_0 = arith.constant 0 : i32
    return %arg0, %c0_i32 : i32, i32
  }
  func.func @transform_1(%arg0: i32) -> (i32, i32) {
    %c0_i32 = arith.constant 0 : i32
    %c0_i32_0 = arith.constant 0 : i32
    %c0_i32_1 = arith.constant 0 : i32
    return %c0_i32, %c0_i32_0 : i32, i32
  }
  func.func @transform_2(%arg0: i32) -> (i32, i32) {
    %c0_i32 = arith.constant 0 : i32
    %c0_i32_0 = arith.constant 0 : i32
    %c0_i32_1 = arith.constant 0 : i32
    return %c0_i32, %c0_i32_0 : i32, i32
  }
  func.func @transform_3(%arg0: i32) -> (i32, i32) {
    %c0_i32 = arith.constant 0 : i32
    %c0_i32_0 = arith.constant 0 : i32
    %c0_i32_1 = arith.constant 0 : i32
    return %c0_i32, %c0_i32_0 : i32, i32
  }
  func.func @transform_4(%arg0: i32) -> (i32, i32) {
    %c0_i32 = arith.constant 0 : i32
    %c0_i32_0 = arith.constant 0 : i32
    %c0_i32_1 = arith.constant 0 : i32
    return %c0_i32, %c0_i32_0 : i32, i32
  }
  func.func @transform_5(%arg0: i32) -> (i32, i32) {
    %c0_i32 = arith.constant 0 : i32
    %c0_i32_0 = arith.constant 0 : i32
    return %arg0, %c0_i32 : i32, i32
  }
}

</mosaic_0001>

<llo_original>
// kernel: cnn_forward.3
$region0: #{cnn_forward.3}
  #allocation0 [shape = 'u32[]', space=smem, size = 0x4, offset = 0x4, fixed_abs, tag = 'smem constant byte address 0x4 - core index']
  #allocation1 [shape = 'u32[144,128]{1,0:T(1,128)}', space=vmem, size = 0x12000, scoped, tag = 'internal scratch']
  %s0 = inlined_call_operand.vmem [shape: bf16[4,9,512], index: 0, kind: input, shape index: {}]
  %s1 = inlined_call_operand.vmem [shape: bf16[32,9], index: 1, kind: input, shape index: {}]
  %s2 = inlined_call_operand.vmem [shape: f32[32,1], index: 2, kind: input, shape index: {}]
  %s3 = inlined_call_operand.vmem [shape: bf16[32,512], index: 3, kind: output, shape index: {}]
  %s4 = sld [smem:[#allocation0]]
  $region22: #{cnn_forward.3} parent=0
    _
  %s6 = ssub.s32 1, %s4
  %s7 = scalar_select 0, %s6, %s4
  // Predicated region
  $region2: #{cnn_forward.3} parent=0 // pred_check
    _
  $region3: #{cnn_forward.3} parent=0 // pred_check_branch
    %9 = sbr.rel (0) target = $region5
  $region4: #{cnn_forward.3} parent=0 // pred_region
    _
  $region5: #{cnn_forward.3} parent=0 // pred_fallthru
    _
  // Predicated region
  $region6: #{cnn_forward.3} parent=0 // pred_check
    _
  $region7: #{cnn_forward.3} parent=0 // pred_check_branch
    %11 = sbr.rel (0) target = $region9
  $region8: #{cnn_forward.3} parent=0 // pred_region
    _
  $region9: #{cnn_forward.3} parent=0 // pred_fallthru
    _
  // Predicated region
  $region10: #{cnn_forward.3} parent=0 // pred_check
    _
  $region11: #{cnn_forward.3} parent=0 // pred_check_branch
    %13 = sbr.rel (0) target = $region13
  $region12: #{cnn_forward.3} parent=0 // pred_region
    _
  $region13: #{cnn_forward.3} parent=0 // pred_fallthru
    _
  %v15 = vld [vmem:[%s1] sm:$0xf]
  %v16 = vld [vmem:[%s1 + $0x4] sm:$0xf]
  %v17 = vld [vmem:[%s1 + $0x8] sm:$0xf]
  %v18 = vld [vmem:[%s1 + $0xc] sm:$0xf]
  %v19 = vld [vmem:[%s0] sm:$0xff]
  %v20 = vld [vmem:[%s0 + $0x8] sm:$0xff]
  %v21 = vld [vmem:[%s0 + $0x10] sm:$0x11]
  %v22 = vld [vmem:[%s0 + $0x18] sm:$0x11]
  %v27 = vunpack.c.l.b16 %v15
  %v28 = vunpack.c.l.b16 %v16
  %v29 = vunpack.c.l.b16 %v17
  %v30 = vunpack.c.l.b16 %v18
  %v31 = vpack.c.b16 %v28, %v27
  %v32 = vpack.c.b16 %v30, %v29
  %v37 = vunpack.c.l.b16 %v19
  %v38 = vunpack.c.h.b16 %v19
  %v39 = vunpack.c.l.b16 %v20
  %v40 = vunpack.c.h.b16 %v20
  %v41 = vunpack.c.l.b16 %v21
  %v42 = vunpack.c.h.b16 %v21
  %v43 = vunpack.c.l.b16 %v22
  %v44 = vunpack.c.h.b16 %v22
  %v45 = vpack.c.b16 %v41, %v37
  %v46 = vpack.c.b16 %v42, %v38
  %v47 = vpack.c.b16 %v43, %v39
  %v48 = vpack.c.b16 %v44, %v40
  %vm49 = vcmask 72704
  %v51 = vsel %vm49, %v31, 0
  %v54 = vsel %vm49, %v32, 0
  %vm56 = vcmask 1043456
  %vm57 = vcmask 1044480
  %v58 = vsel %vm56, 4294967295, 65535
  %v59 = vsel %vm57, %v58, 0
  %v61 = vand.u32 %v45, %v59
  %v64 = vand.u32 %v46, %v59
  %v67 = vand.u32 %v47, %v59
  %v70 = vand.u32 %v48, %v59
  %72 = vmatprep.subr.bf16.mxu0 %v64
  %73 = vmatpush1.bf16.msra.mxu0 %v61
  %74 = vmatprep.subr.bf16.mxu0 0
  %75 = vmatpush1.bf16.msra.mxu0 0
  %76 = vmatprep.subr.bf16.mxu0 0
  %77 = vmatpush1.bf16.msra.mxu0 0
  %78 = vmatprep.subr.bf16.mxu0 0
  %79 = vmatpush1.bf16.msra.mxu0 0
  %80 = vmatprep.subr.bf16.mxu0 0
  %81 = vmatpush1.bf16.msra.mxu0 0
  %82 = vmatprep.subr.bf16.mxu0 0
  %83 = vmatpush1.bf16.msra.mxu0 0
  %84 = vmatprep.subr.bf16.mxu0 0
  %85 = vmatpush1.bf16.msra.mxu0 0
  %86 = vmatprep.subr.bf16.mxu0 0
  %87 = vmatpush1.bf16.msra.mxu0 0
  %88 = vmatprep.subr.bf16.mxu0 0
  %89 = vmatpush1.bf16.msra.mxu0 0
  %90 = vmatprep.subr.bf16.mxu0 0
  %91 = vmatpush1.bf16.msra.mxu0 0
  %92 = vmatprep.subr.bf16.mxu0 0
  %93 = vmatpush1.bf16.msra.mxu0 0
  %94 = vmatprep.subr.bf16.mxu0 0
  %95 = vmatpush1.bf16.msra.mxu0 0
  %96 = vmatprep.subr.bf16.mxu0 0
  %97 = vmatpush1.bf16.msra.mxu0 0
  %98 = vmatprep.subr.bf16.mxu0 0
  %99 = vmatpush1.bf16.msra.mxu0 0
  %100 = vmatprep.subr.bf16.mxu0 0
  %101 = vmatpush1.bf16.msra.mxu0 0
  %102 = vmatprep.subr.bf16.mxu0 0
  %103 = vmatpush1.bf16.msra.mxu0 0
  %104 = vmatprep.mubr.bf16.mxu0 0
  %105 = vmatmul.mubr.bf16.gmra.mrb[0].mxu0 %v51
  %v106 = vpop.f32.mrb[0].mxu0
  %v107 = vadd.f32 0.0, %v106
  %v108 = vpop.f32.mrb[0].mxu0
  %v109 = vadd.f32 0.0, %v108
  %v110 = vpop.f32.mrb[0].mxu0
  %v111 = vadd.f32 0.0, %v110
  %v112 = vpop.f32.mrb[0].mxu0
  %v113 = vadd.f32 0.0, %v112
  %114 = vmatprep.mubr.bf16.mxu0 0
  %115 = vmatmul.mubr.bf16.gmra.mrb[0].mxu0 %v54
  %v116 = vpop.f32.mrb[0].mxu0
  %v117 = vadd.f32 0.0, %v116
  %v118 = vpop.f32.mrb[0].mxu0
  %v119 = vadd.f32 0.0, %v118
  %v120 = vpop.f32.mrb[0].mxu0
  %v121 = vadd.f32 0.0, %v120
  %v122 = vpop.f32.mrb[0].mxu0
  %v123 = vadd.f32 0.0, %v122
  %124 = vdwg.mxu0
  %125 = vmatprep.subr.bf16.mxu0 %v70
  %126 = vmatpush1.bf16.msra.mxu0 %v67
  %127 = vmatprep.subr.bf16.mxu0 0
  %128 = vmatpush1.bf16.msra.mxu0 0
  %129 = vmatprep.subr.bf16.mxu0 0
  %130 = vmatpush1.bf16.msra.mxu0 0
  %131 = vmatprep.subr.bf16.mxu0 0
  %132 = vmatpush1.bf16.msra.mxu0 0
  %133 = vmatprep.subr.bf16.mxu0 0
  %134 = vmatpush1.bf16.msra.mxu0 0
  %135 = vmatprep.subr.bf16.mxu0 0
  %136 = vmatpush1.bf16.msra.mxu0 0
  %137 = vmatprep.subr.bf16.mxu0 0
  %138 = vmatpush1.bf16.msra.mxu0 0
  %139 = vmatprep.subr.bf16.mxu0 0
  %140 = vmatpush1.bf16.msra.mxu0 0
  %141 = vmatprep.subr.bf16.mxu0 0
  %142 = vmatpush1.bf16.msra.mxu0 0
  %143 = vmatprep.subr.bf16.mxu0 0
  %144 = vmatpush1.bf16.msra.mxu0 0
  %145 = vmatprep.subr.bf16.mxu0 0
  %146 = vmatpush1.bf16.msra.mxu0 0
  %147 = vmatprep.subr.bf16.mxu0 0
  %148 = vmatpush1.bf16.msra.mxu0 0
  %149 = vmatprep.subr.bf16.mxu0 0
  %150 = vmatpush1.bf16.msra.mxu0 0
  %151 = vmatprep.subr.bf16.mxu0 0
  %152 = vmatpush1.bf16.msra.mxu0 0
  %153 = vmatprep.subr.bf16.mxu0 0
  %154 = vmatpush1.bf16.msra.mxu0 0
  %155 = vmatprep.subr.bf16.mxu0 0
  %156 = vmatpush1.bf16.msra.mxu0 0
  %157 = vmatprep.mubr.bf16.mxu0 0
  %158 = vmatmul.mubr.bf16.gmra.mrb[0].mxu0 %v51
  %v159 = vpop.f32.mrb[0].mxu0
  %v160 = vadd.f32 0.0, %v159
  %v161 = vpop.f32.mrb[0].mxu0
  %v162 = vadd.f32 0.0, %v161
  %v163 = vpop.f32.mrb[0].mxu0
  %v164 = vadd.f32 0.0, %v163
  %v165 = vpop.f32.mrb[0].mxu0
  %v166 = vadd.f32 0.0, %v165
  %167 = vmatprep.mubr.bf16.mxu0 0
  %168 = vmatmul.mubr.bf16.gmra.mrb[0].mxu0 %v54
  %v169 = vpop.f32.mrb[0].mxu0
  %v170 = vadd.f32 0.0, %v169
  %v171 = vpop.f32.mrb[0].mxu0
  %v172 = vadd.f32 0.0, %v171
  %v173 = vpop.f32.mrb[0].mxu0
  %v174 = vadd.f32 0.0, %v173
  %v175 = vpop.f32.mrb[0].mxu0
  %v176 = vadd.f32 0.0, %v175
  %177 = vdwg.mxu0
  %s178 = scalar_lea.vmem %s0, 32
  %v179 = vld [vmem:[%s178] sm:$0xff]
  %v180 = vld [vmem:[%s178 + $0x8] sm:$0xff]
  %v181 = vld [vmem:[%s178 + $0x10] sm:$0x11]
  %v182 = vld [vmem:[%s178 + $0x18] sm:$0x11]
  %v187 = vunpack.c.l.b16 %v179
  %v188 = vunpack.c.h.b16 %v179
  %v189 = vunpack.c.l.b16 %v180
  %v190 = vunpack.c.h.b16 %v180
  %v191 = vunpack.c.l.b16 %v181
  %v192 = vunpack.c.h.b16 %v181
  %v193 = vunpack.c.l.b16 %v182
  %v194 = vunpack.c.h.b16 %v182
  %v195 = vpack.c.b16 %v191, %v187
  %v196 = vpack.c.b16 %v192, %v188
  %v197 = vpack.c.b16 %v193, %v189
  %v198 = vpack.c.b16 %v194, %v190
  %v200 = vand.u32 %v195, %v59
  %v203 = vand.u32 %v196, %v59
  %v206 = vand.u32 %v197, %v59
  %v209 = vand.u32 %v198, %v59
  %211 = vmatprep.subr.bf16.mxu0 %v203
  %212 = vmatpush1.bf16.msra.mxu0 %v200
  %213 = vmatprep.subr.bf16.mxu0 0
  %214 = vmatpush1.bf16.msra.mxu0 0
  %215 = vmatprep.subr.bf16.mxu0 0
  %216 = vmatpush1.bf16.msra.mxu0 0
  %217 = vmatprep.subr.bf16.mxu0 0
  %218 = vmatpush1.bf16.msra.mxu0 0
  %219 = vmatprep.subr.bf16.mxu0 0
  %220 = vmatpush1.bf16.msra.mxu0 0
  %221 = vmatprep.subr.bf16.mxu0 0
  %222 = vmatpush1.bf16.msra.mxu0 0
  %223 = vmatprep.subr.bf16.mxu0 0
  %224 = vmatpush1.bf16.msra.mxu0 0
  %225 = vmatprep.subr.bf16.mxu0 0
  %226 = vmatpush1.bf16.msra.mxu0 0
  %227 = vmatprep.subr.bf16.mxu0 0
  %228 = vmatpush1.bf16.msra.mxu0 0
  %229 = vmatprep.subr.bf16.mxu0 0
  %230 = vmatpush1.bf16.msra.mxu0 0
  %231 = vmatprep.subr.bf16.mxu0 0
  %232 = vmatpush1.bf16.msra.mxu0 0
  %233 = vmatprep.subr.bf16.mxu0 0
  %234 = vmatpush1.bf16.msra.mxu0 0
  %235 = vmatprep.subr.bf16.mxu0 0
  %236 = vmatpush1.bf16.msra.mxu0 0
  %237 = vmatprep.subr.bf16.mxu0 0
  %238 = vmatpush1.bf16.msra.mxu0 0
  %239 = vmatprep.subr.bf16.mxu0 0
  %240 = vmatpush1.bf16.msra.mxu0 0
  %241 = vmatprep.subr.bf16.mxu0 0
  %242 = vmatpush1.bf16.msra.mxu0 0
  %243 = vmatprep.mubr.bf16.mxu0 0
  %244 = vmatmul.mubr.bf16.gmra.mrb[0].mxu0 %v51
  %v245 = vpop.f32.mrb[0].mxu0
  %v246 = vadd.f32 0.0, %v245
  %v247 = vpop.f32.mrb[0].mxu0
  %v248 = vadd.f32 0.0, %v247
  %v249 = vpop.f32.mrb[0].mxu0
  %v250 = vadd.f32 0.0, %v249
  %v251 = vpop.f32.mrb[0].mxu0
  %v252 = vadd.f32 0.0, %v251
  %253 = vmatprep.mubr.bf16.mxu0 0
  %254 = vmatmul.mubr.bf16.gmra.mrb[0].mxu0 %v54
  %v255 = vpop.f32.mrb[0].mxu0
  %v256 = vadd.f32 0.0, %v255
  %v257 = vpop.f32.mrb[0].mxu0
  %v258 = vadd.f32 0.0, %v257
  %v259 = vpop.f32.mrb[0].mxu0
  %v260 = vadd.f32 0.0, %v259
  %v261 = vpop.f32.mrb[0].mxu0
  %v262 = vadd.f32 0.0, %v261
  %263 = vdwg.mxu0
  %264 = vmatprep.subr.bf16.mxu0 %v209
  %265 = vmatpush1.bf16.msra.mxu0 %v206
  %266 = vmatprep.subr.bf16.mxu0 0
  %267 = vmatpush1.bf16.msra.mxu0 0
  %268 = vmatprep.subr.bf16.mxu0 0
  %269 = vmatpush1.bf16.msra.mxu0 0
  %270 = vmatprep.subr.bf16.mxu0 0
  %271 = vmatpush1.bf16.msra.mxu0 0
  %272 = vmatprep.subr.bf16.mxu0 0
  %273 = vmatpush1.bf16.msra.mxu0 0
  %274 = vmatprep.subr.bf16.mxu0 0
  %275 = vmatpush1.bf16.msra.mxu0 0
  %276 = vmatprep.subr.bf16.mxu0 0
  %277 = vmatpush1.bf16.msra.mxu0 0
  %278 = vmatprep.subr.bf16.mxu0 0
  %279 = vmatpush1.bf16.msra.mxu0 0
  %280 = vmatprep.subr.bf16.mxu0 0
  %281 = vmatpush1.bf16.msra.mxu0 0
  %282 = vmatprep.subr.bf16.mxu0 0
  %283 = vmatpush1.bf16.msra.mxu0 0
  %284 = vmatprep.subr.bf16.mxu0 0
  %285 = vmatpush1.bf16.msra.mxu0 0
  %286 = vmatprep.subr.bf16.mxu0 0
  %287 = vmatpush1.bf16.msra.mxu0 0
  %288 = vmatprep.subr.bf16.mxu0 0
  %289 = vmatpush1.bf16.msra.mxu0 0
  %290 = vmatprep.subr.bf16.mxu0 0
  %291 = vmatpush1.bf16.msra.mxu0 0
  %292 = vmatprep.subr.bf16.mxu0 0
  %293 = vmatpush1.bf16.msra.mxu0 0
  %294 = vmatprep.subr.bf16.mxu0 0
  %295 = vmatpush1.bf16.msra.mxu0 0
  %296 = vmatprep.mubr.bf16.mxu0 0
  %297 = vmatmul.mubr.bf16.gmra.mrb[0].mxu0 %v51
  %v298 = vpop.f32.mrb[0].mxu0
  %v299 = vadd.f32 0.0, %v298
  %v300 = vpop.f32.mrb[0].mxu0
  %v301 = vadd.f32 0.0, %v300
  %v302 = vpop.f32.mrb[0].mxu0
  %v303 = vadd.f32 0.0, %v302
  %v304 = vpop.f32.mrb[0].mxu0
  %v305 = vadd.f32 0.0, %v304
  %306 = vmatprep.mubr.bf16.mxu0 0
  %307 = vmatmul.mubr.bf16.gmra.mrb[0].mxu0 %v54
  %v308 = vpop.f32.mrb[0].mxu0
  %v309 = vadd.f32 0.0, %v308
  %v310 = vpop.f32.mrb[0].mxu0
  %v311 = vadd.f32 0.0, %v310
  %v312 = vpop.f32.mrb[0].mxu0
  %v313 = vadd.f32 0.0, %v312
  %v314 = vpop.f32.mrb[0].mxu0
  %v315 = vadd.f32 0.0, %v314
  %316 = vdwg.mxu0
  %v317 = vmax.f32 %v107, %v246
  %v318 = vmax.f32 %v109, %v248
  %v319 = vmax.f32 %v160, %v299
  %v320 = vmax.f32 %v162, %v301
  %v321 = vmax.f32 %v111, %v250
  %v322 = vmax.f32 %v113, %v252
  %v323 = vmax.f32 %v164, %v303
  %v324 = vmax.f32 %v166, %v305
  %v325 = vmax.f32 %v117, %v256
  %v326 = vmax.f32 %v119, %v258
  %v327 = vmax.f32 %v170, %v309
  %v328 = vmax.f32 %v172, %v311
  %v329 = vmax.f32 %v121, %v260
  %v330 = vmax.f32 %v123, %v262
  %v331 = vmax.f32 %v174, %v313
  %v332 = vmax.f32 %v176, %v315
  %s333 = scalar_lea.vmem %s0, 64
  %v334 = vld [vmem:[%s333] sm:$0xff]
  %v335 = vld [vmem:[%s333 + $0x8] sm:$0xff]
  %v336 = vld [vmem:[%s333 + $0x10] sm:$0x11]
  %v337 = vld [vmem:[%s333 + $0x18] sm:$0x11]
  %v342 = vunpack.c.l.b16 %v334
  %v343 = vunpack.c.h.b16 %v334
  %v344 = vunpack.c.l.b16 %v335
  %v345 = vunpack.c.h.b16 %v335
  %v346 = vunpack.c.l.b16 %v336
  %v347 = vunpack.c.h.b16 %v336
  %v348 = vunpack.c.l.b16 %v337
  %v349 = vunpack.c.h.b16 %v337
  %v350 = vpack.c.b16 %v346, %v342
  %v351 = vpack.c.b16 %v347, %v343
  %v352 = vpack.c.b16 %v348, %v344
  %v353 = vpack.c.b16 %v349, %v345
  %v355 = vand.u32 %v350, %v59
  %v358 = vand.u32 %v351, %v59
  %v361 = vand.u32 %v352, %v59
  %v364 = vand.u32 %v353, %v59
  %366 = vmatprep.subr.bf16.mxu0 %v358
  %367 = vmatpush1.bf16.msra.mxu0 %v355
  %368 = vmatprep.subr.bf16.mxu0 0
  %369 = vmatpush1.bf16.msra.mxu0 0
  %370 = vmatprep.subr.bf16.mxu0 0
  %371 = vmatpush1.bf16.msra.mxu0 0
  %372 = vmatprep.subr.bf16.mxu0 0
  %373 = vmatpush1.bf16.msra.mxu0 0
  %374 = vmatprep.subr.bf16.mxu0 0
  %375 = vmatpush1.bf16.msra.mxu0 0
  %376 = vmatprep.subr.bf16.mxu0 0
  %377 = vmatpush1.bf16.msra.mxu0 0
  %378 = vmatprep.subr.bf16.mxu0 0
  %379 = vmatpush1.bf16.msra.mxu0 0
  %380 = vmatprep.subr.bf16.mxu0 0
  %381 = vmatpush1.bf16.msra.mxu0 0
  %382 = vmatprep.subr.bf16.mxu0 0
  %383 = vmatpush1.bf16.msra.mxu0 0
  %384 = vmatprep.subr.bf16.mxu0 0
  %385 = vmatpush1.bf16.msra.mxu0 0
  %386 = vmatprep.subr.bf16.mxu0 0
  %387 = vmatpush1.bf16.msra.mxu0 0
  %388 = vmatprep.subr.bf16.mxu0 0
  %389 = vmatpush1.bf16.msra.mxu0 0
  %390 = vmatprep.subr.bf16.mxu0 0
  %391 = vmatpush1.bf16.msra.mxu0 0
  %392 = vmatprep.subr.bf16.mxu0 0
  %393 = vmatpush1.bf16.msra.mxu0 0
  %394 = vmatprep.subr.bf16.mxu0 0
  %395 = vmatpush1.bf16.msra.mxu0 0
  %396 = vmatprep.subr.bf16.mxu0 0
  %397 = vmatpush1.bf16.msra.mxu0 0
  %398 = vmatprep.mubr.bf16.mxu0 0
  %399 = vmatmul.mubr.bf16.gmra.mrb[0].mxu0 %v51
  %v400 = vpop.f32.mrb[0].mxu0
  %v401 = vadd.f32 0.0, %v400
  %v402 = vpop.f32.mrb[0].mxu0
  %v403 = vadd.f32 0.0, %v402
  %v404 = vpop.f32.mrb[0].mxu0
  %v405 = vadd.f32 0.0, %v404
  %v406 = vpop.f32.mrb[0].mxu0
  %v407 = vadd.f32 0.0, %v406
  %408 = vmatprep.mubr.bf16.mxu0 0
  %409 = vmatmul.mubr.bf16.gmra.mrb[0].mxu0 %v54
  %v410 = vpop.f32.mrb[0].mxu0
  %v411 = vadd.f32 0.0, %v410
  %v412 = vpop.f32.mrb[0].mxu0
  %v413 = vadd.f32 0.0, %v412
  %v414 = vpop.f32.mrb[0].mxu0
  %v415 = vadd.f32 0.0, %v414
  %v416 = vpop.f32.mrb[0].mxu0
  %v417 = vadd.f32 0.0, %v416
  %418 = vdwg.mxu0
  %419 = vmatprep.subr.bf16.mxu0 %v364
  %420 = vmatpush1.bf16.msra.mxu0 %v361
  %421 = vmatprep.subr.bf16.mxu0 0
  %422 = vmatpush1.bf16.msra.mxu0 0
  %423 = vmatprep.subr.bf16.mxu0 0
  %424 = vmatpush1.bf16.msra.mxu0 0
  %425 = vmatprep.subr.bf16.mxu0 0
  %426 = vmatpush1.bf16.msra.mxu0 0
  %427 = vmatprep.subr.bf16.mxu0 0
  %428 = vmatpush1.bf16.msra.mxu0 0
  %429 = vmatprep.subr.bf16.mxu0 0
  %430 = vmatpush1.bf16.msra.mxu0 0
  %431 = vmatprep.subr.bf16.mxu0 0
  %432 = vmatpush1.bf16.msra.mxu0 0
  %433 = vmatprep.subr.bf16.mxu0 0
  %434 = vmatpush1.bf16.msra.mxu0 0
  %435 = vmatprep.subr.bf16.mxu0 0
  %436 = vmatpush1.bf16.msra.mxu0 0
  %437 = vmatprep.subr.bf16.mxu0 0
  %438 = vmatpush1.bf16.msra.mxu0 0
  %439 = vmatprep.subr.bf16.mxu0 0
  %440 = vmatpush1.bf16.msra.mxu0 0
  %441 = vmatprep.subr.bf16.mxu0 0
  %442 = vmatpush1.bf16.msra.mxu0 0
  %443 = vmatprep.subr.bf16.mxu0 0
  %444 = vmatpush1.bf16.msra.mxu0 0
  %445 = vmatprep.subr.bf16.mxu0 0
  %446 = vmatpush1.bf16.msra.mxu0 0
  %447 = vmatprep.subr.bf16.mxu0 0
  %448 = vmatpush1.bf16.msra.mxu0 0
  %449 = vmatprep.subr.bf16.mxu0 0
  %450 = vmatpush1.bf16.msra.mxu0 0
  %451 = vmatprep.mubr.bf16.mxu0 0
  %452 = vmatmul.mubr.bf16.gmra.mrb[0].mxu0 %v51
  %v453 = vpop.f32.mrb[0].mxu0
  %v454 = vadd.f32 0.0, %v453
  %v455 = vpop.f32.mrb[0].mxu0
  %v456 = vadd.f32 0.0, %v455
  %v457 = vpop.f32.mrb[0].mxu0
  %v458 = vadd.f32 0.0, %v457
  %v459 = vpop.f32.mrb[0].mxu0
  %v460 = vadd.f32 0.0, %v459
  %461 = vmatprep.mubr.bf16.mxu0 0
  %462 = vmatmul.mubr.bf16.gmra.mrb[0].mxu0 %v54
  %v463 = vpop.f32.mrb[0].mxu0
  %v464 = vadd.f32 0.0, %v463
  %v465 = vpop.f32.mrb[0].mxu0
  %v466 = vadd.f32 0.0, %v465
  %v467 = vpop.f32.mrb[0].mxu0
  %v468 = vadd.f32 0.0, %v467
  %v469 = vpop.f32.mrb[0].mxu0
  %v470 = vadd.f32 0.0, %v469
  %471 = vdwg.mxu0
  %v472 = vmax.f32 %v317, %v401
  %v473 = vmax.f32 %v318, %v403
  %v474 = vmax.f32 %v319, %v454
  %v475 = vmax.f32 %v320, %v456
  %v476 = vmax.f32 %v321, %v405
  %v477 = vmax.f32 %v322, %v407
  %v478 = vmax.f32 %v323, %v458
  %v479 = vmax.f32 %v324, %v460
  %v480 = vmax.f32 %v325, %v411
  %v481 = vmax.f32 %v326, %v413
  %v482 = vmax.f32 %v327, %v464
  %v483 = vmax.f32 %v328, %v466
  %v484 = vmax.f32 %v329, %v415
  %v485 = vmax.f32 %v330, %v417
  %v486 = vmax.f32 %v331, %v468
  %v487 = vmax.f32 %v332, %v470
  %s488 = scalar_lea.vmem %s0, 96
  %v489 = vld [vmem:[%s488] sm:$0xff]
  %v490 = vld [vmem:[%s488 + $0x8] sm:$0xff]
  %v491 = vld [vmem:[%s488 + $0x10] sm:$0x11]
  %v492 = vld [vmem:[%s488 + $0x18] sm:$0x11]
  %v497 = vunpack.c.l.b16 %v489
  %v498 = vunpack.c.h.b16 %v489
  %v499 = vunpack.c.l.b16 %v490
  %v500 = vunpack.c.h.b16 %v490
  %v501 = vunpack.c.l.b16 %v491
  %v502 = vunpack.c.h.b16 %v491
  %v503 = vunpack.c.l.b16 %v492
  %v504 = vunpack.c.h.b16 %v492
  %v505 = vpack.c.b16 %v501, %v497
  %v506 = vpack.c.b16 %v502, %v498
  %v507 = vpack.c.b16 %v503, %v499
  %v508 = vpack.c.b16 %v504, %v500
  %v510 = vand.u32 %v505, %v59
  %v513 = vand.u32 %v506, %v59
  %v516 = vand.u32 %v507, %v59
  %v519 = vand.u32 %v508, %v59
  %521 = vmatprep.subr.bf16.mxu0 %v513
  %522 = vmatpush1.bf16.msra.mxu0 %v510
  %523 = vmatprep.subr.bf16.mxu0 0
  %524 = vmatpush1.bf16.msra.mxu0 0
  %525 = vmatprep.subr.bf16.mxu0 0
  %526 = vmatpush1.bf16.msra.mxu0 0
  %527 = vmatprep.subr.bf16.mxu0 0
  %528 = vmatpush1.bf16.msra.mxu0 0
  %529 = vmatprep.subr.bf16.mxu0 0
  %530 = vmatpush1.bf16.msra.mxu0 0
  %531 = vmatprep.subr.bf16.mxu0 0
  %532 = vmatpush1.bf16.msra.mxu0 0
  %533 = vmatprep.subr.bf16.mxu0 0
  %534 = vmatpush1.bf16.msra.mxu0 0
  %535 = vmatprep.subr.bf16.mxu0 0
  %536 = vmatpush1.bf16.msra.mxu0 0
  %537 = vmatprep.subr.bf16.mxu0 0
  %538 = vmatpush1.bf16.msra.mxu0 0
  %539 = vmatprep.subr.bf16.mxu0 0
  %540 = vmatpush1.bf16.msra.mxu0 0
  %541 = vmatprep.subr.bf16.mxu0 0
  %542 = vmatpush1.bf16.msra.mxu0 0
  %543 = vmatprep.subr.bf16.mxu0 0
  %544 = vmatpush1.bf16.msra.mxu0 0
  %545 = vmatprep.subr.bf16.mxu0 0
  %546 = vmatpush1.bf16.msra.mxu0 0
  %547 = vmatprep.subr.bf16.mxu0 0
  %548 = vmatpush1.bf16.msra.mxu0 0
  %549 = vmatprep.subr.bf16.mxu0 0
  %550 = vmatpush1.bf16.msra.mxu0 0
  %551 = vmatprep.subr.bf16.mxu0 0
  %552 = vmatpush1.bf16.msra.mxu0 0
  %553 = vmatprep.mubr.bf16.mxu0 0
  %554 = vmatmul.mubr.bf16.gmra.mrb[0].mxu0 %v51
  %v555 = vpop.f32.mrb[0].mxu0
  %v556 = vadd.f32 0.0, %v555
  %v557 = vpop.f32.mrb[0].mxu0
  %v558 = vadd.f32 0.0, %v557
  %v559 = vpop.f32.mrb[0].mxu0
  %v560 = vadd.f32 0.0, %v559
  %v561 = vpop.f32.mrb[0].mxu0
  %v562 = vadd.f32 0.0, %v561
  %563 = vmatprep.mubr.bf16.mxu0 0
  %564 = vmatmul.mubr.bf16.gmra.mrb[0].mxu0 %v54
  %v565 = vpop.f32.mrb[0].mxu0
  %v566 = vadd.f32 0.0, %v565
  %v567 = vpop.f32.mrb[0].mxu0
  %v568 = vadd.f32 0.0, %v567
  %v569 = vpop.f32.mrb[0].mxu0
  %v570 = vadd.f32 0.0, %v569
  %v571 = vpop.f32.mrb[0].mxu0
  %v572 = vadd.f32 0.0, %v571
  %573 = vdwg.mxu0
  %574 = vmatprep.subr.bf16.mxu0 %v519
  %575 = vmatpush1.bf16.msra.mxu0 %v516
  %576 = vmatprep.subr.bf16.mxu0 0
  %577 = vmatpush1.bf16.msra.mxu0 0
  %578 = vmatprep.subr.bf16.mxu0 0
  %579 = vmatpush1.bf16.msra.mxu0 0
  %580 = vmatprep.subr.bf16.mxu0 0
  %581 = vmatpush1.bf16.msra.mxu0 0
  %582 = vmatprep.subr.bf16.mxu0 0
  %583 = vmatpush1.bf16.msra.mxu0 0
  %584 = vmatprep.subr.bf16.mxu0 0
  %585 = vmatpush1.bf16.msra.mxu0 0
  %586 = vmatprep.subr.bf16.mxu0 0
  %587 = vmatpush1.bf16.msra.mxu0 0
  %588 = vmatprep.subr.bf16.mxu0 0
  %589 = vmatpush1.bf16.msra.mxu0 0
  %590 = vmatprep.subr.bf16.mxu0 0
  %591 = vmatpush1.bf16.msra.mxu0 0
  %592 = vmatprep.subr.bf16.mxu0 0
  %593 = vmatpush1.bf16.msra.mxu0 0
  %594 = vmatprep.subr.bf16.mxu0 0
  %595 = vmatpush1.bf16.msra.mxu0 0
  %596 = vmatprep.subr.bf16.mxu0 0
  %597 = vmatpush1.bf16.msra.mxu0 0
  %598 = vmatprep.subr.bf16.mxu0 0
  %599 = vmatpush1.bf16.msra.mxu0 0
  %600 = vmatprep.subr.bf16.mxu0 0
  %601 = vmatpush1.bf16.msra.mxu0 0
  %602 = vmatprep.subr.bf16.mxu0 0
  %603 = vmatpush1.bf16.msra.mxu0 0
  %604 = vmatprep.subr.bf16.mxu0 0
  %605 = vmatpush1.bf16.msra.mxu0 0
  %606 = vmatprep.mubr.bf16.mxu0 0
  %607 = vmatmul.mubr.bf16.gmra.mrb[0].mxu0 %v51
  %v608 = vpop.f32.mrb[0].mxu0
  %v609 = vadd.f32 0.0, %v608
  %v610 = vpop.f32.mrb[0].mxu0
  %v611 = vadd.f32 0.0, %v610
  %v612 = vpop.f32.mrb[0].mxu0
  %v613 = vadd.f32 0.0, %v612
  %v614 = vpop.f32.mrb[0].mxu0
  %v615 = vadd.f32 0.0, %v614
  %616 = vmatprep.mubr.bf16.mxu0 0
  %617 = vmatmul.mubr.bf16.gmra.mrb[0].mxu0 %v54
  %v618 = vpop.f32.mrb[0].mxu0
  %v619 = vadd.f32 0.0, %v618
  %v620 = vpop.f32.mrb[0].mxu0
  %v621 = vadd.f32 0.0, %v620
  %v622 = vpop.f32.mrb[0].mxu0
  %v623 = vadd.f32 0.0, %v622
  %v624 = vpop.f32.mrb[0].mxu0
  %v625 = vadd.f32 0.0, %v624
  %626 = vdwg.mxu0
  %v627 = vmax.f32 %v472, %v556
  %v628 = vmax.f32 %v473, %v558
  %v629 = vmax.f32 %v474, %v609
  %v630 = vmax.f32 %v475, %v611
  %v631 = vmax.f32 %v476, %v560
  %v632 = vmax.f32 %v477, %v562
  %v633 = vmax.f32 %v478, %v613
  %v634 = vmax.f32 %v479, %v615
  %v635 = vmax.f32 %v480, %v566
  %v636 = vmax.f32 %v481, %v568
  %v637 = vmax.f32 %v482, %v619
  %v638 = vmax.f32 %v483, %v621
  %v639 = vmax.f32 %v484, %v570
  %v640 = vmax.f32 %v485, %v572
  %v641 = vmax.f32 %v486, %v623
  %v642 = vmax.f32 %v487, %v625
  %v643 = vld [vmem:[%s2] sm:$0xff]
  %v644 = vld [vmem:[%s2 + $0x8] sm:$0xff]
  %v645 = vld [vmem:[%s2 + $0x10] sm:$0xff]
  %v646 = vld [vmem:[%s2 + $0x18] sm:$0xff]
  %648 = vset.pattern.permute.xlu0 0
  %649 = vperm.xlu0 %648, %v643
  %v650 = vpop.permute.xlu0 %649
  %653 = vset.pattern.permute.xlu0 0
  %654 = vperm.xlu0 %653, %v644
  %v655 = vpop.permute.xlu0 %654
  %658 = vset.pattern.permute.xlu0 0
  %659 = vperm.xlu0 %658, %v645
  %v660 = vpop.permute.xlu0 %659
  %663 = vset.pattern.permute.xlu0 0
  %664 = vperm.xlu0 %663, %v646
  %v665 = vpop.permute.xlu0 %664
  %v667 = vadd.f32 %v627, %v650
  %v668 = vadd.f32 %v628, %v650
  %v669 = vadd.f32 %v629, %v650
  %v670 = vadd.f32 %v630, %v650
  %v671 = vadd.f32 %v631, %v655
  %v672 = vadd.f32 %v632, %v655
  %v673 = vadd.f32 %v633, %v655
  %v674 = vadd.f32 %v634, %v655
  %v675 = vadd.f32 %v635, %v660
  %v676 = vadd.f32 %v636, %v660
  %v677 = vadd.f32 %v637, %v660
  %v678 = vadd.f32 %v638, %v660
  %v679 = vadd.f32 %v639, %v665
  %v680 = vadd.f32 %v640, %v665
  %v681 = vadd.f32 %v641, %v665
  %v682 = vadd.f32 %v642, %v665
  %v683 = vmax.f32 %v667, 0.0
  %v684 = vmax.f32 %v668, 0.0
  %v685 = vmax.f32 %v669, 0.0
  %v686 = vmax.f32 %v670, 0.0
  %v687 = vmax.f32 %v671, 0.0
  %v688 = vmax.f32 %v672, 0.0
  %v689 = vmax.f32 %v673, 0.0
  %v690 = vmax.f32 %v674, 0.0
  %v691 = vmax.f32 %v675, 0.0
  %v692 = vmax.f32 %v676, 0.0
  %v693 = vmax.f32 %v677, 0.0
  %v694 = vmax.f32 %v678, 0.0
  %v695 = vmax.f32 %v679, 0.0
  %v696 = vmax.f32 %v680, 0.0
  %v697 = vmax.f32 %v681, 0.0
  %v698 = vmax.f32 %v682, 0.0
  %v699 = vpack.c.bf16 %v687, %v683
  %v700 = vpack.c.bf16 %v688, %v684
  %v701 = vpack.c.bf16 %v689, %v685
  %v702 = vpack.c.bf16 %v690, %v686
  %v703 = vpack.c.bf16 %v695, %v691
  %v704 = vpack.c.bf16 %v696, %v692
  %v705 = vpack.c.bf16 %v697, %v693
  %v706 = vpack.c.bf16 %v698, %v694
  %v715 = vunpack.c.l.b16 %v699
  %v716 = vunpack.c.l.b16 %v700
  %v717 = vunpack.c.l.b16 %v701
  %v718 = vunpack.c.l.b16 %v702
  %v719 = vunpack.c.h.b16 %v699
  %v720 = vunpack.c.h.b16 %v700
  %v721 = vunpack.c.h.b16 %v701
  %v722 = vunpack.c.h.b16 %v702
  %v723 = vunpack.c.l.b16 %v703
  %v724 = vunpack.c.l.b16 %v704
  %v725 = vunpack.c.l.b16 %v705
  %v726 = vunpack.c.l.b16 %v706
  %v727 = vunpack.c.h.b16 %v703
  %v728 = vunpack.c.h.b16 %v704
  %v729 = vunpack.c.h.b16 %v705
  %v730 = vunpack.c.h.b16 %v706
  %v731 = vpack.c.b16 %v716, %v715
  %v732 = vpack.c.b16 %v718, %v717
  %v733 = vpack.c.b16 %v720, %v719
  %v734 = vpack.c.b16 %v722, %v721
  %v735 = vpack.c.b16 %v724, %v723
  %v736 = vpack.c.b16 %v726, %v725
  %v737 = vpack.c.b16 %v728, %v727
  %v738 = vpack.c.b16 %v730, %v729
  %747 = vst [vmem:[%s3] sm:$0xff] %v731
  %748 = vst [vmem:[%s3 + $0x8] sm:$0xff] %v732
  %749 = vst [vmem:[%s3 + $0x10] sm:$0xff] %v733
  %750 = vst [vmem:[%s3 + $0x18] sm:$0xff] %v734
  %751 = vst [vmem:[%s3 + $0x20] sm:$0xff] %v735
  %752 = vst [vmem:[%s3 + $0x28] sm:$0xff] %v736
  %753 = vst [vmem:[%s3 + $0x30] sm:$0xff] %v737
  %754 = vst [vmem:[%s3 + $0x38] sm:$0xff] %v738
  // Predicated region
  $region14: #{cnn_forward.3} parent=0 // pred_check
    _
  $region15: #{cnn_forward.3} parent=0 // pred_check_branch
    %756 = sbr.rel (0) target = $region17
  $region16: #{cnn_forward.3} parent=0 // pred_region
    _
  $region17: #{cnn_forward.3} parent=0 // pred_fallthru
    _
  // Predicated region
  $region18: #{cnn_forward.3} parent=0 // pred_check
    _
  $region19: #{cnn_forward.3} parent=0 // pred_check_branch
    %758 = sbr.rel (0) target = $region21
  $region20: #{cnn_forward.3} parent=0 // pred_region
    _
  $region21: #{cnn_forward.3} parent=0 // pred_fallthru
    _

// kernel: cnn_forward.4
$region0: #{cnn_forward.4}
  #allocation0 [shape = 'u32[]', space=smem, size = 0x4, offset = 0x4, fixed_abs, tag = 'smem constant byte address 0x4 - core index']
  #allocation1 [shape = 'u32[144,128]{1,0:T(1,128)}', space=vmem, size = 0x12000, scoped, tag = 'internal scratch']
  %s0 = inlined_call_operand.vmem [shape: bf16[4,288,128], index: 0, kind: input, shape index: {}]
  %s1 = inlined_call_operand.vmem [shape: bf16[64,288], index: 1, kind: input, shape index: {}]
  %s2 = inlined_call_operand.vmem [shape: f32[64,1], index: 2, kind: input, shape index: {}]
  %s3 = inlined_call_operand.vmem [shape: bf16[64,128], index: 3, kind: output, shape index: {}]
  %s4 = sld [smem:[#allocation0]]
  $region22: #{cnn_forward.4} parent=0
    _
  %s6 = ssub.s32 1, %s4
  %s7 = scalar_select 0, %s6, %s4
  // Predicated region
  $region2: #{cnn_forward.4} parent=0 // pred_check
    _
  $region3: #{cnn_forward.4} parent=0 // pred_check_branch
    %9 = sbr.rel (0) target = $region5
  $region4: #{cnn_forward.4} parent=0 // pred_region
    _
  $region5: #{cnn_forward.4} parent=0 // pred_fallthru
    _
  // Predicated region
  $region6: #{cnn_forward.4} parent=0 // pred_check
    _
  $region7: #{cnn_forward.4} parent=0 // pred_check_branch
    %11 = sbr.rel (0) target = $region9
  $region8: #{cnn_forward.4} parent=0 // pred_region
    _
  $region9: #{cnn_forward.4} parent=0 // pred_fallthru
    _
  // Predicated region
  $region10: #{cnn_forward.4} parent=0 // pred_check
    _
  $region11: #{cnn_forward.4} parent=0 // pred_check_branch
    %13 = sbr.rel (0) target = $region13
  $region12: #{cnn_forward.4} parent=0 // pred_region
    _
  $region13: #{cnn_forward.4} parent=0 // pred_fallthru
    _
  %v15 = vld [vmem:[%s1] sm:$0xff]
  %v16 = vld [vmem:[%s1 + $0x8] sm:$0xf]
  %v17 = vld [vmem:[%s1 + $0xc] sm:$0xff]
  %v18 = vld [vmem:[%s1 + $0x14] sm:$0xf]
  %v19 = vld [vmem:[%s1 + $0x18] sm:$0xff]
  %v20 = vld [vmem:[%s1 + $0x20] sm:$0xf]
  %v21 = vld [vmem:[%s1 + $0x24] sm:$0xff]
  %v22 = vld [vmem:[%s1 + $0x2c] sm:$0xf]
  %v23 = vld [vmem:[%s1 + $0x30] sm:$0xff]
  %v24 = vld [vmem:[%s1 + $0x38] sm:$0xf]
  %v25 = vld [vmem:[%s1 + $0x3c] sm:$0xff]
  %v26 = vld [vmem:[%s1 + $0x44] sm:$0xf]
  %v27 = vld [vmem:[%s1 + $0x48] sm:$0xff]
  %v28 = vld [vmem:[%s1 + $0x50] sm:$0xf]
  %v29 = vld [vmem:[%s1 + $0x54] sm:$0xff]
  %v30 = vld [vmem:[%s1 + $0x5c] sm:$0xf]
  %v31 = vld [vmem:[%s0] sm:$0xf]
  %v32 = vld [vmem:[%s0 + $0x4] sm:$0xf]
  %v33 = vld [vmem:[%s0 + $0x8] sm:$0xf]
  %v34 = vld [vmem:[%s0 + $0xc] sm:$0xf]
  %v35 = vld [vmem:[%s0 + $0x10] sm:$0xf]
  %v36 = vld [vmem:[%s0 + $0x14] sm:$0xf]
  %v37 = vld [vmem:[%s0 + $0x18] sm:$0xf]
  %v38 = vld [vmem:[%s0 + $0x1c] sm:$0xf]
  %v39 = vld [vmem:[%s0 + $0x20] sm:$0xf]
  %v40 = vld [vmem:[%s0 + $0x24] sm:$0xf]
  %v41 = vld [vmem:[%s0 + $0x28] sm:$0xf]
  %v42 = vld [vmem:[%s0 + $0x2c] sm:$0xf]
  %v43 = vld [vmem:[%s0 + $0x30] sm:$0xf]
  %v44 = vld [vmem:[%s0 + $0x34] sm:$0xf]
  %v45 = vld [vmem:[%s0 + $0x38] sm:$0xf]
  %v46 = vld [vmem:[%s0 + $0x3c] sm:$0xf]
  %v47 = vld [vmem:[%s0 + $0x40] sm:$0xf]
  %v48 = vld [vmem:[%s0 + $0x44] sm:$0xf]
  %v49 = vld [vmem:[%s0 + $0x48] sm:$0xf]
  %v50 = vld [vmem:[%s0 + $0x4c] sm:$0xf]
  %v51 = vld [vmem:[%s0 + $0x50] sm:$0xf]
  %v52 = vld [vmem:[%s0 + $0x54] sm:$0xf]
  %v53 = vld [vmem:[%s0 + $0x58] sm:$0xf]
  %v54 = vld [vmem:[%s0 + $0x5c] sm:$0xf]
  %v55 = vld [vmem:[%s0 + $0x60] sm:$0xf]
  %v56 = vld [vmem:[%s0 + $0x64] sm:$0xf]
  %v57 = vld [vmem:[%s0 + $0x68] sm:$0xf]
  %v58 = vld [vmem:[%s0 + $0x6c] sm:$0xf]
  %v59 = vld [vmem:[%s0 + $0x70] sm:$0xf]
  %v60 = vld [vmem:[%s0 + $0x74] sm:$0xf]
  %v61 = vld [vmem:[%s0 + $0x78] sm:$0xf]
  %v62 = vld [vmem:[%s0 + $0x7c] sm:$0xf]
  %v63 = vld [vmem:[%s0 + $0x80] sm:$0xf]
  %v64 = vld [vmem:[%s0 + $0x84] sm:$0xf]
  %v65 = vld [vmem:[%s0 + $0x88] sm:$0xf]
  %v66 = vld [vmem:[%s0 + $0x8c] sm:$0xf]
  %v83 = vunpack.c.l.b16 %v15
  %v84 = vunpack.c.h.b16 %v15
  %v85 = vunpack.c.l.b16 %v16
  %v86 = vunpack.c.l.b16 %v17
  %v87 = vunpack.c.h.b16 %v17
  %v88 = vunpack.c.l.b16 %v18
  %v89 = vunpack.c.l.b16 %v19
  %v90 = vunpack.c.h.b16 %v19
  %v91 = vunpack.c.l.b16 %v20
  %v92 = vunpack.c.l.b16 %v21
  %v93 = vunpack.c.h.b16 %v21
  %v94 = vunpack.c.l.b16 %v22
  %v95 = vunpack.c.l.b16 %v23
  %v96 = vunpack.c.h.b16 %v23
  %v97 = vunpack.c.l.b16 %v24
  %v98 = vunpack.c.l.b16 %v25
  %v99 = vunpack.c.h.b16 %v25
  %v100 = vunpack.c.l.b16 %v26
  %v101 = vunpack.c.l.b16 %v27
  %v102 = vunpack.c.h.b16 %v27
  %v103 = vunpack.c.l.b16 %v28
  %v104 = vunpack.c.l.b16 %v29
  %v105 = vunpack.c.h.b16 %v29
  %v106 = vunpack.c.l.b16 %v30
  %v107 = vpack.c.b16 %v86, %v83
  %v108 = vpack.c.b16 %v87, %v84
  %v109 = vpack.c.b16 %v88, %v85
  %v110 = vpack.c.b16 %v92, %v89
  %v111 = vpack.c.b16 %v93, %v90
  %v112 = vpack.c.b16 %v94, %v91
  %v113 = vpack.c.b16 %v98, %v95
  %v114 = vpack.c.b16 %v99, %v96
  %v115 = vpack.c.b16 %v100, %v97
  %v116 = vpack.c.b16 %v104, %v101
  %v117 = vpack.c.b16 %v105, %v102
  %v118 = vpack.c.b16 %v106, %v103
  %v163 = vunpack.c.l.b16 %v31
  %v164 = vunpack.c.l.b16 %v32
  %v165 = vunpack.c.l.b16 %v33
  %v166 = vunpack.c.l.b16 %v34
  %v167 = vunpack.c.l.b16 %v35
  %v168 = vunpack.c.l.b16 %v36
  %v169 = vunpack.c.l.b16 %v37
  %v170 = vunpack.c.l.b16 %v38
  %v171 = vunpack.c.l.b16 %v39
  %v172 = vunpack.c.l.b16 %v40
  %v173 = vunpack.c.l.b16 %v41
  %v174 = vunpack.c.l.b16 %v42
  %v175 = vunpack.c.l.b16 %v43
  %v176 = vunpack.c.l.b16 %v44
  %v177 = vunpack.c.l.b16 %v45
  %v178 = vunpack.c.l.b16 %v46
  %v179 = vunpack.c.l.b16 %v47
  %v180 = vunpack.c.l.b16 %v48
  %v181 = vunpack.c.l.b16 %v49
  %v182 = vunpack.c.l.b16 %v50
  %v183 = vunpack.c.l.b16 %v51
  %v184 = vunpack.c.l.b16 %v52
  %v185 = vunpack.c.l.b16 %v53
  %v186 = vunpack.c.l.b16 %v54
  %v187 = vunpack.c.l.b16 %v55
  %v188 = vunpack.c.l.b16 %v56
  %v189 = vunpack.c.l.b16 %v57
  %v190 = vunpack.c.l.b16 %v58
  %v191 = vunpack.c.l.b16 %v59
  %v192 = vunpack.c.l.b16 %v60
  %v193 = vunpack.c.l.b16 %v61
  %v194 = vunpack.c.l.b16 %v62
  %v195 = vunpack.c.l.b16 %v63
  %v196 = vunpack.c.l.b16 %v64
  %v197 = vunpack.c.l.b16 %v65
  %v198 = vunpack.c.l.b16 %v66
  %v199 = vpack.c.b16 %v164, %v163
  %v200 = vpack.c.b16 %v166, %v165
  %v201 = vpack.c.b16 %v168, %v167
  %v202 = vpack.c.b16 %v170, %v169
  %v203 = vpack.c.b16 %v172, %v171
  %v204 = vpack.c.b16 %v174, %v173
  %v205 = vpack.c.b16 %v176, %v175
  %v206 = vpack.c.b16 %v178, %v177
  %v207 = vpack.c.b16 %v180, %v179
  %v208 = vpack.c.b16 %v182, %v181
  %v209 = vpack.c.b16 %v184, %v183
  %v210 = vpack.c.b16 %v186, %v185
  %v211 = vpack.c.b16 %v188, %v187
  %v212 = vpack.c.b16 %v190, %v189
  %v213 = vpack.c.b16 %v192, %v191
  %v214 = vpack.c.b16 %v194, %v193
  %v215 = vpack.c.b16 %v196, %v195
  %v216 = vpack.c.b16 %v198, %v197
  %vm235 = vcmask 261120
  %v237 = vsel %vm235, %v109, 0
  %v240 = vsel %vm235, %v112, 0
  %v243 = vsel %vm235, %v115, 0
  %v246 = vsel %vm235, %v118, 0
  %248 = vmatprep.subr.bf16.mxu0 0
  %249 = vmatpush1.bf16.msra.mxu0 %v199
  %250 = vmatprep.subr.bf16.mxu0 0
  %251 = vmatpush1.bf16.msra.mxu0 %v200
  %252 = vmatprep.subr.bf16.mxu0 0
  %253 = vmatpush1.bf16.msra.mxu0 %v201
  %254 = vmatprep.subr.bf16.mxu0 0
  %255 = vmatpush1.bf16.msra.mxu0 %v202
  %256 = vmatprep.subr.bf16.mxu0 0
  %257 = vmatpush1.bf16.msra.mxu0 %v203
  %258 = vmatprep.subr.bf16.mxu0 0
  %259 = vmatpush1.bf16.msra.mxu0 %v204
  %260 = vmatprep.subr.bf16.mxu0 0
  %261 = vmatpush1.bf16.msra.mxu0 %v205
  %262 = vmatprep.subr.bf16.mxu0 0
  %263 = vmatpush1.bf16.msra.mxu0 %v206
  %264 = vmatprep.subr.bf16.mxu0 0
  %265 = vmatpush1.bf16.msra.mxu0 %v207
  %266 = vmatprep.subr.bf16.mxu0 0
  %267 = vmatpush1.bf16.msra.mxu0 %v208
  %268 = vmatprep.subr.bf16.mxu0 0
  %269 = vmatpush1.bf16.msra.mxu0 %v209
  %270 = vmatprep.subr.bf16.mxu0 0
  %271 = vmatpush1.bf16.msra.mxu0 %v210
  %272 = vmatprep.subr.bf16.mxu0 0
  %273 = vmatpush1.bf16.msra.mxu0 %v211
  %274 = vmatprep.subr.bf16.mxu0 0
  %275 = vmatpush1.bf16.msra.mxu0 %v212
  %276 = vmatprep.subr.bf16.mxu0 0
  %277 = vmatpush1.bf16.msra.mxu0 %v213
  %278 = vmatprep.subr.bf16.mxu0 0
  %279 = vmatpush1.bf16.msra.mxu0 %v214
  %280 = vmatprep.mubr.bf16.mxu0 %v108
  %281 = vmatmul.mubr.bf16.gmra.mrb[0].mxu0 %v107
  %v282 = vpop.f32.mrb[0].mxu0
  %v283 = vadd.f32 0.0, %v282
  %v284 = vpop.f32.mrb[0].mxu0
  %v285 = vpop.f32.mrb[0].mxu0
  %v286 = vadd.f32 0.0, %v285
  %v287 = vpop.f32.mrb[0].mxu0
  %288 = vmatprep.mubr.bf16.mxu0 %v111
  %289 = vmatmul.mubr.bf16.gmra.mrb[0].mxu0 %v110
  %v290 = vpop.f32.mrb[0].mxu0
  %v291 = vadd.f32 0.0, %v290
  %v292 = vpop.f32.mrb[0].mxu0
  %v293 = vpop.f32.mrb[0].mxu0
  %v294 = vadd.f32 0.0, %v293
  %v295 = vpop.f32.mrb[0].mxu0
  %296 = vmatprep.mubr.bf16.mxu0 %v114
  %297 = vmatmul.mubr.bf16.gmra.mrb[0].mxu0 %v113
  %v298 = vpop.f32.mrb[0].mxu0
  %v299 = vadd.f32 0.0, %v298
  %v300 = vpop.f32.mrb[0].mxu0
  %v301 = vpop.f32.mrb[0].mxu0
  %v302 = vadd.f32 0.0, %v301
  %v303 = vpop.f32.mrb[0].mxu0
  %304 = vmatprep.mubr.bf16.mxu0 %v117
  %305 = vmatmul.mubr.bf16.gmra.mrb[0].mxu0 %v116
  %v306 = vpop.f32.mrb[0].mxu0
  %v307 = vadd.f32 0.0, %v306
  %v308 = vpop.f32.mrb[0].mxu0
  %v309 = vpop.f32.mrb[0].mxu0
  %v310 = vadd.f32 0.0, %v309
  %v311 = vpop.f32.mrb[0].mxu0
  %312 = vdwg.mxu0
  %313 = vmatprep.subr.bf16.mxu0 0
  %314 = vmatpush1.bf16.msra.mxu0 %v215
  %315 = vmatprep.subr.bf16.mxu0 0
  %316 = vmatpush1.bf16.msra.mxu0 %v216
  %317 = vmatprep.subr.bf16.mxu0 0
  %318 = vmatpush1.bf16.msra.mxu0 0
  %319 = vmatprep.subr.bf16.mxu0 0
  %320 = vmatpush1.bf16.msra.mxu0 0
  %321 = vmatprep.subr.bf16.mxu0 0
  %322 = vmatpush1.bf16.msra.mxu0 0
  %323 = vmatprep.subr.bf16.mxu0 0
  %324 = vmatpush1.bf16.msra.mxu0 0
  %325 = vmatprep.subr.bf16.mxu0 0
  %326 = vmatpush1.bf16.msra.mxu0 0
  %327 = vmatprep.subr.bf16.mxu0 0
  %328 = vmatpush1.bf16.msra.mxu0 0
  %329 = vmatprep.subr.bf16.mxu0 0
  %330 = vmatpush1.bf16.msra.mxu0 0
  %331 = vmatprep.subr.bf16.mxu0 0
  %332 = vmatpush1.bf16.msra.mxu0 0
  %333 = vmatprep.subr.bf16.mxu0 0
  %334 = vmatpush1.bf16.msra.mxu0 0
  %335 = vmatprep.subr.bf16.mxu0 0
  %336 = vmatpush1.bf16.msra.mxu0 0
  %337 = vmatprep.subr.bf16.mxu0 0
  %338 = vmatpush1.bf16.msra.mxu0 0
  %339 = vmatprep.subr.bf16.mxu0 0
  %340 = vmatpush1.bf16.msra.mxu0 0
  %341 = vmatprep.subr.bf16.mxu0 0
  %342 = vmatpush1.bf16.msra.mxu0 0
  %343 = vmatprep.subr.bf16.mxu0 0
  %344 = vmatpush1.bf16.msra.mxu0 0
  %345 = vmatprep.mubr.bf16.mxu0 0
  %346 = vmatmul.mubr.bf16.gmra.mrb[0].mxu0 %v237
  %v347 = vpop.f32.mrb[0].mxu0
  %v348 = vadd.f32 %v283, %v347
  %v349 = vpop.f32.mrb[0].mxu0
  %v350 = vpop.f32.mrb[0].mxu0
  %v351 = vadd.f32 %v286, %v350
  %v352 = vpop.f32.mrb[0].mxu0
  %353 = vmatprep.mubr.bf16.mxu0 0
  %354 = vmatmul.mubr.bf16.gmra.mrb[0].mxu0 %v240
  %v355 = vpop.f32.mrb[0].mxu0
  %v356 = vadd.f32 %v291, %v355
  %v357 = vpop.f32.mrb[0].mxu0
  %v358 = vpop.f32.mrb[0].mxu0
  %v359 = vadd.f32 %v294, %v358
  %v360 = vpop.f32.mrb[0].mxu0
  %361 = vmatprep.mubr.bf16.mxu0 0
  %362 = vmatmul.mubr.bf16.gmra.mrb[0].mxu0 %v243
  %v363 = vpop.f32.mrb[0].mxu0
  %v364 = vadd.f32 %v299, %v363
  %v365 = vpop.f32.mrb[0].mxu0
  %v366 = vpop.f32.mrb[0].mxu0
  %v367 = vadd.f32 %v302, %v366
  %v368 = vpop.f32.mrb[0].mxu0
  %369 = vmatprep.mubr.bf16.mxu0 0
  %370 = vmatmul.mubr.bf16.gmra.mrb[0].mxu0 %v246
  %v371 = vpop.f32.mrb[0].mxu0
  %v372 = vadd.f32 %v307, %v371
  %v373 = vpop.f32.mrb[0].mxu0
  %v374 = vpop.f32.mrb[0].mxu0
  %v375 = vadd.f32 %v310, %v374
  %v376 = vpop.f32.mrb[0].mxu0
  %377 = vdwg.mxu0
  %s378 = scalar_lea.vmem %s0, 144
  %v379 = vld [vmem:[%s378] sm:$0xf]
  %v380 = vld [vmem:[%s378 + $0x4] sm:$0xf]
  %v381 = vld [vmem:[%s378 + $0x8] sm:$0xf]
  %v382 = vld [vmem:[%s378 + $0xc] sm:$0xf]
  %v383 = vld [vmem:[%s378 + $0x10] sm:$0xf]
  %v384 = vld [vmem:[%s378 + $0x14] sm:$0xf]
  %v385 = vld [vmem:[%s378 + $0x18] sm:$0xf]
  %v386 = vld [vmem:[%s378 + $0x1c] sm:$0xf]
  %v387 = vld [vmem:[%s378 + $0x20] sm:$0xf]
  %v388 = vld [vmem:[%s378 + $0x24] sm:$0xf]
  %v389 = vld [vmem:[%s378 + $0x28] sm:$0xf]
  %v390 = vld [vmem:[%s378 + $0x2c] sm:$0xf]
  %v391 = vld [vmem:[%s378 + $0x30] sm:$0xf]
  %v392 = vld [vmem:[%s378 + $0x34] sm:$0xf]
  %v393 = vld [vmem:[%s378 + $0x38] sm:$0xf]
  %v394 = vld [vmem:[%s378 + $0x3c] sm:$0xf]
  %v395 = vld [vmem:[%s378 + $0x40] sm:$0xf]
  %v396 = vld [vmem:[%s378 + $0x44] sm:$0xf]
  %v397 = vld [vmem:[%s378 + $0x48] sm:$0xf]
  %v398 = vld [vmem:[%s378 + $0x4c] sm:$0xf]
  %v399 = vld [vmem:[%s378 + $0x50] sm:$0xf]
  %v400 = vld [vmem:[%s378 + $0x54] sm:$0xf]
  %v401 = vld [vmem:[%s378 + $0x58] sm:$0xf]
  %v402 = vld [vmem:[%s378 + $0x5c] sm:$0xf]
  %v403 = vld [vmem:[%s378 + $0x60] sm:$0xf]
  %v404 = vld [vmem:[%s378 + $0x64] sm:$0xf]
  %v405 = vld [vmem:[%s378 + $0x68] sm:$0xf]
  %v406 = vld [vmem:[%s378 + $0x6c] sm:$0xf]
  %v407 = vld [vmem:[%s378 + $0x70] sm:$0xf]
  %v408 = vld [vmem:[%s378 + $0x74] sm:$0xf]
  %v409 = vld [vmem:[%s378 + $0x78] sm:$0xf]
  %v410 = vld [vmem:[%s378 + $0x7c] sm:$0xf]
  %v411 = vld [vmem:[%s378 + $0x80] sm:$0xf]
  %v412 = vld [vmem:[%s378 + $0x84] sm:$0xf]
  %v413 = vld [vmem:[%s378 + $0x88] sm:$0xf]
  %v414 = vld [vmem:[%s378 + $0x8c] sm:$0xf]
  %v451 = vunpack.c.l.b16 %v379
  %v452 = vunpack.c.l.b16 %v380
  %v453 = vunpack.c.l.b16 %v381
  %v454 = vunpack.c.l.b16 %v382
  %v455 = vunpack.c.l.b16 %v383
  %v456 = vunpack.c.l.b16 %v384
  %v457 = vunpack.c.l.b16 %v385
  %v458 = vunpack.c.l.b16 %v386
  %v459 = vunpack.c.l.b16 %v387
  %v460 = vunpack.c.l.b16 %v388
  %v461 = vunpack.c.l.b16 %v389
  %v462 = vunpack.c.l.b16 %v390
  %v463 = vunpack.c.l.b16 %v391
  %v464 = vunpack.c.l.b16 %v392
  %v465 = vunpack.c.l.b16 %v393
  %v466 = vunpack.c.l.b16 %v394
  %v467 = vunpack.c.l.b16 %v395
  %v468 = vunpack.c.l.b16 %v396
  %v469 = vunpack.c.l.b16 %v397
  %v470 = vunpack.c.l.b16 %v398
  %v471 = vunpack.c.l.b16 %v399
  %v472 = vunpack.c.l.b16 %v400
  %v473 = vunpack.c.l.b16 %v401
  %v474 = vunpack.c.l.b16 %v402
  %v475 = vunpack.c.l.b16 %v403
  %v476 = vunpack.c.l.b16 %v404
  %v477 = vunpack.c.l.b16 %v405
  %v478 = vunpack.c.l.b16 %v406
  %v479 = vunpack.c.l.b16 %v407
  %v480 = vunpack.c.l.b16 %v408
  %v481 = vunpack.c.l.b16 %v409
  %v482 = vunpack.c.l.b16 %v410
  %v483 = vunpack.c.l.b16 %v411
  %v484 = vunpack.c.l.b16 %v412
  %v485 = vunpack.c.l.b16 %v413
  %v486 = vunpack.c.l.b16 %v414
  %v487 = vpack.c.b16 %v452, %v451
  %v488 = vpack.c.b16 %v454, %v453
  %v489 = vpack.c.b16 %v456, %v455
  %v490 = vpack.c.b16 %v458, %v457
  %v491 = vpack.c.b16 %v460, %v459
  %v492 = vpack.c.b16 %v462, %v461
  %v493 = vpack.c.b16 %v464, %v463
  %v494 = vpack.c.b16 %v466, %v465
  %v495 = vpack.c.b16 %v468, %v467
  %v496 = vpack.c.b16 %v470, %v469
  %v497 = vpack.c.b16 %v472, %v471
  %v498 = vpack.c.b16 %v474, %v473
  %v499 = vpack.c.b16 %v476, %v475
  %v500 = vpack.c.b16 %v478, %v477
  %v501 = vpack.c.b16 %v480, %v479
  %v502 = vpack.c.b16 %v482, %v481
  %v503 = vpack.c.b16 %v484, %v483
  %v504 = vpack.c.b16 %v486, %v485
  %523 = vmatprep.subr.bf16.mxu0 0
  %524 = vmatpush1.bf16.msra.mxu0 %v487
  %525 = vmatprep.subr.bf16.mxu0 0
  %526 = vmatpush1.bf16.msra.mxu0 %v488
  %527 = vmatprep.subr.bf16.mxu0 0
  %528 = vmatpush1.bf16.msra.mxu0 %v489
  %529 = vmatprep.subr.bf16.mxu0 0
  %530 = vmatpush1.bf16.msra.mxu0 %v490
  %531 = vmatprep.subr.bf16.mxu0 0
  %532 = vmatpush1.bf16.msra.mxu0 %v491
  %533 = vmatprep.subr.bf16.mxu0 0
  %534 = vmatpush1.bf16.msra.mxu0 %v492
  %535 = vmatprep.subr.bf16.mxu0 0
  %536 = vmatpush1.bf16.msra.mxu0 %v493
  %537 = vmatprep.subr.bf16.mxu0 0
  %538 = vmatpush1.bf16.msra.mxu0 %v494
  %539 = vmatprep.subr.bf16.mxu0 0
  %540 = vmatpush1.bf16.msra.mxu0 %v495
  %541 = vmatprep.subr.bf16.mxu0 0
  %542 = vmatpush1.bf16.msra.mxu0 %v496
  %543 = vmatprep.subr.bf16.mxu0 0
  %544 = vmatpush1.bf16.msra.mxu0 %v497
  %545 = vmatprep.subr.bf16.mxu0 0
  %546 = vmatpush1.bf16.msra.mxu0 %v498
  %547 = vmatprep.subr.bf16.mxu0 0
  %548 = vmatpush1.bf16.msra.mxu0 %v499
  %549 = vmatprep.subr.bf16.mxu0 0
  %550 = vmatpush1.bf16.msra.mxu0 %v500
  %551 = vmatprep.subr.bf16.mxu0 0
  %552 = vmatpush1.bf16.msra.mxu0 %v501
  %553 = vmatprep.subr.bf16.mxu0 0
  %554 = vmatpush1.bf16.msra.mxu0 %v502
  %555 = vmatprep.mubr.bf16.mxu0 %v108
  %556 = vmatmul.mubr.bf16.gmra.mrb[0].mxu0 %v107
  %v557 = vpop.f32.mrb[0].mxu0
  %v558 = vadd.f32 0.0, %v557
  %v559 = vpop.f32.mrb[0].mxu0
  %v560 = vpop.f32.mrb[0].mxu0
  %v561 = vadd.f32 0.0, %v560
  %v562 = vpop.f32.mrb[0].mxu0
  %563 = vmatprep.mubr.bf16.mxu0 %v111
  %564 = vmatmul.mubr.bf16.gmra.mrb[0].mxu0 %v110
  %v565 = vpop.f32.mrb[0].mxu0
  %v566 = vadd.f32 0.0, %v565
  %v567 = vpop.f32.mrb[0].mxu0
  %v568 = vpop.f32.mrb[0].mxu0
  %v569 = vadd.f32 0.0, %v568
  %v570 = vpop.f32.mrb[0].mxu0
  %571 = vmatprep.mubr.bf16.mxu0 %v114
  %572 = vmatmul.mubr.bf16.gmra.mrb[0].mxu0 %v113
  %v573 = vpop.f32.mrb[0].mxu0
  %v574 = vadd.f32 0.0, %v573
  %v575 = vpop.f32.mrb[0].mxu0
  %v576 = vpop.f32.mrb[0].mxu0
  %v577 = vadd.f32 0.0, %v576
  %v578 = vpop.f32.mrb[0].mxu0
  %579 = vmatprep.mubr.bf16.mxu0 %v117
  %580 = vmatmul.mubr.bf16.gmra.mrb[0].mxu0 %v116
  %v581 = vpop.f32.mrb[0].mxu0
  %v582 = vadd.f32 0.0, %v581
  %v583 = vpop.f32.mrb[0].mxu0
  %v584 = vpop.f32.mrb[0].mxu0
  %v585 = vadd.f32 0.0, %v584
  %v586 = vpop.f32.mrb[0].mxu0
  %587 = vdwg.mxu0
  %588 = vmatprep.subr.bf16.mxu0 0
  %589 = vmatpush1.bf16.msra.mxu0 %v503
  %590 = vmatprep.subr.bf16.mxu0 0
  %591 = vmatpush1.bf16.msra.mxu0 %v504
  %592 = vmatprep.subr.bf16.mxu0 0
  %593 = vmatpush1.bf16.msra.mxu0 0
  %594 = vmatprep.subr.bf16.mxu0 0
  %595 = vmatpush1.bf16.msra.mxu0 0
  %596 = vmatprep.subr.bf16.mxu0 0
  %597 = vmatpush1.bf16.msra.mxu0 0
  %598 = vmatprep.subr.bf16.mxu0 0
  %599 = vmatpush1.bf16.msra.mxu0 0
  %600 = vmatprep.subr.bf16.mxu0 0
  %601 = vmatpush1.bf16.msra.mxu0 0
  %602 = vmatprep.subr.bf16.mxu0 0
  %603 = vmatpush1.bf16.msra.mxu0 0
  %604 = vmatprep.subr.bf16.mxu0 0
  %605 = vmatpush1.bf16.msra.mxu0 0
  %606 = vmatprep.subr.bf16.mxu0 0
  %607 = vmatpush1.bf16.msra.mxu0 0
  %608 = vmatprep.subr.bf16.mxu0 0
  %609 = vmatpush1.bf16.msra.mxu0 0
  %610 = vmatprep.subr.bf16.mxu0 0
  %611 = vmatpush1.bf16.msra.mxu0 0
  %612 = vmatprep.subr.bf16.mxu0 0
  %613 = vmatpush1.bf16.msra.mxu0 0
  %614 = vmatprep.subr.bf16.mxu0 0
  %615 = vmatpush1.bf16.msra.mxu0 0
  %616 = vmatprep.subr.bf16.mxu0 0
  %617 = vmatpush1.bf16.msra.mxu0 0
  %618 = vmatprep.subr.bf16.mxu0 0
  %619 = vmatpush1.bf16.msra.mxu0 0
  %620 = vmatprep.mubr.bf16.mxu0 0
  %621 = vmatmul.mubr.bf16.gmra.mrb[0].mxu0 %v237
  %v622 = vpop.f32.mrb[0].mxu0
  %v623 = vadd.f32 %v558, %v622
  %v624 = vpop.f32.mrb[0].mxu0
  %v625 = vpop.f32.mrb[0].mxu0
  %v626 = vadd.f32 %v561, %v625
  %v627 = vpop.f32.mrb[0].mxu0
  %628 = vmatprep.mubr.bf16.mxu0 0
  %629 = vmatmul.mubr.bf16.gmra.mrb[0].mxu0 %v240
  %v630 = vpop.f32.mrb[0].mxu0
  %v631 = vadd.f32 %v566, %v630
  %v632 = vpop.f32.mrb[0].mxu0
  %v633 = vpop.f32.mrb[0].mxu0
  %v634 = vadd.f32 %v569, %v633
  %v635 = vpop.f32.mrb[0].mxu0
  %636 = vmatprep.mubr.bf16.mxu0 0
  %637 = vmatmul.mubr.bf16.gmra.mrb[0].mxu0 %v243
  %v638 = vpop.f32.mrb[0].mxu0
  %v639 = vadd.f32 %v574, %v638
  %v640 = vpop.f32.mrb[0].mxu0
  %v641 = vpop.f32.mrb[0].mxu0
  %v642 = vadd.f32 %v577, %v641
  %v643 = vpop.f32.mrb[0].mxu0
  %644 = vmatprep.mubr.bf16.mxu0 0
  %645 = vmatmul.mubr.bf16.gmra.mrb[0].mxu0 %v246
  %v646 = vpop.f32.mrb[0].mxu0
  %v647 = vadd.f32 %v582, %v646
  %v648 = vpop.f32.mrb[0].mxu0
  %v649 = vpop.f32.mrb[0].mxu0
  %v650 = vadd.f32 %v585, %v649
  %v651 = vpop.f32.mrb[0].mxu0
  %652 = vdwg.mxu0
  %v653 = vmax.f32 %v348, %v623
  %v654 = vmax.f32 %v351, %v626
  %v655 = vmax.f32 %v356, %v631
  %v656 = vmax.f32 %v359, %v634
  %v657 = vmax.f32 %v364, %v639
  %v658 = vmax.f32 %v367, %v642
  %v659 = vmax.f32 %v372, %v647
  %v660 = vmax.f32 %v375, %v650
  %s661 = scalar_lea.vmem %s0, 288
  %v662 = vld [vmem:[%s661] sm:$0xf]
  %v663 = vld [vmem:[%s661 + $0x4] sm:$0xf]
  %v664 = vld [vmem:[%s661 + $0x8] sm:$0xf]
  %v665 = vld [vmem:[%s661 + $0xc] sm:$0xf]
  %v666 = vld [vmem:[%s661 + $0x10] sm:$0xf]
  %v667 = vld [vmem:[%s661 + $0x14] sm:$0xf]
  %v668 = vld [vmem:[%s661 + $0x18] sm:$0xf]
  %v669 = vld [vmem:[%s661 + $0x1c] sm:$0xf]
  %v670 = vld [vmem:[%s661 + $0x20] sm:$0xf]
  %v671 = vld [vmem:[%s661 + $0x24] sm:$0xf]
  %v672 = vld [vmem:[%s661 + $0x28] sm:$0xf]
  %v673 = vld [vmem:[%s661 + $0x2c] sm:$0xf]
  %v674 = vld [vmem:[%s661 + $0x30] sm:$0xf]
  %v675 = vld [vmem:[%s661 + $0x34] sm:$0xf]
  %v676 = vld [vmem:[%s661 + $0x38] sm:$0xf]
  %v677 = vld [vmem:[%s661 + $0x3c] sm:$0xf]
  %v678 = vld [vmem:[%s661 + $0x40] sm:$0xf]
  %v679 = vld [vmem:[%s661 + $0x44] sm:$0xf]
  %v680 = vld [vmem:[%s661 + $0x48] sm:$0xf]
  %v681 = vld [vmem:[%s661 + $0x4c] sm:$0xf]
  %v682 = vld [vmem:[%s661 + $0x50] sm:$0xf]
  %v683 = vld [vmem:[%s661 + $0x54] sm:$0xf]
  %v684 = vld [vmem:[%s661 + $0x58] sm:$0xf]
  %v685 = vld [vmem:[%s661 + $0x5c] sm:$0xf]
  %v686 = vld [vmem:[%s661 + $0x60] sm:$0xf]
  %v687 = vld [vmem:[%s661 + $0x64] sm:$0xf]
  %v688 = vld [vmem:[%s661 + $0x68] sm:$0xf]
  %v689 = vld [vmem:[%s661 + $0x6c] sm:$0xf]
  %v690 = vld [vmem:[%s661 + $0x70] sm:$0xf]
  %v691 = vld [vmem:[%s661 + $0x74] sm:$0xf]
  %v692 = vld [vmem:[%s661 + $0x78] sm:$0xf]
  %v693 = vld [vmem:[%s661 + $0x7c] sm:$0xf]
  %v694 = vld [vmem:[%s661 + $0x80] sm:$0xf]
  %v695 = vld [vmem:[%s661 + $0x84] sm:$0xf]
  %v696 = vld [vmem:[%s661 + $0x88] sm:$0xf]
  %v697 = vld [vmem:[%s661 + $0x8c] sm:$0xf]
  %v734 = vunpack.c.l.b16 %v662
  %v735 = vunpack.c.l.b16 %v663
  %v736 = vunpack.c.l.b16 %v664
  %v737 = vunpack.c.l.b16 %v665
  %v738 = vunpack.c.l.b16 %v666
  %v739 = vunpack.c.l.b16 %v667
  %v740 = vunpack.c.l.b16 %v668
  %v741 = vunpack.c.l.b16 %v669
  %v742 = vunpack.c.l.b16 %v670
  %v743 = vunpack.c.l.b16 %v671
  %v744 = vunpack.c.l.b16 %v672
  %v745 = vunpack.c.l.b16 %v673
  %v746 = vunpack.c.l.b16 %v674
  %v747 = vunpack.c.l.b16 %v675
  %v748 = vunpack.c.l.b16 %v676
  %v749 = vunpack.c.l.b16 %v677
  %v750 = vunpack.c.l.b16 %v678
  %v751 = vunpack.c.l.b16 %v679
  %v752 = vunpack.c.l.b16 %v680
  %v753 = vunpack.c.l.b16 %v681
  %v754 = vunpack.c.l.b16 %v682
  %v755 = vunpack.c.l.b16 %v683
  %v756 = vunpack.c.l.b16 %v684
  %v757 = vunpack.c.l.b16 %v685
  %v758 = vunpack.c.l.b16 %v686
  %v759 = vunpack.c.l.b16 %v687
  %v760 = vunpack.c.l.b16 %v688
  %v761 = vunpack.c.l.b16 %v689
  %v762 = vunpack.c.l.b16 %v690
  %v763 = vunpack.c.l.b16 %v691
  %v764 = vunpack.c.l.b16 %v692
  %v765 = vunpack.c.l.b16 %v693
  %v766 = vunpack.c.l.b16 %v694
  %v767 = vunpack.c.l.b16 %v695
  %v768 = vunpack.c.l.b16 %v696
  %v769 = vunpack.c.l.b16 %v697
  %v770 = vpack.c.b16 %v735, %v734
  %v771 = vpack.c.b16 %v737, %v736
  %v772 = vpack.c.b16 %v739, %v738
  %v773 = vpack.c.b16 %v741, %v740
  %v774 = vpack.c.b16 %v743, %v742
  %v775 = vpack.c.b16 %v745, %v744
  %v776 = vpack.c.b16 %v747, %v746
  %v777 = vpack.c.b16 %v749, %v748
  %v778 = vpack.c.b16 %v751, %v750
  %v779 = vpack.c.b16 %v753, %v752
  %v780 = vpack.c.b16 %v755, %v754
  %v781 = vpack.c.b16 %v757, %v756
  %v782 = vpack.c.b16 %v759, %v758
  %v783 = vpack.c.b16 %v761, %v760
  %v784 = vpack.c.b16 %v763, %v762
  %v785 = vpack.c.b16 %v765, %v764
  %v786 = vpack.c.b16 %v767, %v766
  %v787 = vpack.c.b16 %v769, %v768
  %806 = vmatprep.subr.bf16.mxu0 0
  %807 = vmatpush1.bf16.msra.mxu0 %v770
  %808 = vmatprep.subr.bf16.mxu0 0
  %809 = vmatpush1.bf16.msra.mxu0 %v771
  %810 = vmatprep.subr.bf16.mxu0 0
  %811 = vmatpush1.bf16.msra.mxu0 %v772
  %812 = vmatprep.subr.bf16.mxu0 0
  %813 = vmatpush1.bf16.msra.mxu0 %v773
  %814 = vmatprep.subr.bf16.mxu0 0
  %815 = vmatpush1.bf16.msra.mxu0 %v774
  %816 = vmatprep.subr.bf16.mxu0 0
  %817 = vmatpush1.bf16.msra.mxu0 %v775
  %818 = vmatprep.subr.bf16.mxu0 0
  %819 = vmatpush1.bf16.msra.mxu0 %v776
  %820 = vmatprep.subr.bf16.mxu0 0
  %821 = vmatpush1.bf16.msra.mxu0 %v777
  %822 = vmatprep.subr.bf16.mxu0 0
  %823 = vmatpush1.bf16.msra.mxu0 %v778
  %824 = vmatprep.subr.bf16.mxu0 0
  %825 = vmatpush1.bf16.msra.mxu0 %v779
  %826 = vmatprep.subr.bf16.mxu0 0
  %827 = vmatpush1.bf16.msra.mxu0 %v780
  %828 = vmatprep.subr.bf16.mxu0 0
  %829 = vmatpush1.bf16.msra.mxu0 %v781
  %830 = vmatprep.subr.bf16.mxu0 0
  %831 = vmatpush1.bf16.msra.mxu0 %v782
  %832 = vmatprep.subr.bf16.mxu0 0
  %833 = vmatpush1.bf16.msra.mxu0 %v783
  %834 = vmatprep.subr.bf16.mxu0 0
  %835 = vmatpush1.bf16.msra.mxu0 %v784
  %836 = vmatprep.subr.bf16.mxu0 0
  %837 = vmatpush1.bf16.msra.mxu0 %v785
  %838 = vmatprep.mubr.bf16.mxu0 %v108
  %839 = vmatmul.mubr.bf16.gmra.mrb[0].mxu0 %v107
  %v840 = vpop.f32.mrb[0].mxu0
  %v841 = vadd.f32 0.0, %v840
  %v842 = vpop.f32.mrb[0].mxu0
  %v843 = vpop.f32.mrb[0].mxu0
  %v844 = vadd.f32 0.0, %v843
  %v845 = vpop.f32.mrb[0].mxu0
  %846 = vmatprep.mubr.bf16.mxu0 %v111
  %847 = vmatmul.mubr.bf16.gmra.mrb[0].mxu0 %v110
  %v848 = vpop.f32.mrb[0].mxu0
  %v849 = vadd.f32 0.0, %v848
  %v850 = vpop.f32.mrb[0].mxu0
  %v851 = vpop.f32.mrb[0].mxu0
  %v852 = vadd.f32 0.0, %v851
  %v853 = vpop.f32.mrb[0].mxu0
  %854 = vmatprep.mubr.bf16.mxu0 %v114
  %855 = vmatmul.mubr.bf16.gmra.mrb[0].mxu0 %v113
  %v856 = vpop.f32.mrb[0].mxu0
  %v857 = vadd.f32 0.0, %v856
  %v858 = vpop.f32.mrb[0].mxu0
  %v859 = vpop.f32.mrb[0].mxu0
  %v860 = vadd.f32 0.0, %v859
  %v861 = vpop.f32.mrb[0].mxu0
  %862 = vmatprep.mubr.bf16.mxu0 %v117
  %863 = vmatmul.mubr.bf16.gmra.mrb[0].mxu0 %v116
  %v864 = vpop.f32.mrb[0].mxu0
  %v865 = vadd.f32 0.0, %v864
  %v866 = vpop.f32.mrb[0].mxu0
  %v867 = vpop.f32.mrb[0].mxu0
  %v868 = vadd.f32 0.0, %v867
  %v869 = vpop.f32.mrb[0].mxu0
  %870 = vdwg.mxu0
  %871 = vmatprep.subr.bf16.mxu0 0
  %872 = vmatpush1.bf16.msra.mxu0 %v786
  %873 = vmatprep.subr.bf16.mxu0 0
  %874 = vmatpush1.bf16.msra.mxu0 %v787
  %875 = vmatprep.subr.bf16.mxu0 0
  %876 = vmatpush1.bf16.msra.mxu0 0
  %877 = vmatprep.subr.bf16.mxu0 0
  %878 = vmatpush1.bf16.msra.mxu0 0
  %879 = vmatprep.subr.bf16.mxu0 0
  %880 = vmatpush1.bf16.msra.mxu0 0
  %881 = vmatprep.subr.bf16.mxu0 0
  %882 = vmatpush1.bf16.msra.mxu0 0
  %883 = vmatprep.subr.bf16.mxu0 0
  %884 = vmatpush1.bf16.msra.mxu0 0
  %885 = vmatprep.subr.bf16.mxu0 0
  %886 = vmatpush1.bf16.msra.mxu0 0
  %887 = vmatprep.subr.bf16.mxu0 0
  %888 = vmatpush1.bf16.msra.mxu0 0
  %889 = vmatprep.subr.bf16.mxu0 0
  %890 = vmatpush1.bf16.msra.mxu0 0
  %891 = vmatprep.subr.bf16.mxu0 0
  %892 = vmatpush1.bf16.msra.mxu0 0
  %893 = vmatprep.subr.bf16.mxu0 0
  %894 = vmatpush1.bf16.msra.mxu0 0
  %895 = vmatprep.subr.bf16.mxu0 0
  %896 = vmatpush1.bf16.msra.mxu0 0
  %897 = vmatprep.subr.bf16.mxu0 0
  %898 = vmatpush1.bf16.msra.mxu0 0
  %899 = vmatprep.subr.bf16.mxu0 0
  %900 = vmatpush1.bf16.msra.mxu0 0
  %901 = vmatprep.subr.bf16.mxu0 0
  %902 = vmatpush1.bf16.msra.mxu0 0
  %903 = vmatprep.mubr.bf16.mxu0 0
  %904 = vmatmul.mubr.bf16.gmra.mrb[0].mxu0 %v237
  %v905 = vpop.f32.mrb[0].mxu0
  %v906 = vadd.f32 %v841, %v905
  %v907 = vpop.f32.mrb[0].mxu0
  %v908 = vpop.f32.mrb[0].mxu0
  %v909 = vadd.f32 %v844, %v908
  %v910 = vpop.f32.mrb[0].mxu0
  %911 = vmatprep.mubr.bf16.mxu0 0
  %912 = vmatmul.mubr.bf16.gmra.mrb[0].mxu0 %v240
  %v913 = vpop.f32.mrb[0].mxu0
  %v914 = vadd.f32 %v849, %v913
  %v915 = vpop.f32.mrb[0].mxu0
  %v916 = vpop.f32.mrb[0].mxu0
  %v917 = vadd.f32 %v852, %v916
  %v918 = vpop.f32.mrb[0].mxu0
  %919 = vmatprep.mubr.bf16.mxu0 0
  %920 = vmatmul.mubr.bf16.gmra.mrb[0].mxu0 %v243
  %v921 = vpop.f32.mrb[0].mxu0
  %v922 = vadd.f32 %v857, %v921
  %v923 = vpop.f32.mrb[0].mxu0
  %v924 = vpop.f32.mrb[0].mxu0
  %v925 = vadd.f32 %v860, %v924
  %v926 = vpop.f32.mrb[0].mxu0
  %927 = vmatprep.mubr.bf16.mxu0 0
  %928 = vmatmul.mubr.bf16.gmra.mrb[0].mxu0 %v246
  %v929 = vpop.f32.mrb[0].mxu0
  %v930 = vadd.f32 %v865, %v929
  %v931 = vpop.f32.mrb[0].mxu0
  %v932 = vpop.f32.mrb[0].mxu0
  %v933 = vadd.f32 %v868, %v932
  %v934 = vpop.f32.mrb[0].mxu0
  %935 = vdwg.mxu0
  %v936 = vmax.f32 %v653, %v906
  %v937 = vmax.f32 %v654, %v909
  %v938 = vmax.f32 %v655, %v914
  %v939 = vmax.f32 %v656, %v917
  %v940 = vmax.f32 %v657, %v922
  %v941 = vmax.f32 %v658, %v925
  %v942 = vmax.f32 %v659, %v930
  %v943 = vmax.f32 %v660, %v933
  %s944 = scalar_lea.vmem %s0, 432
  %v945 = vld [vmem:[%s944] sm:$0xf]
  %v946 = vld [vmem:[%s944 + $0x4] sm:$0xf]
  %v947 = vld [vmem:[%s944 + $0x8] sm:$0xf]
  %v948 = vld [vmem:[%s944 + $0xc] sm:$0xf]
  %v949 = vld [vmem:[%s944 + $0x10] sm:$0xf]
  %v950 = vld [vmem:[%s944 + $0x14] sm:$0xf]
  %v951 = vld [vmem:[%s944 + $0x18] sm:$0xf]
  %v952 = vld [vmem:[%s944 + $0x1c] sm:$0xf]
  %v953 = vld [vmem:[%s944 + $0x20] sm:$0xf]
  %v954 = vld [vmem:[%s944 + $0x24] sm:$0xf]
  %v955 = vld [vmem:[%s944 + $0x28] sm:$0xf]
  %v956 = vld [vmem:[%s944 + $0x2c] sm:$0xf]
  %v957 = vld [vmem:[%s944 + $0x30] sm:$0xf]
  %v958 = vld [vmem:[%s944 + $0x34] sm:$0xf]
  %v959 = vld [vmem:[%s944 + $0x38] sm:$0xf]
  %v960 = vld [vmem:[%s944 + $0x3c] sm:$0xf]
  %v961 = vld [vmem:[%s944 + $0x40] sm:$0xf]
  %v962 = vld [vmem:[%s944 + $0x44] sm:$0xf]
  %v963 = vld [vmem:[%s944 + $0x48] sm:$0xf]
  %v964 = vld [vmem:[%s944 + $0x4c] sm:$0xf]
  %v965 = vld [vmem:[%s944 + $0x50] sm:$0xf]
  %v966 = vld [vmem:[%s944 + $0x54] sm:$0xf]
  %v967 = vld [vmem:[%s944 + $0x58] sm:$0xf]
  %v968 = vld [vmem:[%s944 + $0x5c] sm:$0xf]
  %v969 = vld [vmem:[%s944 + $0x60] sm:$0xf]
  %v970 = vld [vmem:[%s944 + $0x64] sm:$0xf]
  %v971 = vld [vmem:[%s944 + $0x68] sm:$0xf]
  %v972 = vld [vmem:[%s944 + $0x6c] sm:$0xf]
  %v973 = vld [vmem:[%s944 + $0x70] sm:$0xf]
  %v974 = vld [vmem:[%s944 + $0x74] sm:$0xf]
  %v975 = vld [vmem:[%s944 + $0x78] sm:$0xf]
  %v976 = vld [vmem:[%s944 + $0x7c] sm:$0xf]
  %v977 = vld [vmem:[%s944 + $0x80] sm:$0xf]
  %v978 = vld [vmem:[%s944 + $0x84] sm:$0xf]
  %v979 = vld [vmem:[%s944 + $0x88] sm:$0xf]
  %v980 = vld [vmem:[%s944 + $0x8c] sm:$0xf]
  %v1017 = vunpack.c.l.b16 %v945
  %v1018 = vunpack.c.l.b16 %v946
  %v1019 = vunpack.c.l.b16 %v947
  %v1020 = vunpack.c.l.b16 %v948
  %v1021 = vunpack.c.l.b16 %v949
  %v1022 = vunpack.c.l.b16 %v950
  %v1023 = vunpack.c.l.b16 %v951
  %v1024 = vunpack.c.l.b16 %v952
  %v1025 = vunpack.c.l.b16 %v953
  %v1026 = vunpack.c.l.b16 %v954
  %v1027 = vunpack.c.l.b16 %v955
  %v1028 = vunpack.c.l.b16 %v956
  %v1029 = vunpack.c.l.b16 %v957
  %v1030 = vunpack.c.l.b16 %v958
  %v1031 = vunpack.c.l.b16 %v959
  %v1032 = vunpack.c.l.b16 %v960
  %v1033 = vunpack.c.l.b16 %v961
  %v1034 = vunpack.c.l.b16 %v962
  %v1035 = vunpack.c.l.b16 %v963
  %v1036 = vunpack.c.l.b16 %v964
  %v1037 = vunpack.c.l.b16 %v965
  %v1038 = vunpack.c.l.b16 %v966
  %v1039 = vunpack.c.l.b16 %v967
  %v1040 = vunpack.c.l.b16 %v968
  %v1041 = vunpack.c.l.b16 %v969
  %v1042 = vunpack.c.l.b16 %v970
  %v1043 = vunpack.c.l.b16 %v971
  %v1044 = vunpack.c.l.b16 %v972
  %v1045 = vunpack.c.l.b16 %v973
  %v1046 = vunpack.c.l.b16 %v974
  %v1047 = vunpack.c.l.b16 %v975
  %v1048 = vunpack.c.l.b16 %v976
  %v1049 = vunpack.c.l.b16 %v977
  %v1050 = vunpack.c.l.b16 %v978
  %v1051 = vunpack.c.l.b16 %v979
  %v1052 = vunpack.c.l.b16 %v980
  %v1053 = vpack.c.b16 %v1018, %v1017
  %v1054 = vpack.c.b16 %v1020, %v1019
  %v1055 = vpack.c.b16 %v1022, %v1021
  %v1056 = vpack.c.b16 %v1024, %v1023
  %v1057 = vpack.c.b16 %v1026, %v1025
  %v1058 = vpack.c.b16 %v1028, %v1027
  %v1059 = vpack.c.b16 %v1030, %v1029
  %v1060 = vpack.c.b16 %v1032, %v1031
  %v1061 = vpack.c.b16 %v1034, %v1033
  %v1062 = vpack.c.b16 %v1036, %v1035
  %v1063 = vpack.c.b16 %v1038, %v1037
  %v1064 = vpack.c.b16 %v1040, %v1039
  %v1065 = vpack.c.b16 %v1042, %v1041
  %v1066 = vpack.c.b16 %v1044, %v1043
  %v1067 = vpack.c.b16 %v1046, %v1045
  %v1068 = vpack.c.b16 %v1048, %v1047
  %v1069 = vpack.c.b16 %v1050, %v1049
  %v1070 = vpack.c.b16 %v1052, %v1051
  %1089 = vmatprep.subr.bf16.mxu0 0
  %1090 = vmatpush1.bf16.msra.mxu0 %v1053
  %1091 = vmatprep.subr.bf16.mxu0 0
  %1092 = vmatpush1.bf16.msra.mxu0 %v1054
  %1093 = vmatprep.subr.bf16.mxu0 0
  %1094 = vmatpush1.bf16.msra.mxu0 %v1055
  %1095 = vmatprep.subr.bf16.mxu0 0
  %1096 = vmatpush1.bf16.msra.mxu0 %v1056
  %1097 = vmatprep.subr.bf16.mxu0 0
  %1098 = vmatpush1.bf16.msra.mxu0 %v1057
  %1099 = vmatprep.subr.bf16.mxu0 0
  %1100 = vmatpush1.bf16.msra.mxu0 %v1058
  %1101 = vmatprep.subr.bf16.mxu0 0
  %1102 = vmatpush1.bf16.msra.mxu0 %v1059
  %1103 = vmatprep.subr.bf16.mxu0 0
  %1104 = vmatpush1.bf16.msra.mxu0 %v1060
  %1105 = vmatprep.subr.bf16.mxu0 0
  %1106 = vmatpush1.bf16.msra.mxu0 %v1061
  %1107 = vmatprep.subr.bf16.mxu0 0
  %1108 = vmatpush1.bf16.msra.mxu0 %v1062
  %1109 = vmatprep.subr.bf16.mxu0 0
  %1110 = vmatpush1.bf16.msra.mxu0 %v1063
  %1111 = vmatprep.subr.bf16.mxu0 0
  %1112 = vmatpush1.bf16.msra.mxu0 %v1064
  %1113 = vmatprep.subr.bf16.mxu0 0
  %1114 = vmatpush1.bf16.msra.mxu0 %v1065
  %1115 = vmatprep.subr.bf16.mxu0 0
  %1116 = vmatpush1.bf16.msra.mxu0 %v1066
  %1117 = vmatprep.subr.bf16.mxu0 0
  %1118 = vmatpush1.bf16.msra.mxu0 %v1067
  %1119 = vmatprep.subr.bf16.mxu0 0
  %1120 = vmatpush1.bf16.msra.mxu0 %v1068
  %1121 = vmatprep.mubr.bf16.mxu0 %v108
  %1122 = vmatmul.mubr.bf16.gmra.mrb[0].mxu0 %v107
  %v1123 = vpop.f32.mrb[0].mxu0
  %v1124 = vadd.f32 0.0, %v1123
  %v1125 = vpop.f32.mrb[0].mxu0
  %v1126 = vpop.f32.mrb[0].mxu0
  %v1127 = vadd.f32 0.0, %v1126
  %v1128 = vpop.f32.mrb[0].mxu0
  %1129 = vmatprep.mubr.bf16.mxu0 %v111
  %1130 = vmatmul.mubr.bf16.gmra.mrb[0].mxu0 %v110
  %v1131 = vpop.f32.mrb[0].mxu0
  %v1132 = vadd.f32 0.0, %v1131
  %v1133 = vpop.f32.mrb[0].mxu0
  %v1134 = vpop.f32.mrb[0].mxu0
  %v1135 = vadd.f32 0.0, %v1134
  %v1136 = vpop.f32.mrb[0].mxu0
  %1137 = vmatprep.mubr.bf16.mxu0 %v114
  %1138 = vmatmul.mubr.bf16.gmra.mrb[0].mxu0 %v113
  %v1139 = vpop.f32.mrb[0].mxu0
  %v1140 = vadd.f32 0.0, %v1139
  %v1141 = vpop.f32.mrb[0].mxu0
  %v1142 = vpop.f32.mrb[0].mxu0
  %v1143 = vadd.f32 0.0, %v1142
  %v1144 = vpop.f32.mrb[0].mxu0
  %1145 = vmatprep.mubr.bf16.mxu0 %v117
  %1146 = vmatmul.mubr.bf16.gmra.mrb[0].mxu0 %v116
  %v1147 = vpop.f32.mrb[0].mxu0
  %v1148 = vadd.f32 0.0, %v1147
  %v1149 = vpop.f32.mrb[0].mxu0
  %v1150 = vpop.f32.mrb[0].mxu0
  %v1151 = vadd.f32 0.0, %v1150
  %v1152 = vpop.f32.mrb[0].mxu0
  %1153 = vdwg.mxu0
  %1154 = vmatprep.subr.bf16.mxu0 0
  %1155 = vmatpush1.bf16.msra.mxu0 %v1069
  %1156 = vmatprep.subr.bf16.mxu0 0
  %1157 = vmatpush1.bf16.msra.mxu0 %v1070
  %1158 = vmatprep.subr.bf16.mxu0 0
  %1159 = vmatpush1.bf16.msra.mxu0 0
  %1160 = vmatprep.subr.bf16.mxu0 0
  %1161 = vmatpush1.bf16.msra.mxu0 0
  %1162 = vmatprep.subr.bf16.mxu0 0
  %1163 = vmatpush1.bf16.msra.mxu0 0
  %1164 = vmatprep.subr.bf16.mxu0 0
  %1165 = vmatpush1.bf16.msra.mxu0 0
  %1166 = vmatprep.subr.bf16.mxu0 0
  %1167 = vmatpush1.bf16.msra.mxu0 0
  %1168 = vmatprep.subr.bf16.mxu0 0
  %1169 = vmatpush1.bf16.msra.mxu0 0
  %1170 = vmatprep.subr.bf16.mxu0 0
  %1171 = vmatpush1.bf16.msra.mxu0 0
  %1172 = vmatprep.subr.bf16.mxu0 0
  %1173 = vmatpush1.bf16.msra.mxu0 0
  %1174 = vmatprep.subr.bf16.mxu0 0
  %1175 = vmatpush1.bf16.msra.mxu0 0
  %1176 = vmatprep.subr.bf16.mxu0 0
  %1177 = vmatpush1.bf16.msra.mxu0 0
  %1178 = vmatprep.subr.bf16.mxu0 0
  %1179 = vmatpush1.bf16.msra.mxu0 0
  %1180 = vmatprep.subr.bf16.mxu0 0
  %1181 = vmatpush1.bf16.msra.mxu0 0
  %1182 = vmatprep.subr.bf16.mxu0 0
  %1183 = vmatpush1.bf16.msra.mxu0 0
  %1184 = vmatprep.subr.bf16.mxu0 0
  %1185 = vmatpush1.bf16.msra.mxu0 0
  %1186 = vmatprep.mubr.bf16.mxu0 0
  %1187 = vmatmul.mubr.bf16.gmra.mrb[0].mxu0 %v237
  %v1188 = vpop.f32.mrb[0].mxu0
  %v1189 = vadd.f32 %v1124, %v1188
  %v1190 = vpop.f32.mrb[0].mxu0
  %v1191 = vpop.f32.mrb[0].mxu0
  %v1192 = vadd.f32 %v1127, %v1191
  %v1193 = vpop.f32.mrb[0].mxu0
  %1194 = vmatprep.mubr.bf16.mxu0 0
  %1195 = vmatmul.mubr.bf16.gmra.mrb[0].mxu0 %v240
  %v1196 = vpop.f32.mrb[0].mxu0
  %v1197 = vadd.f32 %v1132, %v1196
  %v1198 = vpop.f32.mrb[0].mxu0
  %v1199 = vpop.f32.mrb[0].mxu0
  %v1200 = vadd.f32 %v1135, %v1199
  %v1201 = vpop.f32.mrb[0].mxu0
  %1202 = vmatprep.mubr.bf16.mxu0 0
  %1203 = vmatmul.mubr.bf16.gmra.mrb[0].mxu0 %v243
  %v1204 = vpop.f32.mrb[0].mxu0
  %v1205 = vadd.f32 %v1140, %v1204
  %v1206 = vpop.f32.mrb[0].mxu0
  %v1207 = vpop.f32.mrb[0].mxu0
  %v1208 = vadd.f32 %v1143, %v1207
  %v1209 = vpop.f32.mrb[0].mxu0
  %1210 = vmatprep.mubr.bf16.mxu0 0
  %1211 = vmatmul.mubr.bf16.gmra.mrb[0].mxu0 %v246
  %v1212 = vpop.f32.mrb[0].mxu0
  %v1213 = vadd.f32 %v1148, %v1212
  %v1214 = vpop.f32.mrb[0].mxu0
  %v1215 = vpop.f32.mrb[0].mxu0
  %v1216 = vadd.f32 %v1151, %v1215
  %v1217 = vpop.f32.mrb[0].mxu0
  %1218 = vdwg.mxu0
  %v1219 = vmax.f32 %v936, %v1189
  %v1220 = vmax.f32 %v937, %v1192
  %v1221 = vmax.f32 %v938, %v1197
  %v1222 = vmax.f32 %v939, %v1200
  %v1223 = vmax.f32 %v940, %v1205
  %v1224 = vmax.f32 %v941, %v1208
  %v1225 = vmax.f32 %v942, %v1213
  %v1226 = vmax.f32 %v943, %v1216
  %v1227 = vld [vmem:[%s2] sm:$0xff]
  %v1228 = vld [vmem:[%s2 + $0x8] sm:$0xff]
  %v1229 = vld [vmem:[%s2 + $0x10] sm:$0xff]
  %v1230 = vld [vmem:[%s2 + $0x18] sm:$0xff]
  %v1231 = vld [vmem:[%s2 + $0x20] sm:$0xff]
  %v1232 = vld [vmem:[%s2 + $0x28] sm:$0xff]
  %v1233 = vld [vmem:[%s2 + $0x30] sm:$0xff]
  %v1234 = vld [vmem:[%s2 + $0x38] sm:$0xff]
  %1236 = vset.pattern.permute.xlu0 0
  %1237 = vperm.xlu0 %1236, %v1227
  %v1238 = vpop.permute.xlu0 %1237
  %1241 = vset.pattern.permute.xlu0 0
  %1242 = vperm.xlu0 %1241, %v1228
  %v1243 = vpop.permute.xlu0 %1242
  %1246 = vset.pattern.permute.xlu0 0
  %1247 = vperm.xlu0 %1246, %v1229
  %v1248 = vpop.permute.xlu0 %1247
  %1251 = vset.pattern.permute.xlu0 0
  %1252 = vperm.xlu0 %1251, %v1230
  %v1253 = vpop.permute.xlu0 %1252
  %1256 = vset.pattern.permute.xlu0 0
  %1257 = vperm.xlu0 %1256, %v1231
  %v1258 = vpop.permute.xlu0 %1257
  %1261 = vset.pattern.permute.xlu0 0
  %1262 = vperm.xlu0 %1261, %v1232
  %v1263 = vpop.permute.xlu0 %1262
  %1266 = vset.pattern.permute.xlu0 0
  %1267 = vperm.xlu0 %1266, %v1233
  %v1268 = vpop.permute.xlu0 %1267
  %1271 = vset.pattern.permute.xlu0 0
  %1272 = vperm.xlu0 %1271, %v1234
  %v1273 = vpop.permute.xlu0 %1272
  %v1275 = vadd.f32 %v1219, %v1238
  %v1276 = vadd.f32 %v1220, %v1243
  %v1277 = vadd.f32 %v1221, %v1248
  %v1278 = vadd.f32 %v1222, %v1253
  %v1279 = vadd.f32 %v1223, %v1258
  %v1280 = vadd.f32 %v1224, %v1263
  %v1281 = vadd.f32 %v1225, %v1268
  %v1282 = vadd.f32 %v1226, %v1273
  %v1283 = vmax.f32 %v1275, 0.0
  %v1284 = vmax.f32 %v1276, 0.0
  %v1285 = vmax.f32 %v1277, 0.0
  %v1286 = vmax.f32 %v1278, 0.0
  %v1287 = vmax.f32 %v1279, 0.0
  %v1288 = vmax.f32 %v1280, 0.0
  %v1289 = vmax.f32 %v1281, 0.0
  %v1290 = vmax.f32 %v1282, 0.0
  %v1291 = vpack.c.bf16 %v1284, %v1283
  %v1292 = vpack.c.bf16 %v1286, %v1285
  %v1293 = vpack.c.bf16 %v1288, %v1287
  %v1294 = vpack.c.bf16 %v1290, %v1289
  %v1299 = vunpack.c.l.b16 %v1291
  %v1300 = vunpack.c.h.b16 %v1291
  %v1301 = vunpack.c.l.b16 %v1292
  %v1302 = vunpack.c.h.b16 %v1292
  %v1303 = vunpack.c.l.b16 %v1293
  %v1304 = vunpack.c.h.b16 %v1293
  %v1305 = vunpack.c.l.b16 %v1294
  %v1306 = vunpack.c.h.b16 %v1294
  %v1307 = vpack.c.b16 %v1299, %v1299
  %v1308 = vpack.c.b16 %v1300, %v1300
  %v1309 = vpack.c.b16 %v1301, %v1301
  %v1310 = vpack.c.b16 %v1302, %v1302
  %v1311 = vpack.c.b16 %v1303, %v1303
  %v1312 = vpack.c.b16 %v1304, %v1304
  %v1313 = vpack.c.b16 %v1305, %v1305
  %v1314 = vpack.c.b16 %v1306, %v1306
  %1323 = vst [vmem:[%s3] sm:$0xf] %v1307
  %1324 = vst [vmem:[%s3 + $0x4] sm:$0xf] %v1308
  %1325 = vst [vmem:[%s3 + $0x8] sm:$0xf] %v1309
  %1326 = vst [vmem:[%s3 + $0xc] sm:$0xf] %v1310
  %1327 = vst [vmem:[%s3 + $0x10] sm:$0xf] %v1311
  %1328 = vst [vmem:[%s3 + $0x14] sm:$0xf] %v1312
  %1329 = vst [vmem:[%s3 + $0x18] sm:$0xf] %v1313
  %1330 = vst [vmem:[%s3 + $0x1c] sm:$0xf] %v1314
  // Predicated region
  $region14: #{cnn_forward.4} parent=0 // pred_check
    _
  $region15: #{cnn_forward.4} parent=0 // pred_check_branch
    %1332 = sbr.rel (0) target = $region17
  $region16: #{cnn_forward.4} parent=0 // pred_region
    _
  $region17: #{cnn_forward.4} parent=0 // pred_fallthru
    _
  // Predicated region
  $region18: #{cnn_forward.4} parent=0 // pred_check
    _
  $region19: #{cnn_forward.4} parent=0 // pred_check_branch
    %1334 = sbr.rel (0) target = $region21
  $region20: #{cnn_forward.4} parent=0 // pred_region
    _
  $region21: #{cnn_forward.4} parent=0 // pred_fallthru
    _

// kernel: cnn_forward.5
$region0: #{cnn_forward.5}
  #allocation0 [shape = 'u32[]', space=smem, size = 0x4, offset = 0x4, fixed_abs, tag = 'smem constant byte address 0x4 - core index']
  #allocation1 [shape = 'u32[144,128]{1,0:T(1,128)}', space=vmem, size = 0x12000, scoped, tag = 'internal scratch']
  %s0 = inlined_call_operand.vmem [shape: bf16[8,3136], index: 0, kind: input, shape index: {}]
  %s1 = inlined_call_operand.vmem [shape: bf16[3136,128], index: 1, kind: input, shape index: {}]
  %s2 = inlined_call_operand.vmem [shape: f32[1,128], index: 2, kind: input, shape index: {}]
  %s3 = inlined_call_operand.vmem [shape: f32[128,128], index: 3, kind: input, shape index: {}]
  %s4 = inlined_call_operand.vmem [shape: f32[1,128], index: 4, kind: input, shape index: {}]
  %s5 = inlined_call_operand.vmem [shape: f32[8,128], index: 5, kind: output, shape index: {}]
  %s6 = sld [smem:[#allocation0]]
  $region30: #{cnn_forward.5} parent=0
    _
  %s8 = ssub.s32 1, %s6
  %s9 = scalar_select 0, %s8, %s6
  // Predicated region
  $region2: #{cnn_forward.5} parent=0 // pred_check
    _
  $region3: #{cnn_forward.5} parent=0 // pred_check_branch
    %11 = sbr.rel (0) target = $region5
  $region4: #{cnn_forward.5} parent=0 // pred_region
    _
  $region5: #{cnn_forward.5} parent=0 // pred_fallthru
    _
  // Predicated region
  $region6: #{cnn_forward.5} parent=0 // pred_check
    _
  $region7: #{cnn_forward.5} parent=0 // pred_check_branch
    %13 = sbr.rel (0) target = $region9
  $region8: #{cnn_forward.5} parent=0 // pred_region
    _
  $region9: #{cnn_forward.5} parent=0 // pred_fallthru
    _
  // Predicated region
  $region10: #{cnn_forward.5} parent=0 // pred_check
    _
  $region11: #{cnn_forward.5} parent=0 // pred_check_branch
    %15 = sbr.rel (0) target = $region13
  $region12: #{cnn_forward.5} parent=0 // pred_region
    _
  $region13: #{cnn_forward.5} parent=0 // pred_fallthru
    _
  // Predicated region
  $region14: #{cnn_forward.5} parent=0 // pred_check
    _
  $region15: #{cnn_forward.5} parent=0 // pred_check_branch
    %17 = sbr.rel (0) target = $region17
  $region16: #{cnn_forward.5} parent=0 // pred_region
    _
  $region17: #{cnn_forward.5} parent=0 // pred_fallthru
    _
  // Predicated region
  $region18: #{cnn_forward.5} parent=0 // pred_check
    _
  $region19: #{cnn_forward.5} parent=0 // pred_check_branch
    %19 = sbr.rel (0) target = $region21
  $region20: #{cnn_forward.5} parent=0 // pred_region
    _
  $region21: #{cnn_forward.5} parent=0 // pred_fallthru
    _
  %v21 = vld [vmem:[%s0] sm:$0xff]
  %v22 = vld [vmem:[%s0 + $0x8] sm:$0xff]
  %v23 = vld [vmem:[%s0 + $0x10] sm:$0xff]
  %v24 = vld [vmem:[%s0 + $0x18] sm:$0xff]
  %v25 = vld [vmem:[%s0 + $0x20] sm:$0xff]
  %v26 = vld [vmem:[%s0 + $0x28] sm:$0xff]
  %v27 = vld [vmem:[%s0 + $0x30] sm:$0xff]
  %v28 = vld [vmem:[%s0 + $0x38] sm:$0xff]
  %v29 = vld [vmem:[%s0 + $0x40] sm:$0xff]
  %v30 = vld [vmem:[%s0 + $0x48] sm:$0xff]
  %v31 = vld [vmem:[%s0 + $0x50] sm:$0xff]
  %v32 = vld [vmem:[%s0 + $0x58] sm:$0xff]
  %v33 = vld [vmem:[%s0 + $0x60] sm:$0xf]
  %v34 = vld [vmem:[%s1] sm:$0xf]
  %v35 = vld [vmem:[%s1 + $0x4] sm:$0xf]
  %v36 = vld [vmem:[%s1 + $0x8] sm:$0xf]
  %v37 = vld [vmem:[%s1 + $0xc] sm:$0xf]
  %v38 = vld [vmem:[%s1 + $0x10] sm:$0xf]
  %v39 = vld [vmem:[%s1 + $0x14] sm:$0xf]
  %v40 = vld [vmem:[%s1 + $0x18] sm:$0xf]
  %v41 = vld [vmem:[%s1 + $0x1c] sm:$0xf]
  %v42 = vld [vmem:[%s1 + $0x20] sm:$0xf]
  %v43 = vld [vmem:[%s1 + $0x24] sm:$0xf]
  %v44 = vld [vmem:[%s1 + $0x28] sm:$0xf]
  %v45 = vld [vmem:[%s1 + $0x2c] sm:$0xf]
  %v46 = vld [vmem:[%s1 + $0x30] sm:$0xf]
  %v47 = vld [vmem:[%s1 + $0x34] sm:$0xf]
  %v48 = vld [vmem:[%s1 + $0x38] sm:$0xf]
  %v49 = vld [vmem:[%s1 + $0x3c] sm:$0xf]
  %v50 = vld [vmem:[%s1 + $0x40] sm:$0xf]
  %v51 = vld [vmem:[%s1 + $0x44] sm:$0xf]
  %v52 = vld [vmem:[%s1 + $0x48] sm:$0xf]
  %v53 = vld [vmem:[%s1 + $0x4c] sm:$0xf]
  %v54 = vld [vmem:[%s1 + $0x50] sm:$0xf]
  %v55 = vld [vmem:[%s1 + $0x54] sm:$0xf]
  %v56 = vld [vmem:[%s1 + $0x58] sm:$0xf]
  %v57 = vld [vmem:[%s1 + $0x5c] sm:$0xf]
  %v58 = vld [vmem:[%s1 + $0x60] sm:$0xf]
  %v59 = vld [vmem:[%s1 + $0x64] sm:$0xf]
  %v60 = vld [vmem:[%s1 + $0x68] sm:$0xf]
  %v61 = vld [vmem:[%s1 + $0x6c] sm:$0xf]
  %v62 = vld [vmem:[%s1 + $0x70] sm:$0xf]
  %v63 = vld [vmem:[%s1 + $0x74] sm:$0xf]
  %v64 = vld [vmem:[%s1 + $0x78] sm:$0xf]
  %v65 = vld [vmem:[%s1 + $0x7c] sm:$0xf]
  %v66 = vld [vmem:[%s1 + $0x80] sm:$0xf]
  %v67 = vld [vmem:[%s1 + $0x84] sm:$0xf]
  %v68 = vld [vmem:[%s1 + $0x88] sm:$0xf]
  %v69 = vld [vmem:[%s1 + $0x8c] sm:$0xf]
  %v70 = vld [vmem:[%s1 + $0x90] sm:$0xf]
  %v71 = vld [vmem:[%s1 + $0x94] sm:$0xf]
  %v72 = vld [vmem:[%s1 + $0x98] sm:$0xf]
  %v73 = vld [vmem:[%s1 + $0x9c] sm:$0xf]
  %v74 = vld [vmem:[%s1 + $0xa0] sm:$0xf]
  %v75 = vld [vmem:[%s1 + $0xa4] sm:$0xf]
  %v76 = vld [vmem:[%s1 + $0xa8] sm:$0xf]
  %v77 = vld [vmem:[%s1 + $0xac] sm:$0xf]
  %v78 = vld [vmem:[%s1 + $0xb0] sm:$0xf]
  %v79 = vld [vmem:[%s1 + $0xb4] sm:$0xf]
  %v80 = vld [vmem:[%s1 + $0xb8] sm:$0xf]
  %v81 = vld [vmem:[%s1 + $0xbc] sm:$0xf]
  %v82 = vld [vmem:[%s1 + $0xc0] sm:$0xf]
  %v83 = vld [vmem:[%s1 + $0xc4] sm:$0xf]
  %v84 = vld [vmem:[%s1 + $0xc8] sm:$0xf]
  %v85 = vld [vmem:[%s1 + $0xcc] sm:$0xf]
  %v86 = vld [vmem:[%s1 + $0xd0] sm:$0xf]
  %v87 = vld [vmem:[%s1 + $0xd4] sm:$0xf]
  %v88 = vld [vmem:[%s1 + $0xd8] sm:$0xf]
  %v89 = vld [vmem:[%s1 + $0xdc] sm:$0xf]
  %v90 = vld [vmem:[%s1 + $0xe0] sm:$0xf]
  %v91 = vld [vmem:[%s1 + $0xe4] sm:$0xf]
  %v92 = vld [vmem:[%s1 + $0xe8] sm:$0xf]
  %v93 = vld [vmem:[%s1 + $0xec] sm:$0xf]
  %v94 = vld [vmem:[%s1 + $0xf0] sm:$0xf]
  %v95 = vld [vmem:[%s1 + $0xf4] sm:$0xf]
  %v96 = vld [vmem:[%s1 + $0xf8] sm:$0xf]
  %v97 = vld [vmem:[%s1 + $0xfc] sm:$0xf]
  %v98 = vld [vmem:[%s1 + $0x100] sm:$0xf]
  %v99 = vld [vmem:[%s1 + $0x104] sm:$0xf]
  %v100 = vld [vmem:[%s1 + $0x108] sm:$0xf]
  %v101 = vld [vmem:[%s1 + $0x10c] sm:$0xf]
  %v102 = vld [vmem:[%s1 + $0x110] sm:$0xf]
  %v103 = vld [vmem:[%s1 + $0x114] sm:$0xf]
  %v104 = vld [vmem:[%s1 + $0x118] sm:$0xf]
  %v105 = vld [vmem:[%s1 + $0x11c] sm:$0xf]
  %v106 = vld [vmem:[%s1 + $0x120] sm:$0xf]
  %v107 = vld [vmem:[%s1 + $0x124] sm:$0xf]
  %v108 = vld [vmem:[%s1 + $0x128] sm:$0xf]
  %v109 = vld [vmem:[%s1 + $0x12c] sm:$0xf]
  %v110 = vld [vmem:[%s1 + $0x130] sm:$0xf]
  %v111 = vld [vmem:[%s1 + $0x134] sm:$0xf]
  %v112 = vld [vmem:[%s1 + $0x138] sm:$0xf]
  %v113 = vld [vmem:[%s1 + $0x13c] sm:$0xf]
  %v114 = vld [vmem:[%s1 + $0x140] sm:$0xf]
  %v115 = vld [vmem:[%s1 + $0x144] sm:$0xf]
  %v116 = vld [vmem:[%s1 + $0x148] sm:$0xf]
  %v117 = vld [vmem:[%s1 + $0x14c] sm:$0xf]
  %v118 = vld [vmem:[%s1 + $0x150] sm:$0xf]
  %v119 = vld [vmem:[%s1 + $0x154] sm:$0xf]
  %v120 = vld [vmem:[%s1 + $0x158] sm:$0xf]
  %v121 = vld [vmem:[%s1 + $0x15c] sm:$0xf]
  %v122 = vld [vmem:[%s1 + $0x160] sm:$0xf]
  %v123 = vld [vmem:[%s1 + $0x164] sm:$0xf]
  %v124 = vld [vmem:[%s1 + $0x168] sm:$0xf]
  %v125 = vld [vmem:[%s1 + $0x16c] sm:$0xf]
  %v126 = vld [vmem:[%s1 + $0x170] sm:$0xf]
  %v127 = vld [vmem:[%s1 + $0x174] sm:$0xf]
  %v128 = vld [vmem:[%s1 + $0x178] sm:$0xf]
  %v129 = vld [vmem:[%s1 + $0x17c] sm:$0xf]
  %v130 = vld [vmem:[%s1 + $0x180] sm:$0xf]
  %v131 = vld [vmem:[%s1 + $0x184] sm:$0xf]
  %v132 = vld [vmem:[%s1 + $0x188] sm:$0xf]
  %v133 = vld [vmem:[%s1 + $0x18c] sm:$0xf]
  %v134 = vld [vmem:[%s1 + $0x190] sm:$0xf]
  %v135 = vld [vmem:[%s1 + $0x194] sm:$0xf]
  %v136 = vld [vmem:[%s1 + $0x198] sm:$0xf]
  %v137 = vld [vmem:[%s1 + $0x19c] sm:$0xf]
  %v138 = vld [vmem:[%s1 + $0x1a0] sm:$0xf]
  %v139 = vld [vmem:[%s1 + $0x1a4] sm:$0xf]
  %v140 = vld [vmem:[%s1 + $0x1a8] sm:$0xf]
  %v141 = vld [vmem:[%s1 + $0x1ac] sm:$0xf]
  %v142 = vld [vmem:[%s1 + $0x1b0] sm:$0xf]
  %v143 = vld [vmem:[%s1 + $0x1b4] sm:$0xf]
  %v144 = vld [vmem:[%s1 + $0x1b8] sm:$0xf]
  %v145 = vld [vmem:[%s1 + $0x1bc] sm:$0xf]
  %v146 = vld [vmem:[%s1 + $0x1c0] sm:$0xf]
  %v147 = vld [vmem:[%s1 + $0x1c4] sm:$0xf]
  %v148 = vld [vmem:[%s1 + $0x1c8] sm:$0xf]
  %v149 = vld [vmem:[%s1 + $0x1cc] sm:$0xf]
  %v150 = vld [vmem:[%s1 + $0x1d0] sm:$0xf]
  %v151 = vld [vmem:[%s1 + $0x1d4] sm:$0xf]
  %v152 = vld [vmem:[%s1 + $0x1d8] sm:$0xf]
  %v153 = vld [vmem:[%s1 + $0x1dc] sm:$0xf]
  %v154 = vld [vmem:[%s1 + $0x1e0] sm:$0xf]
  %v155 = vld [vmem:[%s1 + $0x1e4] sm:$0xf]
  %v156 = vld [vmem:[%s1 + $0x1e8] sm:$0xf]
  %v157 = vld [vmem:[%s1 + $0x1ec] sm:$0xf]
  %v158 = vld [vmem:[%s1 + $0x1f0] sm:$0xf]
  %v159 = vld [vmem:[%s1 + $0x1f4] sm:$0xf]
  %v160 = vld [vmem:[%s1 + $0x1f8] sm:$0xf]
  %v161 = vld [vmem:[%s1 + $0x1fc] sm:$0xf]
  %v162 = vld [vmem:[%s1 + $0x200] sm:$0xf]
  %v163 = vld [vmem:[%s1 + $0x204] sm:$0xf]
  %v164 = vld [vmem:[%s1 + $0x208] sm:$0xf]
  %v165 = vld [vmem:[%s1 + $0x20c] sm:$0xf]
  %v166 = vld [vmem:[%s1 + $0x210] sm:$0xf]
  %v167 = vld [vmem:[%s1 + $0x214] sm:$0xf]
  %v168 = vld [vmem:[%s1 + $0x218] sm:$0xf]
  %v169 = vld [vmem:[%s1 + $0x21c] sm:$0xf]
  %v170 = vld [vmem:[%s1 + $0x220] sm:$0xf]
  %v171 = vld [vmem:[%s1 + $0x224] sm:$0xf]
  %v172 = vld [vmem:[%s1 + $0x228] sm:$0xf]
  %v173 = vld [vmem:[%s1 + $0x22c] sm:$0xf]
  %v174 = vld [vmem:[%s1 + $0x230] sm:$0xf]
  %v175 = vld [vmem:[%s1 + $0x234] sm:$0xf]
  %v176 = vld [vmem:[%s1 + $0x238] sm:$0xf]
  %v177 = vld [vmem:[%s1 + $0x23c] sm:$0xf]
  %v178 = vld [vmem:[%s1 + $0x240] sm:$0xf]
  %v179 = vld [vmem:[%s1 + $0x244] sm:$0xf]
  %v180 = vld [vmem:[%s1 + $0x248] sm:$0xf]
  %v181 = vld [vmem:[%s1 + $0x24c] sm:$0xf]
  %v182 = vld [vmem:[%s1 + $0x250] sm:$0xf]
  %v183 = vld [vmem:[%s1 + $0x254] sm:$0xf]
  %v184 = vld [vmem:[%s1 + $0x258] sm:$0xf]
  %v185 = vld [vmem:[%s1 + $0x25c] sm:$0xf]
  %v186 = vld [vmem:[%s1 + $0x260] sm:$0xf]
  %v187 = vld [vmem:[%s1 + $0x264] sm:$0xf]
  %v188 = vld [vmem:[%s1 + $0x268] sm:$0xf]
  %v189 = vld [vmem:[%s1 + $0x26c] sm:$0xf]
  %v190 = vld [vmem:[%s1 + $0x270] sm:$0xf]
  %v191 = vld [vmem:[%s1 + $0x274] sm:$0xf]
  %v192 = vld [vmem:[%s1 + $0x278] sm:$0xf]
  %v193 = vld [vmem:[%s1 + $0x27c] sm:$0xf]
  %v194 = vld [vmem:[%s1 + $0x280] sm:$0xf]
  %v195 = vld [vmem:[%s1 + $0x284] sm:$0xf]
  %v196 = vld [vmem:[%s1 + $0x288] sm:$0xf]
  %v197 = vld [vmem:[%s1 + $0x28c] sm:$0xf]
  %v198 = vld [vmem:[%s1 + $0x290] sm:$0xf]
  %v199 = vld [vmem:[%s1 + $0x294] sm:$0xf]
  %v200 = vld [vmem:[%s1 + $0x298] sm:$0xf]
  %v201 = vld [vmem:[%s1 + $0x29c] sm:$0xf]
  %v202 = vld [vmem:[%s1 + $0x2a0] sm:$0xf]
  %v203 = vld [vmem:[%s1 + $0x2a4] sm:$0xf]
  %v204 = vld [vmem:[%s1 + $0x2a8] sm:$0xf]
  %v205 = vld [vmem:[%s1 + $0x2ac] sm:$0xf]
  %v206 = vld [vmem:[%s1 + $0x2b0] sm:$0xf]
  %v207 = vld [vmem:[%s1 + $0x2b4] sm:$0xf]
  %v208 = vld [vmem:[%s1 + $0x2b8] sm:$0xf]
  %v209 = vld [vmem:[%s1 + $0x2bc] sm:$0xf]
  %v210 = vld [vmem:[%s1 + $0x2c0] sm:$0xf]
  %v211 = vld [vmem:[%s1 + $0x2c4] sm:$0xf]
  %v212 = vld [vmem:[%s1 + $0x2c8] sm:$0xf]
  %v213 = vld [vmem:[%s1 + $0x2cc] sm:$0xf]
  %v214 = vld [vmem:[%s1 + $0x2d0] sm:$0xf]
  %v215 = vld [vmem:[%s1 + $0x2d4] sm:$0xf]
  %v216 = vld [vmem:[%s1 + $0x2d8] sm:$0xf]
  %v217 = vld [vmem:[%s1 + $0x2dc] sm:$0xf]
  %v218 = vld [vmem:[%s1 + $0x2e0] sm:$0xf]
  %v219 = vld [vmem:[%s1 + $0x2e4] sm:$0xf]
  %v220 = vld [vmem:[%s1 + $0x2e8] sm:$0xf]
  %v221 = vld [vmem:[%s1 + $0x2ec] sm:$0xf]
  %v222 = vld [vmem:[%s1 + $0x2f0] sm:$0xf]
  %v223 = vld [vmem:[%s1 + $0x2f4] sm:$0xf]
  %v224 = vld [vmem:[%s1 + $0x2f8] sm:$0xf]
  %v225 = vld [vmem:[%s1 + $0x2fc] sm:$0xf]
  %v226 = vld [vmem:[%s1 + $0x300] sm:$0xf]
  %v227 = vld [vmem:[%s1 + $0x304] sm:$0xf]
  %v228 = vld [vmem:[%s1 + $0x308] sm:$0xf]
  %v229 = vld [vmem:[%s1 + $0x30c] sm:$0xf]
  %v230 = vld [vmem:[%s1 + $0x310] sm:$0xf]
  %v231 = vld [vmem:[%s1 + $0x314] sm:$0xf]
  %v232 = vld [vmem:[%s1 + $0x318] sm:$0xf]
  %v233 = vld [vmem:[%s1 + $0x31c] sm:$0xf]
  %v234 = vld [vmem:[%s1 + $0x320] sm:$0xf]
  %v235 = vld [vmem:[%s1 + $0x324] sm:$0xf]
  %v236 = vld [vmem:[%s1 + $0x328] sm:$0xf]
  %v237 = vld [vmem:[%s1 + $0x32c] sm:$0xf]
  %v238 = vld [vmem:[%s1 + $0x330] sm:$0xf]
  %v239 = vld [vmem:[%s1 + $0x334] sm:$0xf]
  %v240 = vld [vmem:[%s1 + $0x338] sm:$0xf]
  %v241 = vld [vmem:[%s1 + $0x33c] sm:$0xf]
  %v242 = vld [vmem:[%s1 + $0x340] sm:$0xf]
  %v243 = vld [vmem:[%s1 + $0x344] sm:$0xf]
  %v244 = vld [vmem:[%s1 + $0x348] sm:$0xf]
  %v245 = vld [vmem:[%s1 + $0x34c] sm:$0xf]
  %v246 = vld [vmem:[%s1 + $0x350] sm:$0xf]
  %v247 = vld [vmem:[%s1 + $0x354] sm:$0xf]
  %v248 = vld [vmem:[%s1 + $0x358] sm:$0xf]
  %v249 = vld [vmem:[%s1 + $0x35c] sm:$0xf]
  %v250 = vld [vmem:[%s1 + $0x360] sm:$0xf]
  %v251 = vld [vmem:[%s1 + $0x364] sm:$0xf]
  %v252 = vld [vmem:[%s1 + $0x368] sm:$0xf]
  %v253 = vld [vmem:[%s1 + $0x36c] sm:$0xf]
  %v254 = vld [vmem:[%s1 + $0x370] sm:$0xf]
  %v255 = vld [vmem:[%s1 + $0x374] sm:$0xf]
  %v256 = vld [vmem:[%s1 + $0x378] sm:$0xf]
  %v257 = vld [vmem:[%s1 + $0x37c] sm:$0xf]
  %v258 = vld [vmem:[%s1 + $0x380] sm:$0xf]
  %v259 = vld [vmem:[%s1 + $0x384] sm:$0xf]
  %v260 = vld [vmem:[%s1 + $0x388] sm:$0xf]
  %v261 = vld [vmem:[%s1 + $0x38c] sm:$0xf]
  %v262 = vld [vmem:[%s1 + $0x390] sm:$0xf]
  %v263 = vld [vmem:[%s1 + $0x394] sm:$0xf]
  %v264 = vld [vmem:[%s1 + $0x398] sm:$0xf]
  %v265 = vld [vmem:[%s1 + $0x39c] sm:$0xf]
  %v266 = vld [vmem:[%s1 + $0x3a0] sm:$0xf]
  %v267 = vld [vmem:[%s1 + $0x3a4] sm:$0xf]
  %v268 = vld [vmem:[%s1 + $0x3a8] sm:$0xf]
  %v269 = vld [vmem:[%s1 + $0x3ac] sm:$0xf]
  %v270 = vld [vmem:[%s1 + $0x3b0] sm:$0xf]
  %v271 = vld [vmem:[%s1 + $0x3b4] sm:$0xf]
  %v272 = vld [vmem:[%s1 + $0x3b8] sm:$0xf]
  %v273 = vld [vmem:[%s1 + $0x3bc] sm:$0xf]
  %v274 = vld [vmem:[%s1 + $0x3c0] sm:$0xf]
  %v275 = vld [vmem:[%s1 + $0x3c4] sm:$0xf]
  %v276 = vld [vmem:[%s1 + $0x3c8] sm:$0xf]
  %v277 = vld [vmem:[%s1 + $0x3cc] sm:$0xf]
  %v278 = vld [vmem:[%s1 + $0x3d0] sm:$0xf]
  %v279 = vld [vmem:[%s1 + $0x3d4] sm:$0xf]
  %v280 = vld [vmem:[%s1 + $0x3d8] sm:$0xf]
  %v281 = vld [vmem:[%s1 + $0x3dc] sm:$0xf]
  %v282 = vld [vmem:[%s1 + $0x3e0] sm:$0xf]
  %v283 = vld [vmem:[%s1 + $0x3e4] sm:$0xf]
  %v284 = vld [vmem:[%s1 + $0x3e8] sm:$0xf]
  %v285 = vld [vmem:[%s1 + $0x3ec] sm:$0xf]
  %v286 = vld [vmem:[%s1 + $0x3f0] sm:$0xf]
  %v287 = vld [vmem:[%s1 + $0x3f4] sm:$0xf]
  %v288 = vld [vmem:[%s1 + $0x3f8] sm:$0xf]
  %v289 = vld [vmem:[%s1 + $0x3fc] sm:$0xf]
  %v290 = vld [vmem:[%s1 + $0x400] sm:$0xf]
  %v291 = vld [vmem:[%s1 + $0x404] sm:$0xf]
  %v292 = vld [vmem:[%s1 + $0x408] sm:$0xf]
  %v293 = vld [vmem:[%s1 + $0x40c] sm:$0xf]
  %v294 = vld [vmem:[%s1 + $0x410] sm:$0xf]
  %v295 = vld [vmem:[%s1 + $0x414] sm:$0xf]
  %v296 = vld [vmem:[%s1 + $0x418] sm:$0xf]
  %v297 = vld [vmem:[%s1 + $0x41c] sm:$0xf]
  %v298 = vld [vmem:[%s1 + $0x420] sm:$0xf]
  %v299 = vld [vmem:[%s1 + $0x424] sm:$0xf]
  %v300 = vld [vmem:[%s1 + $0x428] sm:$0xf]
  %v301 = vld [vmem:[%s1 + $0x42c] sm:$0xf]
  %v302 = vld [vmem:[%s1 + $0x430] sm:$0xf]
  %v303 = vld [vmem:[%s1 + $0x434] sm:$0xf]
  %v304 = vld [vmem:[%s1 + $0x438] sm:$0xf]
  %v305 = vld [vmem:[%s1 + $0x43c] sm:$0xf]
  %v306 = vld [vmem:[%s1 + $0x440] sm:$0xf]
  %v307 = vld [vmem:[%s1 + $0x444] sm:$0xf]
  %v308 = vld [vmem:[%s1 + $0x448] sm:$0xf]
  %v309 = vld [vmem:[%s1 + $0x44c] sm:$0xf]
  %v310 = vld [vmem:[%s1 + $0x450] sm:$0xf]
  %v311 = vld [vmem:[%s1 + $0x454] sm:$0xf]
  %v312 = vld [vmem:[%s1 + $0x458] sm:$0xf]
  %v313 = vld [vmem:[%s1 + $0x45c] sm:$0xf]
  %v314 = vld [vmem:[%s1 + $0x460] sm:$0xf]
  %v315 = vld [vmem:[%s1 + $0x464] sm:$0xf]
  %v316 = vld [vmem:[%s1 + $0x468] sm:$0xf]
  %v317 = vld [vmem:[%s1 + $0x46c] sm:$0xf]
  %v318 = vld [vmem:[%s1 + $0x470] sm:$0xf]
  %v319 = vld [vmem:[%s1 + $0x474] sm:$0xf]
  %v320 = vld [vmem:[%s1 + $0x478] sm:$0xf]
  %v321 = vld [vmem:[%s1 + $0x47c] sm:$0xf]
  %v322 = vld [vmem:[%s1 + $0x480] sm:$0xf]
  %v323 = vld [vmem:[%s1 + $0x484] sm:$0xf]
  %v324 = vld [vmem:[%s1 + $0x488] sm:$0xf]
  %v325 = vld [vmem:[%s1 + $0x48c] sm:$0xf]
  %v326 = vld [vmem:[%s1 + $0x490] sm:$0xf]
  %v327 = vld [vmem:[%s1 + $0x494] sm:$0xf]
  %v328 = vld [vmem:[%s1 + $0x498] sm:$0xf]
  %v329 = vld [vmem:[%s1 + $0x49c] sm:$0xf]
  %v330 = vld [vmem:[%s1 + $0x4a0] sm:$0xf]
  %v331 = vld [vmem:[%s1 + $0x4a4] sm:$0xf]
  %v332 = vld [vmem:[%s1 + $0x4a8] sm:$0xf]
  %v333 = vld [vmem:[%s1 + $0x4ac] sm:$0xf]
  %v334 = vld [vmem:[%s1 + $0x4b0] sm:$0xf]
  %v335 = vld [vmem:[%s1 + $0x4b4] sm:$0xf]
  %v336 = vld [vmem:[%s1 + $0x4b8] sm:$0xf]
  %v337 = vld [vmem:[%s1 + $0x4bc] sm:$0xf]
  %v338 = vld [vmem:[%s1 + $0x4c0] sm:$0xf]
  %v339 = vld [vmem:[%s1 + $0x4c4] sm:$0xf]
  %v340 = vld [vmem:[%s1 + $0x4c8] sm:$0xf]
  %v341 = vld [vmem:[%s1 + $0x4cc] sm:$0xf]
  %v342 = vld [vmem:[%s1 + $0x4d0] sm:$0xf]
  %v343 = vld [vmem:[%s1 + $0x4d4] sm:$0xf]
  %v344 = vld [vmem:[%s1 + $0x4d8] sm:$0xf]
  %v345 = vld [vmem:[%s1 + $0x4dc] sm:$0xf]
  %v346 = vld [vmem:[%s1 + $0x4e0] sm:$0xf]
  %v347 = vld [vmem:[%s1 + $0x4e4] sm:$0xf]
  %v348 = vld [vmem:[%s1 + $0x4e8] sm:$0xf]
  %v349 = vld [vmem:[%s1 + $0x4ec] sm:$0xf]
  %v350 = vld [vmem:[%s1 + $0x4f0] sm:$0xf]
  %v351 = vld [vmem:[%s1 + $0x4f4] sm:$0xf]
  %v352 = vld [vmem:[%s1 + $0x4f8] sm:$0xf]
  %v353 = vld [vmem:[%s1 + $0x4fc] sm:$0xf]
  %v354 = vld [vmem:[%s1 + $0x500] sm:$0xf]
  %v355 = vld [vmem:[%s1 + $0x504] sm:$0xf]
  %v356 = vld [vmem:[%s1 + $0x508] sm:$0xf]
  %v357 = vld [vmem:[%s1 + $0x50c] sm:$0xf]
  %v358 = vld [vmem:[%s1 + $0x510] sm:$0xf]
  %v359 = vld [vmem:[%s1 + $0x514] sm:$0xf]
  %v360 = vld [vmem:[%s1 + $0x518] sm:$0xf]
  %v361 = vld [vmem:[%s1 + $0x51c] sm:$0xf]
  %v362 = vld [vmem:[%s1 + $0x520] sm:$0xf]
  %v363 = vld [vmem:[%s1 + $0x524] sm:$0xf]
  %v364 = vld [vmem:[%s1 + $0x528] sm:$0xf]
  %v365 = vld [vmem:[%s1 + $0x52c] sm:$0xf]
  %v366 = vld [vmem:[%s1 + $0x530] sm:$0xf]
  %v367 = vld [vmem:[%s1 + $0x534] sm:$0xf]
  %v368 = vld [vmem:[%s1 + $0x538] sm:$0xf]
  %v369 = vld [vmem:[%s1 + $0x53c] sm:$0xf]
  %v370 = vld [vmem:[%s1 + $0x540] sm:$0xf]
  %v371 = vld [vmem:[%s1 + $0x544] sm:$0xf]
  %v372 = vld [vmem:[%s1 + $0x548] sm:$0xf]
  %v373 = vld [vmem:[%s1 + $0x54c] sm:$0xf]
  %v374 = vld [vmem:[%s1 + $0x550] sm:$0xf]
  %v375 = vld [vmem:[%s1 + $0x554] sm:$0xf]
  %v376 = vld [vmem:[%s1 + $0x558] sm:$0xf]
  %v377 = vld [vmem:[%s1 + $0x55c] sm:$0xf]
  %v378 = vld [vmem:[%s1 + $0x560] sm:$0xf]
  %v379 = vld [vmem:[%s1 + $0x564] sm:$0xf]
  %v380 = vld [vmem:[%s1 + $0x568] sm:$0xf]
  %v381 = vld [vmem:[%s1 + $0x56c] sm:$0xf]
  %v382 = vld [vmem:[%s1 + $0x570] sm:$0xf]
  %v383 = vld [vmem:[%s1 + $0x574] sm:$0xf]
  %v384 = vld [vmem:[%s1 + $0x578] sm:$0xf]
  %v385 = vld [vmem:[%s1 + $0x57c] sm:$0xf]
  %v386 = vld [vmem:[%s1 + $0x580] sm:$0xf]
  %v387 = vld [vmem:[%s1 + $0x584] sm:$0xf]
  %v388 = vld [vmem:[%s1 + $0x588] sm:$0xf]
  %v389 = vld [vmem:[%s1 + $0x58c] sm:$0xf]
  %v390 = vld [vmem:[%s1 + $0x590] sm:$0xf]
  %v391 = vld [vmem:[%s1 + $0x594] sm:$0xf]
  %v392 = vld [vmem:[%s1 + $0x598] sm:$0xf]
  %v393 = vld [vmem:[%s1 + $0x59c] sm:$0xf]
  %v394 = vld [vmem:[%s1 + $0x5a0] sm:$0xf]
  %v395 = vld [vmem:[%s1 + $0x5a4] sm:$0xf]
  %v396 = vld [vmem:[%s1 + $0x5a8] sm:$0xf]
  %v397 = vld [vmem:[%s1 + $0x5ac] sm:$0xf]
  %v398 = vld [vmem:[%s1 + $0x5b0] sm:$0xf]
  %v399 = vld [vmem:[%s1 + $0x5b4] sm:$0xf]
  %v400 = vld [vmem:[%s1 + $0x5b8] sm:$0xf]
  %v401 = vld [vmem:[%s1 + $0x5bc] sm:$0xf]
  %v402 = vld [vmem:[%s1 + $0x5c0] sm:$0xf]
  %v403 = vld [vmem:[%s1 + $0x5c4] sm:$0xf]
  %v404 = vld [vmem:[%s1 + $0x5c8] sm:$0xf]
  %v405 = vld [vmem:[%s1 + $0x5cc] sm:$0xf]
  %v406 = vld [vmem:[%s1 + $0x5d0] sm:$0xf]
  %v407 = vld [vmem:[%s1 + $0x5d4] sm:$0xf]
  %v408 = vld [vmem:[%s1 + $0x5d8] sm:$0xf]
  %v409 = vld [vmem:[%s1 + $0x5dc] sm:$0xf]
  %v410 = vld [vmem:[%s1 + $0x5e0] sm:$0xf]
  %v411 = vld [vmem:[%s1 + $0x5e4] sm:$0xf]
  %v412 = vld [vmem:[%s1 + $0x5e8] sm:$0xf]
  %v413 = vld [vmem:[%s1 + $0x5ec] sm:$0xf]
  %v414 = vld [vmem:[%s1 + $0x5f0] sm:$0xf]
  %v415 = vld [vmem:[%s1 + $0x5f4] sm:$0xf]
  %v416 = vld [vmem:[%s1 + $0x5f8] sm:$0xf]
  %v417 = vld [vmem:[%s1 + $0x5fc] sm:$0xf]
  %v418 = vld [vmem:[%s1 + $0x600] sm:$0xf]
  %v419 = vld [vmem:[%s1 + $0x604] sm:$0xf]
  %v420 = vld [vmem:[%s1 + $0x608] sm:$0xf]
  %v421 = vld [vmem:[%s1 + $0x60c] sm:$0xf]
  %v422 = vld [vmem:[%s1 + $0x610] sm:$0xf]
  %v423 = vld [vmem:[%s1 + $0x614] sm:$0xf]
  %v424 = vld [vmem:[%s1 + $0x618] sm:$0xf]
  %v425 = vld [vmem:[%s1 + $0x61c] sm:$0xf]
  %v426 = vld [vmem:[%s2] sm:$0x1]
  %v428 = vlaneseq
  %v429 = vshrl.u32 %v428, 7
  %v430 = vsub.s32 0, %v429
  %v431 = vrot.slane %v426, %v430
  %v446 = vunpack.c.l.b16 %v21
  %v447 = vunpack.c.h.b16 %v21
  %v448 = vunpack.c.l.b16 %v22
  %v449 = vunpack.c.h.b16 %v22
  %v450 = vunpack.c.l.b16 %v23
  %v451 = vunpack.c.h.b16 %v23
  %v452 = vunpack.c.l.b16 %v24
  %v453 = vunpack.c.h.b16 %v24
  %v454 = vunpack.c.l.b16 %v25
  %v455 = vunpack.c.h.b16 %v25
  %v456 = vunpack.c.l.b16 %v26
  %v457 = vunpack.c.h.b16 %v26
  %v458 = vunpack.c.l.b16 %v27
  %v459 = vunpack.c.h.b16 %v27
  %v460 = vunpack.c.l.b16 %v28
  %v461 = vunpack.c.h.b16 %v28
  %v462 = vunpack.c.l.b16 %v29
  %v463 = vunpack.c.h.b16 %v29
  %v464 = vunpack.c.l.b16 %v30
  %v465 = vunpack.c.h.b16 %v30
  %v466 = vunpack.c.l.b16 %v31
  %v467 = vunpack.c.h.b16 %v31
  %v468 = vunpack.c.l.b16 %v32
  %v469 = vunpack.c.h.b16 %v32
  %v470 = vunpack.c.l.b16 %v33
  %v471 = vpack.c.b16 %v446, %v446
  %v472 = vpack.c.b16 %v447, %v447
  %v473 = vpack.c.b16 %v448, %v448
  %v474 = vpack.c.b16 %v449, %v449
  %v475 = vpack.c.b16 %v450, %v450
  %v476 = vpack.c.b16 %v451, %v451
  %v477 = vpack.c.b16 %v452, %v452
  %v478 = vpack.c.b16 %v453, %v453
  %v479 = vpack.c.b16 %v454, %v454
  %v480 = vpack.c.b16 %v455, %v455
  %v481 = vpack.c.b16 %v456, %v456
  %v482 = vpack.c.b16 %v457, %v457
  %v483 = vpack.c.b16 %v458, %v458
  %v484 = vpack.c.b16 %v459, %v459
  %v485 = vpack.c.b16 %v460, %v460
  %v486 = vpack.c.b16 %v461, %v461
  %v487 = vpack.c.b16 %v462, %v462
  %v488 = vpack.c.b16 %v463, %v463
  %v489 = vpack.c.b16 %v464, %v464
  %v490 = vpack.c.b16 %v465, %v465
  %v491 = vpack.c.b16 %v466, %v466
  %v492 = vpack.c.b16 %v467, %v467
  %v493 = vpack.c.b16 %v468, %v468
  %v494 = vpack.c.b16 %v469, %v469
  %v495 = vpack.c.b16 %v470, %v470
  %v912 = vunpack.c.l.b16 %v34
  %v913 = vunpack.c.l.b16 %v35
  %v914 = vunpack.c.l.b16 %v36
  %v915 = vunpack.c.l.b16 %v37
  %v916 = vunpack.c.l.b16 %v38
  %v917 = vunpack.c.l.b16 %v39
  %v918 = vunpack.c.l.b16 %v40
  %v919 = vunpack.c.l.b16 %v41
  %v920 = vunpack.c.l.b16 %v42
  %v921 = vunpack.c.l.b16 %v43
  %v922 = vunpack.c.l.b16 %v44
  %v923 = vunpack.c.l.b16 %v45
  %v924 = vunpack.c.l.b16 %v46
  %v925 = vunpack.c.l.b16 %v47
  %v926 = vunpack.c.l.b16 %v48
  %v927 = vunpack.c.l.b16 %v49
  %v928 = vunpack.c.l.b16 %v50
  %v929 = vunpack.c.l.b16 %v51
  %v930 = vunpack.c.l.b16 %v52
  %v931 = vunpack.c.l.b16 %v53
  %v932 = vunpack.c.l.b16 %v54
  %v933 = vunpack.c.l.b16 %v55
  %v934 = vunpack.c.l.b16 %v56
  %v935 = vunpack.c.l.b16 %v57
  %v936 = vunpack.c.l.b16 %v58
  %v937 = vunpack.c.l.b16 %v59
  %v938 = vunpack.c.l.b16 %v60
  %v939 = vunpack.c.l.b16 %v61
  %v940 = vunpack.c.l.b16 %v62
  %v941 = vunpack.c.l.b16 %v63
  %v942 = vunpack.c.l.b16 %v64
  %v943 = vunpack.c.l.b16 %v65
  %v944 = vunpack.c.l.b16 %v66
  %v945 = vunpack.c.l.b16 %v67
  %v946 = vunpack.c.l.b16 %v68
  %v947 = vunpack.c.l.b16 %v69
  %v948 = vunpack.c.l.b16 %v70
  %v949 = vunpack.c.l.b16 %v71
  %v950 = vunpack.c.l.b16 %v72
  %v951 = vunpack.c.l.b16 %v73
  %v952 = vunpack.c.l.b16 %v74
  %v953 = vunpack.c.l.b16 %v75
  %v954 = vunpack.c.l.b16 %v76
  %v955 = vunpack.c.l.b16 %v77
  %v956 = vunpack.c.l.b16 %v78
  %v957 = vunpack.c.l.b16 %v79
  %v958 = vunpack.c.l.b16 %v80
  %v959 = vunpack.c.l.b16 %v81
  %v960 = vunpack.c.l.b16 %v82
  %v961 = vunpack.c.l.b16 %v83
  %v962 = vunpack.c.l.b16 %v84
  %v963 = vunpack.c.l.b16 %v85
  %v964 = vunpack.c.l.b16 %v86
  %v965 = vunpack.c.l.b16 %v87
  %v966 = vunpack.c.l.b16 %v88
  %v967 = vunpack.c.l.b16 %v89
  %v968 = vunpack.c.l.b16 %v90
  %v969 = vunpack.c.l.b16 %v91
  %v970 = vunpack.c.l.b16 %v92
  %v971 = vunpack.c.l.b16 %v93
  %v972 = vunpack.c.l.b16 %v94
  %v973 = vunpack.c.l.b16 %v95
  %v974 = vunpack.c.l.b16 %v96
  %v975 = vunpack.c.l.b16 %v97
  %v976 = vunpack.c.l.b16 %v98
  %v977 = vunpack.c.l.b16 %v99
  %v978 = vunpack.c.l.b16 %v100
  %v979 = vunpack.c.l.b16 %v101
  %v980 = vunpack.c.l.b16 %v102
  %v981 = vunpack.c.l.b16 %v103
  %v982 = vunpack.c.l.b16 %v104
  %v983 = vunpack.c.l.b16 %v105
  %v984 = vunpack.c.l.b16 %v106
  %v985 = vunpack.c.l.b16 %v107
  %v986 = vunpack.c.l.b16 %v108
  %v987 = vunpack.c.l.b16 %v109
  %v988 = vunpack.c.l.b16 %v110
  %v989 = vunpack.c.l.b16 %v111
  %v990 = vunpack.c.l.b16 %v112
  %v991 = vunpack.c.l.b16 %v113
  %v992 = vunpack.c.l.b16 %v114
  %v993 = vunpack.c.l.b16 %v115
  %v994 = vunpack.c.l.b16 %v116
  %v995 = vunpack.c.l.b16 %v117
  %v996 = vunpack.c.l.b16 %v118
  %v997 = vunpack.c.l.b16 %v119
  %v998 = vunpack.c.l.b16 %v120
  %v999 = vunpack.c.l.b16 %v121
  %v1000 = vunpack.c.l.b16 %v122
  %v1001 = vunpack.c.l.b16 %v123
  %v1002 = vunpack.c.l.b16 %v124
  %v1003 = vunpack.c.l.b16 %v125
  %v1004 = vunpack.c.l.b16 %v126
  %v1005 = vunpack.c.l.b16 %v127
  %v1006 = vunpack.c.l.b16 %v128
  %v1007 = vunpack.c.l.b16 %v129
  %v1008 = vunpack.c.l.b16 %v130
  %v1009 = vunpack.c.l.b16 %v131
  %v1010 = vunpack.c.l.b16 %v132
  %v1011 = vunpack.c.l.b16 %v133
  %v1012 = vunpack.c.l.b16 %v134
  %v1013 = vunpack.c.l.b16 %v135
  %v1014 = vunpack.c.l.b16 %v136
  %v1015 = vunpack.c.l.b16 %v137
  %v1016 = vunpack.c.l.b16 %v138
  %v1017 = vunpack.c.l.b16 %v139
  %v1018 = vunpack.c.l.b16 %v140
  %v1019 = vunpack.c.l.b16 %v141
  %v1020 = vunpack.c.l.b16 %v142
  %v1021 = vunpack.c.l.b16 %v143
  %v1022 = vunpack.c.l.b16 %v144
  %v1023 = vunpack.c.l.b16 %v145
  %v1024 = vunpack.c.l.b16 %v146
  %v1025 = vunpack.c.l.b16 %v147
  %v1026 = vunpack.c.l.b16 %v148
  %v1027 = vunpack.c.l.b16 %v149
  %v1028 = vunpack.c.l.b16 %v150
  %v1029 = vunpack.c.l.b16 %v151
  %v1030 = vunpack.c.l.b16 %v152
  %v1031 = vunpack.c.l.b16 %v153
  %v1032 = vunpack.c.l.b16 %v154
  %v1033 = vunpack.c.l.b16 %v155
  %v1034 = vunpack.c.l.b16 %v156
  %v1035 = vunpack.c.l.b16 %v157
  %v1036 = vunpack.c.l.b16 %v158
  %v1037 = vunpack.c.l.b16 %v159
  %v1038 = vunpack.c.l.b16 %v160
  %v1039 = vunpack.c.l.b16 %v161
  %v1040 = vunpack.c.l.b16 %v162
  %v1041 = vunpack.c.l.b16 %v163
  %v1042 = vunpack.c.l.b16 %v164
  %v1043 = vunpack.c.l.b16 %v165
  %v1044 = vunpack.c.l.b16 %v166
  %v1045 = vunpack.c.l.b16 %v167
  %v1046 = vunpack.c.l.b16 %v168
  %v1047 = vunpack.c.l.b16 %v169
  %v1048 = vunpack.c.l.b16 %v170
  %v1049 = vunpack.c.l.b16 %v171
  %v1050 = vunpack.c.l.b16 %v172
  %v1051 = vunpack.c.l.b16 %v173
  %v1052 = vunpack.c.l.b16 %v174
  %v1053 = vunpack.c.l.b16 %v175
  %v1054 = vunpack.c.l.b16 %v176
  %v1055 = vunpack.c.l.b16 %v177
  %v1056 = vunpack.c.l.b16 %v178
  %v1057 = vunpack.c.l.b16 %v179
  %v1058 = vunpack.c.l.b16 %v180
  %v1059 = vunpack.c.l.b16 %v181
  %v1060 = vunpack.c.l.b16 %v182
  %v1061 = vunpack.c.l.b16 %v183
  %v1062 = vunpack.c.l.b16 %v184
  %v1063 = vunpack.c.l.b16 %v185
  %v1064 = vunpack.c.l.b16 %v186
  %v1065 = vunpack.c.l.b16 %v187
  %v1066 = vunpack.c.l.b16 %v188
  %v1067 = vunpack.c.l.b16 %v189
  %v1068 = vunpack.c.l.b16 %v190
  %v1069 = vunpack.c.l.b16 %v191
  %v1070 = vunpack.c.l.b16 %v192
  %v1071 = vunpack.c.l.b16 %v193
  %v1072 = vunpack.c.l.b16 %v194
  %v1073 = vunpack.c.l.b16 %v195
  %v1074 = vunpack.c.l.b16 %v196
  %v1075 = vunpack.c.l.b16 %v197
  %v1076 = vunpack.c.l.b16 %v198
  %v1077 = vunpack.c.l.b16 %v199
  %v1078 = vunpack.c.l.b16 %v200
  %v1079 = vunpack.c.l.b16 %v201
  %v1080 = vunpack.c.l.b16 %v202
  %v1081 = vunpack.c.l.b16 %v203
  %v1082 = vunpack.c.l.b16 %v204
  %v1083 = vunpack.c.l.b16 %v205
  %v1084 = vunpack.c.l.b16 %v206
  %v1085 = vunpack.c.l.b16 %v207
  %v1086 = vunpack.c.l.b16 %v208
  %v1087 = vunpack.c.l.b16 %v209
  %v1088 = vunpack.c.l.b16 %v210
  %v1089 = vunpack.c.l.b16 %v211
  %v1090 = vunpack.c.l.b16 %v212
  %v1091 = vunpack.c.l.b16 %v213
  %v1092 = vunpack.c.l.b16 %v214
  %v1093 = vunpack.c.l.b16 %v215
  %v1094 = vunpack.c.l.b16 %v216
  %v1095 = vunpack.c.l.b16 %v217
  %v1096 = vunpack.c.l.b16 %v218
  %v1097 = vunpack.c.l.b16 %v219
  %v1098 = vunpack.c.l.b16 %v220
  %v1099 = vunpack.c.l.b16 %v221
  %v1100 = vunpack.c.l.b16 %v222
  %v1101 = vunpack.c.l.b16 %v223
  %v1102 = vunpack.c.l.b16 %v224
  %v1103 = vunpack.c.l.b16 %v225
  %v1104 = vunpack.c.l.b16 %v226
  %v1105 = vunpack.c.l.b16 %v227
  %v1106 = vunpack.c.l.b16 %v228
  %v1107 = vunpack.c.l.b16 %v229
  %v1108 = vunpack.c.l.b16 %v230
  %v1109 = vunpack.c.l.b16 %v231
  %v1110 = vunpack.c.l.b16 %v232
  %v1111 = vunpack.c.l.b16 %v233
  %v1112 = vunpack.c.l.b16 %v234
  %v1113 = vunpack.c.l.b16 %v235
  %v1114 = vunpack.c.l.b16 %v236
  %v1115 = vunpack.c.l.b16 %v237
  %v1116 = vunpack.c.l.b16 %v238
  %v1117 = vunpack.c.l.b16 %v239
  %v1118 = vunpack.c.l.b16 %v240
  %v1119 = vunpack.c.l.b16 %v241
  %v1120 = vunpack.c.l.b16 %v242
  %v1121 = vunpack.c.l.b16 %v243
  %v1122 = vunpack.c.l.b16 %v244
  %v1123 = vunpack.c.l.b16 %v245
  %v1124 = vunpack.c.l.b16 %v246
  %v1125 = vunpack.c.l.b16 %v247
  %v1126 = vunpack.c.l.b16 %v248
  %v1127 = vunpack.c.l.b16 %v249
  %v1128 = vunpack.c.l.b16 %v250
  %v1129 = vunpack.c.l.b16 %v251
  %v1130 = vunpack.c.l.b16 %v252
  %v1131 = vunpack.c.l.b16 %v253
  %v1132 = vunpack.c.l.b16 %v254
  %v1133 = vunpack.c.l.b16 %v255
  %v1134 = vunpack.c.l.b16 %v256
  %v1135 = vunpack.c.l.b16 %v257
  %v1136 = vunpack.c.l.b16 %v258
  %v1137 = vunpack.c.l.b16 %v259
  %v1138 = vunpack.c.l.b16 %v260
  %v1139 = vunpack.c.l.b16 %v261
  %v1140 = vunpack.c.l.b16 %v262
  %v1141 = vunpack.c.l.b16 %v263
  %v1142 = vunpack.c.l.b16 %v264
  %v1143 = vunpack.c.l.b16 %v265
  %v1144 = vunpack.c.l.b16 %v266
  %v1145 = vunpack.c.l.b16 %v267
  %v1146 = vunpack.c.l.b16 %v268
  %v1147 = vunpack.c.l.b16 %v269
  %v1148 = vunpack.c.l.b16 %v270
  %v1149 = vunpack.c.l.b16 %v271
  %v1150 = vunpack.c.l.b16 %v272
  %v1151 = vunpack.c.l.b16 %v273
  %v1152 = vunpack.c.l.b16 %v274
  %v1153 = vunpack.c.l.b16 %v275
  %v1154 = vunpack.c.l.b16 %v276
  %v1155 = vunpack.c.l.b16 %v277
  %v1156 = vunpack.c.l.b16 %v278
  %v1157 = vunpack.c.l.b16 %v279
  %v1158 = vunpack.c.l.b16 %v280
  %v1159 = vunpack.c.l.b16 %v281
  %v1160 = vunpack.c.l.b16 %v282
  %v1161 = vunpack.c.l.b16 %v283
  %v1162 = vunpack.c.l.b16 %v284
  %v1163 = vunpack.c.l.b16 %v285
  %v1164 = vunpack.c.l.b16 %v286
  %v1165 = vunpack.c.l.b16 %v287
  %v1166 = vunpack.c.l.b16 %v288
  %v1167 = vunpack.c.l.b16 %v289
  %v1168 = vunpack.c.l.b16 %v290
  %v1169 = vunpack.c.l.b16 %v291
  %v1170 = vunpack.c.l.b16 %v292
  %v1171 = vunpack.c.l.b16 %v293
  %v1172 = vunpack.c.l.b16 %v294
  %v1173 = vunpack.c.l.b16 %v295
  %v1174 = vunpack.c.l.b16 %v296
  %v1175 = vunpack.c.l.b16 %v297
  %v1176 = vunpack.c.l.b16 %v298
  %v1177 = vunpack.c.l.b16 %v299
  %v1178 = vunpack.c.l.b16 %v300
  %v1179 = vunpack.c.l.b16 %v301
  %v1180 = vunpack.c.l.b16 %v302
  %v1181 = vunpack.c.l.b16 %v303
  %v1182 = vunpack.c.l.b16 %v304
  %v1183 = vunpack.c.l.b16 %v305
  %v1184 = vunpack.c.l.b16 %v306
  %v1185 = vunpack.c.l.b16 %v307
  %v1186 = vunpack.c.l.b16 %v308
  %v1187 = vunpack.c.l.b16 %v309
  %v1188 = vunpack.c.l.b16 %v310
  %v1189 = vunpack.c.l.b16 %v311
  %v1190 = vunpack.c.l.b16 %v312
  %v1191 = vunpack.c.l.b16 %v313
  %v1192 = vunpack.c.l.b16 %v314
  %v1193 = vunpack.c.l.b16 %v315
  %v1194 = vunpack.c.l.b16 %v316
  %v1195 = vunpack.c.l.b16 %v317
  %v1196 = vunpack.c.l.b16 %v318
  %v1197 = vunpack.c.l.b16 %v319
  %v1198 = vunpack.c.l.b16 %v320
  %v1199 = vunpack.c.l.b16 %v321
  %v1200 = vunpack.c.l.b16 %v322
  %v1201 = vunpack.c.l.b16 %v323
  %v1202 = vunpack.c.l.b16 %v324
  %v1203 = vunpack.c.l.b16 %v325
  %v1204 = vunpack.c.l.b16 %v326
  %v1205 = vunpack.c.l.b16 %v327
  %v1206 = vunpack.c.l.b16 %v328
  %v1207 = vunpack.c.l.b16 %v329
  %v1208 = vunpack.c.l.b16 %v330
  %v1209 = vunpack.c.l.b16 %v331
  %v1210 = vunpack.c.l.b16 %v332
  %v1211 = vunpack.c.l.b16 %v333
  %v1212 = vunpack.c.l.b16 %v334
  %v1213 = vunpack.c.l.b16 %v335
  %v1214 = vunpack.c.l.b16 %v336
  %v1215 = vunpack.c.l.b16 %v337
  %v1216 = vunpack.c.l.b16 %v338
  %v1217 = vunpack.c.l.b16 %v339
  %v1218 = vunpack.c.l.b16 %v340
  %v1219 = vunpack.c.l.b16 %v341
  %v1220 = vunpack.c.l.b16 %v342
  %v1221 = vunpack.c.l.b16 %v343
  %v1222 = vunpack.c.l.b16 %v344
  %v1223 = vunpack.c.l.b16 %v345
  %v1224 = vunpack.c.l.b16 %v346
  %v1225 = vunpack.c.l.b16 %v347
  %v1226 = vunpack.c.l.b16 %v348
  %v1227 = vunpack.c.l.b16 %v349
  %v1228 = vunpack.c.l.b16 %v350
  %v1229 = vunpack.c.l.b16 %v351
  %v1230 = vunpack.c.l.b16 %v352
  %v1231 = vunpack.c.l.b16 %v353
  %v1232 = vunpack.c.l.b16 %v354
  %v1233 = vunpack.c.l.b16 %v355
  %v1234 = vunpack.c.l.b16 %v356
  %v1235 = vunpack.c.l.b16 %v357
  %v1236 = vunpack.c.l.b16 %v358
  %v1237 = vunpack.c.l.b16 %v359
  %v1238 = vunpack.c.l.b16 %v360
  %v1239 = vunpack.c.l.b16 %v361
  %v1240 = vunpack.c.l.b16 %v362
  %v1241 = vunpack.c.l.b16 %v363
  %v1242 = vunpack.c.l.b16 %v364
  %v1243 = vunpack.c.l.b16 %v365
  %v1244 = vunpack.c.l.b16 %v366
  %v1245 = vunpack.c.l.b16 %v367
  %v1246 = vunpack.c.l.b16 %v368
  %v1247 = vunpack.c.l.b16 %v369
  %v1248 = vunpack.c.l.b16 %v370
  %v1249 = vunpack.c.l.b16 %v371
  %v1250 = vunpack.c.l.b16 %v372
  %v1251 = vunpack.c.l.b16 %v373
  %v1252 = vunpack.c.l.b16 %v374
  %v1253 = vunpack.c.l.b16 %v375
  %v1254 = vunpack.c.l.b16 %v376
  %v1255 = vunpack.c.l.b16 %v377
  %v1256 = vunpack.c.l.b16 %v378
  %v1257 = vunpack.c.l.b16 %v379
  %v1258 = vunpack.c.l.b16 %v380
  %v1259 = vunpack.c.l.b16 %v381
  %v1260 = vunpack.c.l.b16 %v382
  %v1261 = vunpack.c.l.b16 %v383
  %v1262 = vunpack.c.l.b16 %v384
  %v1263 = vunpack.c.l.b16 %v385
  %v1264 = vunpack.c.l.b16 %v386
  %v1265 = vunpack.c.l.b16 %v387
  %v1266 = vunpack.c.l.b16 %v388
  %v1267 = vunpack.c.l.b16 %v389
  %v1268 = vunpack.c.l.b16 %v390
  %v1269 = vunpack.c.l.b16 %v391
  %v1270 = vunpack.c.l.b16 %v392
  %v1271 = vunpack.c.l.b16 %v393
  %v1272 = vunpack.c.l.b16 %v394
  %v1273 = vunpack.c.l.b16 %v395
  %v1274 = vunpack.c.l.b16 %v396
  %v1275 = vunpack.c.l.b16 %v397
  %v1276 = vunpack.c.l.b16 %v398
  %v1277 = vunpack.c.l.b16 %v399
  %v1278 = vunpack.c.l.b16 %v400
  %v1279 = vunpack.c.l.b16 %v401
  %v1280 = vunpack.c.l.b16 %v402
  %v1281 = vunpack.c.l.b16 %v403
  %v1282 = vunpack.c.l.b16 %v404
  %v1283 = vunpack.c.l.b16 %v405
  %v1284 = vunpack.c.l.b16 %v406
  %v1285 = vunpack.c.l.b16 %v407
  %v1286 = vunpack.c.l.b16 %v408
  %v1287 = vunpack.c.l.b16 %v409
  %v1288 = vunpack.c.l.b16 %v410
  %v1289 = vunpack.c.l.b16 %v411
  %v1290 = vunpack.c.l.b16 %v412
  %v1291 = vunpack.c.l.b16 %v413
  %v1292 = vunpack.c.l.b16 %v414
  %v1293 = vunpack.c.l.b16 %v415
  %v1294 = vunpack.c.l.b16 %v416
  %v1295 = vunpack.c.l.b16 %v417
  %v1296 = vunpack.c.l.b16 %v418
  %v1297 = vunpack.c.l.b16 %v419
  %v1298 = vunpack.c.l.b16 %v420
  %v1299 = vunpack.c.l.b16 %v421
  %v1300 = vunpack.c.l.b16 %v422
  %v1301 = vunpack.c.l.b16 %v423
  %v1302 = vunpack.c.l.b16 %v424
  %v1303 = vunpack.c.l.b16 %v425
  %v1304 = vpack.c.b16 %v913, %v912
  %v1305 = vpack.c.b16 %v915, %v914
  %v1306 = vpack.c.b16 %v917, %v916
  %v1307 = vpack.c.b16 %v919, %v918
  %v1308 = vpack.c.b16 %v921, %v920
  %v1309 = vpack.c.b16 %v923, %v922
  %v1310 = vpack.c.b16 %v925, %v924
  %v1311 = vpack.c.b16 %v927, %v926
  %v1312 = vpack.c.b16 %v929, %v928
  %v1313 = vpack.c.b16 %v931, %v930
  %v1314 = vpack.c.b16 %v933, %v932
  %v1315 = vpack.c.b16 %v935, %v934
  %v1316 = vpack.c.b16 %v937, %v936
  %v1317 = vpack.c.b16 %v939, %v938
  %v1318 = vpack.c.b16 %v941, %v940
  %v1319 = vpack.c.b16 %v943, %v942
  %v1320 = vpack.c.b16 %v945, %v944
  %v1321 = vpack.c.b16 %v947, %v946
  %v1322 = vpack.c.b16 %v949, %v948
  %v1323 = vpack.c.b16 %v951, %v950
  %v1324 = vpack.c.b16 %v953, %v952
  %v1325 = vpack.c.b16 %v955, %v954
  %v1326 = vpack.c.b16 %v957, %v956
  %v1327 = vpack.c.b16 %v959, %v958
  %v1328 = vpack.c.b16 %v961, %v960
  %v1329 = vpack.c.b16 %v963, %v962
  %v1330 = vpack.c.b16 %v965, %v964
  %v1331 = vpack.c.b16 %v967, %v966
  %v1332 = vpack.c.b16 %v969, %v968
  %v1333 = vpack.c.b16 %v971, %v970
  %v1334 = vpack.c.b16 %v973, %v972
  %v1335 = vpack.c.b16 %v975, %v974
  %v1336 = vpack.c.b16 %v977, %v976
  %v1337 = vpack.c.b16 %v979, %v978
  %v1338 = vpack.c.b16 %v981, %v980
  %v1339 = vpack.c.b16 %v983, %v982
  %v1340 = vpack.c.b16 %v985, %v984
  %v1341 = vpack.c.b16 %v987, %v986
  %v1342 = vpack.c.b16 %v989, %v988
  %v1343 = vpack.c.b16 %v991, %v990
  %v1344 = vpack.c.b16 %v993, %v992
  %v1345 = vpack.c.b16 %v995, %v994
  %v1346 = vpack.c.b16 %v997, %v996
  %v1347 = vpack.c.b16 %v999, %v998
  %v1348 = vpack.c.b16 %v1001, %v1000
  %v1349 = vpack.c.b16 %v1003, %v1002
  %v1350 = vpack.c.b16 %v1005, %v1004
  %v1351 = vpack.c.b16 %v1007, %v1006
  %v1352 = vpack.c.b16 %v1009, %v1008
  %v1353 = vpack.c.b16 %v1011, %v1010
  %v1354 = vpack.c.b16 %v1013, %v1012
  %v1355 = vpack.c.b16 %v1015, %v1014
  %v1356 = vpack.c.b16 %v1017, %v1016
  %v1357 = vpack.c.b16 %v1019, %v1018
  %v1358 = vpack.c.b16 %v1021, %v1020
  %v1359 = vpack.c.b16 %v1023, %v1022
  %v1360 = vpack.c.b16 %v1025, %v1024
  %v1361 = vpack.c.b16 %v1027, %v1026
  %v1362 = vpack.c.b16 %v1029, %v1028
  %v1363 = vpack.c.b16 %v1031, %v1030
  %v1364 = vpack.c.b16 %v1033, %v1032
  %v1365 = vpack.c.b16 %v1035, %v1034
  %v1366 = vpack.c.b16 %v1037, %v1036
  %v1367 = vpack.c.b16 %v1039, %v1038
  %v1368 = vpack.c.b16 %v1041, %v1040
  %v1369 = vpack.c.b16 %v1043, %v1042
  %v1370 = vpack.c.b16 %v1045, %v1044
  %v1371 = vpack.c.b16 %v1047, %v1046
  %v1372 = vpack.c.b16 %v1049, %v1048
  %v1373 = vpack.c.b16 %v1051, %v1050
  %v1374 = vpack.c.b16 %v1053, %v1052
  %v1375 = vpack.c.b16 %v1055, %v1054
  %v1376 = vpack.c.b16 %v1057, %v1056
  %v1377 = vpack.c.b16 %v1059, %v1058
  %v1378 = vpack.c.b16 %v1061, %v1060
  %v1379 = vpack.c.b16 %v1063, %v1062
  %v1380 = vpack.c.b16 %v1065, %v1064
  %v1381 = vpack.c.b16 %v1067, %v1066
  %v1382 = vpack.c.b16 %v1069, %v1068
  %v1383 = vpack.c.b16 %v1071, %v1070
  %v1384 = vpack.c.b16 %v1073, %v1072
  %v1385 = vpack.c.b16 %v1075, %v1074
  %v1386 = vpack.c.b16 %v1077, %v1076
  %v1387 = vpack.c.b16 %v1079, %v1078
  %v1388 = vpack.c.b16 %v1081, %v1080
  %v1389 = vpack.c.b16 %v1083, %v1082
  %v1390 = vpack.c.b16 %v1085, %v1084
  %v1391 = vpack.c.b16 %v1087, %v1086
  %v1392 = vpack.c.b16 %v1089, %v1088
  %v1393 = vpack.c.b16 %v1091, %v1090
  %v1394 = vpack.c.b16 %v1093, %v1092
  %v1395 = vpack.c.b16 %v1095, %v1094
  %v1396 = vpack.c.b16 %v1097, %v1096
  %v1397 = vpack.c.b16 %v1099, %v1098
  %v1398 = vpack.c.b16 %v1101, %v1100
  %v1399 = vpack.c.b16 %v1103, %v1102
  %v1400 = vpack.c.b16 %v1105, %v1104
  %v1401 = vpack.c.b16 %v1107, %v1106
  %v1402 = vpack.c.b16 %v1109, %v1108
  %v1403 = vpack.c.b16 %v1111, %v1110
  %v1404 = vpack.c.b16 %v1113, %v1112
  %v1405 = vpack.c.b16 %v1115, %v1114
  %v1406 = vpack.c.b16 %v1117, %v1116
  %v1407 = vpack.c.b16 %v1119, %v1118
  %v1408 = vpack.c.b16 %v1121, %v1120
  %v1409 = vpack.c.b16 %v1123, %v1122
  %v1410 = vpack.c.b16 %v1125, %v1124
  %v1411 = vpack.c.b16 %v1127, %v1126
  %v1412 = vpack.c.b16 %v1129, %v1128
  %v1413 = vpack.c.b16 %v1131, %v1130
  %v1414 = vpack.c.b16 %v1133, %v1132
  %v1415 = vpack.c.b16 %v1135, %v1134
  %v1416 = vpack.c.b16 %v1137, %v1136
  %v1417 = vpack.c.b16 %v1139, %v1138
  %v1418 = vpack.c.b16 %v1141, %v1140
  %v1419 = vpack.c.b16 %v1143, %v1142
  %v1420 = vpack.c.b16 %v1145, %v1144
  %v1421 = vpack.c.b16 %v1147, %v1146
  %v1422 = vpack.c.b16 %v1149, %v1148
  %v1423 = vpack.c.b16 %v1151, %v1150
  %v1424 = vpack.c.b16 %v1153, %v1152
  %v1425 = vpack.c.b16 %v1155, %v1154
  %v1426 = vpack.c.b16 %v1157, %v1156
  %v1427 = vpack.c.b16 %v1159, %v1158
  %v1428 = vpack.c.b16 %v1161, %v1160
  %v1429 = vpack.c.b16 %v1163, %v1162
  %v1430 = vpack.c.b16 %v1165, %v1164
  %v1431 = vpack.c.b16 %v1167, %v1166
  %v1432 = vpack.c.b16 %v1169, %v1168
  %v1433 = vpack.c.b16 %v1171, %v1170
  %v1434 = vpack.c.b16 %v1173, %v1172
  %v1435 = vpack.c.b16 %v1175, %v1174
  %v1436 = vpack.c.b16 %v1177, %v1176
  %v1437 = vpack.c.b16 %v1179, %v1178
  %v1438 = vpack.c.b16 %v1181, %v1180
  %v1439 = vpack.c.b16 %v1183, %v1182
  %v1440 = vpack.c.b16 %v1185, %v1184
  %v1441 = vpack.c.b16 %v1187, %v1186
  %v1442 = vpack.c.b16 %v1189, %v1188
  %v1443 = vpack.c.b16 %v1191, %v1190
  %v1444 = vpack.c.b16 %v1193, %v1192
  %v1445 = vpack.c.b16 %v1195, %v1194
  %v1446 = vpack.c.b16 %v1197, %v1196
  %v1447 = vpack.c.b16 %v1199, %v1198
  %v1448 = vpack.c.b16 %v1201, %v1200
  %v1449 = vpack.c.b16 %v1203, %v1202
  %v1450 = vpack.c.b16 %v1205, %v1204
  %v1451 = vpack.c.b16 %v1207, %v1206
  %v1452 = vpack.c.b16 %v1209, %v1208
  %v1453 = vpack.c.b16 %v1211, %v1210
  %v1454 = vpack.c.b16 %v1213, %v1212
  %v1455 = vpack.c.b16 %v1215, %v1214
  %v1456 = vpack.c.b16 %v1217, %v1216
  %v1457 = vpack.c.b16 %v1219, %v1218
  %v1458 = vpack.c.b16 %v1221, %v1220
  %v1459 = vpack.c.b16 %v1223, %v1222
  %v1460 = vpack.c.b16 %v1225, %v1224
  %v1461 = vpack.c.b16 %v1227, %v1226
  %v1462 = vpack.c.b16 %v1229, %v1228
  %v1463 = vpack.c.b16 %v1231, %v1230
  %v1464 = vpack.c.b16 %v1233, %v1232
  %v1465 = vpack.c.b16 %v1235, %v1234
  %v1466 = vpack.c.b16 %v1237, %v1236
  %v1467 = vpack.c.b16 %v1239, %v1238
  %v1468 = vpack.c.b16 %v1241, %v1240
  %v1469 = vpack.c.b16 %v1243, %v1242
  %v1470 = vpack.c.b16 %v1245, %v1244
  %v1471 = vpack.c.b16 %v1247, %v1246
  %v1472 = vpack.c.b16 %v1249, %v1248
  %v1473 = vpack.c.b16 %v1251, %v1250
  %v1474 = vpack.c.b16 %v1253, %v1252
  %v1475 = vpack.c.b16 %v1255, %v1254
  %v1476 = vpack.c.b16 %v1257, %v1256
  %v1477 = vpack.c.b16 %v1259, %v1258
  %v1478 = vpack.c.b16 %v1261, %v1260
  %v1479 = vpack.c.b16 %v1263, %v1262
  %v1480 = vpack.c.b16 %v1265, %v1264
  %v1481 = vpack.c.b16 %v1267, %v1266
  %v1482 = vpack.c.b16 %v1269, %v1268
  %v1483 = vpack.c.b16 %v1271, %v1270
  %v1484 = vpack.c.b16 %v1273, %v1272
  %v1485 = vpack.c.b16 %v1275, %v1274
  %v1486 = vpack.c.b16 %v1277, %v1276
  %v1487 = vpack.c.b16 %v1279, %v1278
  %v1488 = vpack.c.b16 %v1281, %v1280
  %v1489 = vpack.c.b16 %v1283, %v1282
  %v1490 = vpack.c.b16 %v1285, %v1284
  %v1491 = vpack.c.b16 %v1287, %v1286
  %v1492 = vpack.c.b16 %v1289, %v1288
  %v1493 = vpack.c.b16 %v1291, %v1290
  %v1494 = vpack.c.b16 %v1293, %v1292
  %v1495 = vpack.c.b16 %v1295, %v1294
  %v1496 = vpack.c.b16 %v1297, %v1296
  %v1497 = vpack.c.b16 %v1299, %v1298
  %v1498 = vpack.c.b16 %v1301, %v1300
  %v1499 = vpack.c.b16 %v1303, %v1302
  %vm1696 = vcmask 523264
  %v1698 = vsel %vm1696, %v495, 0
  %1700 = vmatprep.subr.bf16.mxu0 0
  %1701 = vmatpush1.bf16.msra.mxu0 %v1304
  %1702 = vmatprep.subr.bf16.mxu0 0
  %1703 = vmatpush1.bf16.msra.mxu0 %v1305
  %1704 = vmatprep.subr.bf16.mxu0 0
  %1705 = vmatpush1.bf16.msra.mxu0 %v1306
  %1706 = vmatprep.subr.bf16.mxu0 0
  %1707 = vmatpush1.bf16.msra.mxu0 %v1307
  %1708 = vmatprep.subr.bf16.mxu0 0
  %1709 = vmatpush1.bf16.msra.mxu0 %v1308
  %1710 = vmatprep.subr.bf16.mxu0 0
  %1711 = vmatpush1.bf16.msra.mxu0 %v1309
  %1712 = vmatprep.subr.bf16.mxu0 0
  %1713 = vmatpush1.bf16.msra.mxu0 %v1310
  %1714 = vmatprep.subr.bf16.mxu0 0
  %1715 = vmatpush1.bf16.msra.mxu0 %v1311
  %1716 = vmatprep.subr.bf16.mxu0 0
  %1717 = vmatpush1.bf16.msra.mxu0 %v1312
  %1718 = vmatprep.subr.bf16.mxu0 0
  %1719 = vmatpush1.bf16.msra.mxu0 %v1313
  %1720 = vmatprep.subr.bf16.mxu0 0
  %1721 = vmatpush1.bf16.msra.mxu0 %v1314
  %1722 = vmatprep.subr.bf16.mxu0 0
  %1723 = vmatpush1.bf16.msra.mxu0 %v1315
  %1724 = vmatprep.subr.bf16.mxu0 0
  %1725 = vmatpush1.bf16.msra.mxu0 %v1316
  %1726 = vmatprep.subr.bf16.mxu0 0
  %1727 = vmatpush1.bf16.msra.mxu0 %v1317
  %1728 = vmatprep.subr.bf16.mxu0 0
  %1729 = vmatpush1.bf16.msra.mxu0 %v1318
  %1730 = vmatprep.subr.bf16.mxu0 0
  %1731 = vmatpush1.bf16.msra.mxu0 %v1319
  %1732 = vmatprep.mubr.bf16.mxu0 %v472
  %1733 = vmatmul.mubr.bf16.gmra.mrb[0].mxu0 %v471
  %v1734 = vpop.f32.mrb[0].mxu0
  %v1735 = vadd.f32 %v431, %v1734
  %v1736 = vpop.f32.mrb[0].mxu0
  %v1737 = vpop.f32.mrb[0].mxu0
  %v1738 = vpop.f32.mrb[0].mxu0
  %1739 = vdwg.mxu0
  %1740 = vmatprep.subr.bf16.mxu0 0
  %1741 = vmatpush1.bf16.msra.mxu0 %v1320
  %1742 = vmatprep.subr.bf16.mxu0 0
  %1743 = vmatpush1.bf16.msra.mxu0 %v1321
  %1744 = vmatprep.subr.bf16.mxu0 0
  %1745 = vmatpush1.bf16.msra.mxu0 %v1322
  %1746 = vmatprep.subr.bf16.mxu0 0
  %1747 = vmatpush1.bf16.msra.mxu0 %v1323
  %1748 = vmatprep.subr.bf16.mxu0 0
  %1749 = vmatpush1.bf16.msra.mxu0 %v1324
  %1750 = vmatprep.subr.bf16.mxu0 0
  %1751 = vmatpush1.bf16.msra.mxu0 %v1325
  %1752 = vmatprep.subr.bf16.mxu0 0
  %1753 = vmatpush1.bf16.msra.mxu0 %v1326
  %1754 = vmatprep.subr.bf16.mxu0 0
  %1755 = vmatpush1.bf16.msra.mxu0 %v1327
  %1756 = vmatprep.subr.bf16.mxu0 0
  %1757 = vmatpush1.bf16.msra.mxu0 %v1328
  %1758 = vmatprep.subr.bf16.mxu0 0
  %1759 = vmatpush1.bf16.msra.mxu0 %v1329
  %1760 = vmatprep.subr.bf16.mxu0 0
  %1761 = vmatpush1.bf16.msra.mxu0 %v1330
  %1762 = vmatprep.subr.bf16.mxu0 0
  %1763 = vmatpush1.bf16.msra.mxu0 %v1331
  %1764 = vmatprep.subr.bf16.mxu0 0
  %1765 = vmatpush1.bf16.msra.mxu0 %v1332
  %1766 = vmatprep.subr.bf16.mxu0 0
  %1767 = vmatpush1.bf16.msra.mxu0 %v1333
  %1768 = vmatprep.subr.bf16.mxu0 0
  %1769 = vmatpush1.bf16.msra.mxu0 %v1334
  %1770 = vmatprep.subr.bf16.mxu0 0
  %1771 = vmatpush1.bf16.msra.mxu0 %v1335
  %1772 = vmatprep.mubr.bf16.mxu0 %v474
  %1773 = vmatmul.mubr.bf16.gmra.mrb[0].mxu0 %v473
  %v1774 = vpop.f32.mrb[0].mxu0
  %v1775 = vadd.f32 %v1735, %v1774
  %v1776 = vpop.f32.mrb[0].mxu0
  %v1777 = vpop.f32.mrb[0].mxu0
  %v1778 = vpop.f32.mrb[0].mxu0
  %1779 = vdwg.mxu0
  %1780 = vmatprep.subr.bf16.mxu0 0
  %1781 = vmatpush1.bf16.msra.mxu0 %v1336
  %1782 = vmatprep.subr.bf16.mxu0 0
  %1783 = vmatpush1.bf16.msra.mxu0 %v1337
  %1784 = vmatprep.subr.bf16.mxu0 0
  %1785 = vmatpush1.bf16.msra.mxu0 %v1338
  %1786 = vmatprep.subr.bf16.mxu0 0
  %1787 = vmatpush1.bf16.msra.mxu0 %v1339
  %1788 = vmatprep.subr.bf16.mxu0 0
  %1789 = vmatpush1.bf16.msra.mxu0 %v1340
  %1790 = vmatprep.subr.bf16.mxu0 0
  %1791 = vmatpush1.bf16.msra.mxu0 %v1341
  %1792 = vmatprep.subr.bf16.mxu0 0
  %1793 = vmatpush1.bf16.msra.mxu0 %v1342
  %1794 = vmatprep.subr.bf16.mxu0 0
  %1795 = vmatpush1.bf16.msra.mxu0 %v1343
  %1796 = vmatprep.subr.bf16.mxu0 0
  %1797 = vmatpush1.bf16.msra.mxu0 %v1344
  %1798 = vmatprep.subr.bf16.mxu0 0
  %1799 = vmatpush1.bf16.msra.mxu0 %v1345
  %1800 = vmatprep.subr.bf16.mxu0 0
  %1801 = vmatpush1.bf16.msra.mxu0 %v1346
  %1802 = vmatprep.subr.bf16.mxu0 0
  %1803 = vmatpush1.bf16.msra.mxu0 %v1347
  %1804 = vmatprep.subr.bf16.mxu0 0
  %1805 = vmatpush1.bf16.msra.mxu0 %v1348
  %1806 = vmatprep.subr.bf16.mxu0 0
  %1807 = vmatpush1.bf16.msra.mxu0 %v1349
  %1808 = vmatprep.subr.bf16.mxu0 0
  %1809 = vmatpush1.bf16.msra.mxu0 %v1350
  %1810 = vmatprep.subr.bf16.mxu0 0
  %1811 = vmatpush1.bf16.msra.mxu0 %v1351
  %1812 = vmatprep.mubr.bf16.mxu0 %v476
  %1813 = vmatmul.mubr.bf16.gmra.mrb[0].mxu0 %v475
  %v1814 = vpop.f32.mrb[0].mxu0
  %v1815 = vadd.f32 %v1775, %v1814
  %v1816 = vpop.f32.mrb[0].mxu0
  %v1817 = vpop.f32.mrb[0].mxu0
  %v1818 = vpop.f32.mrb[0].mxu0
  %1819 = vdwg.mxu0
  %1820 = vmatprep.subr.bf16.mxu0 0
  %1821 = vmatpush1.bf16.msra.mxu0 %v1352
  %1822 = vmatprep.subr.bf16.mxu0 0
  %1823 = vmatpush1.bf16.msra.mxu0 %v1353
  %1824 = vmatprep.subr.bf16.mxu0 0
  %1825 = vmatpush1.bf16.msra.mxu0 %v1354
  %1826 = vmatprep.subr.bf16.mxu0 0
  %1827 = vmatpush1.bf16.msra.mxu0 %v1355
  %1828 = vmatprep.subr.bf16.mxu0 0
  %1829 = vmatpush1.bf16.msra.mxu0 %v1356
  %1830 = vmatprep.subr.bf16.mxu0 0
  %1831 = vmatpush1.bf16.msra.mxu0 %v1357
  %1832 = vmatprep.subr.bf16.mxu0 0
  %1833 = vmatpush1.bf16.msra.mxu0 %v1358
  %1834 = vmatprep.subr.bf16.mxu0 0
  %1835 = vmatpush1.bf16.msra.mxu0 %v1359
  %1836 = vmatprep.subr.bf16.mxu0 0
  %1837 = vmatpush1.bf16.msra.mxu0 %v1360
  %1838 = vmatprep.subr.bf16.mxu0 0
  %1839 = vmatpush1.bf16.msra.mxu0 %v1361
  %1840 = vmatprep.subr.bf16.mxu0 0
  %1841 = vmatpush1.bf16.msra.mxu0 %v1362
  %1842 = vmatprep.subr.bf16.mxu0 0
  %1843 = vmatpush1.bf16.msra.mxu0 %v1363
  %1844 = vmatprep.subr.bf16.mxu0 0
  %1845 = vmatpush1.bf16.msra.mxu0 %v1364
  %1846 = vmatprep.subr.bf16.mxu0 0
  %1847 = vmatpush1.bf16.msra.mxu0 %v1365
  %1848 = vmatprep.subr.bf16.mxu0 0
  %1849 = vmatpush1.bf16.msra.mxu0 %v1366
  %1850 = vmatprep.subr.bf16.mxu0 0
  %1851 = vmatpush1.bf16.msra.mxu0 %v1367
  %1852 = vmatprep.mubr.bf16.mxu0 %v478
  %1853 = vmatmul.mubr.bf16.gmra.mrb[0].mxu0 %v477
  %v1854 = vpop.f32.mrb[0].mxu0
  %v1855 = vadd.f32 %v1815, %v1854
  %v1856 = vpop.f32.mrb[0].mxu0
  %v1857 = vpop.f32.mrb[0].mxu0
  %v1858 = vpop.f32.mrb[0].mxu0
  %1859 = vdwg.mxu0
  %1860 = vmatprep.subr.bf16.mxu0 0
  %1861 = vmatpush1.bf16.msra.mxu0 %v1368
  %1862 = vmatprep.subr.bf16.mxu0 0
  %1863 = vmatpush1.bf16.msra.mxu0 %v1369
  %1864 = vmatprep.subr.bf16.mxu0 0
  %1865 = vmatpush1.bf16.msra.mxu0 %v1370
  %1866 = vmatprep.subr.bf16.mxu0 0
  %1867 = vmatpush1.bf16.msra.mxu0 %v1371
  %1868 = vmatprep.subr.bf16.mxu0 0
  %1869 = vmatpush1.bf16.msra.mxu0 %v1372
  %1870 = vmatprep.subr.bf16.mxu0 0
  %1871 = vmatpush1.bf16.msra.mxu0 %v1373
  %1872 = vmatprep.subr.bf16.mxu0 0
  %1873 = vmatpush1.bf16.msra.mxu0 %v1374
  %1874 = vmatprep.subr.bf16.mxu0 0
  %1875 = vmatpush1.bf16.msra.mxu0 %v1375
  %1876 = vmatprep.subr.bf16.mxu0 0
  %1877 = vmatpush1.bf16.msra.mxu0 %v1376
  %1878 = vmatprep.subr.bf16.mxu0 0
  %1879 = vmatpush1.bf16.msra.mxu0 %v1377
  %1880 = vmatprep.subr.bf16.mxu0 0
  %1881 = vmatpush1.bf16.msra.mxu0 %v1378
  %1882 = vmatprep.subr.bf16.mxu0 0
  %1883 = vmatpush1.bf16.msra.mxu0 %v1379
  %1884 = vmatprep.subr.bf16.mxu0 0
  %1885 = vmatpush1.bf16.msra.mxu0 %v1380
  %1886 = vmatprep.subr.bf16.mxu0 0
  %1887 = vmatpush1.bf16.msra.mxu0 %v1381
  %1888 = vmatprep.subr.bf16.mxu0 0
  %1889 = vmatpush1.bf16.msra.mxu0 %v1382
  %1890 = vmatprep.subr.bf16.mxu0 0
  %1891 = vmatpush1.bf16.msra.mxu0 %v1383
  %1892 = vmatprep.mubr.bf16.mxu0 %v480
  %1893 = vmatmul.mubr.bf16.gmra.mrb[0].mxu0 %v479
  %v1894 = vpop.f32.mrb[0].mxu0
  %v1895 = vadd.f32 %v1855, %v1894
  %v1896 = vpop.f32.mrb[0].mxu0
  %v1897 = vpop.f32.mrb[0].mxu0
  %v1898 = vpop.f32.mrb[0].mxu0
  %1899 = vdwg.mxu0
  %1900 = vmatprep.subr.bf16.mxu0 0
  %1901 = vmatpush1.bf16.msra.mxu0 %v1384
  %1902 = vmatprep.subr.bf16.mxu0 0
  %1903 = vmatpush1.bf16.msra.mxu0 %v1385
  %1904 = vmatprep.subr.bf16.mxu0 0
  %1905 = vmatpush1.bf16.msra.mxu0 %v1386
  %1906 = vmatprep.subr.bf16.mxu0 0
  %1907 = vmatpush1.bf16.msra.mxu0 %v1387
  %1908 = vmatprep.subr.bf16.mxu0 0
  %1909 = vmatpush1.bf16.msra.mxu0 %v1388
  %1910 = vmatprep.subr.bf16.mxu0 0
  %1911 = vmatpush1.bf16.msra.mxu0 %v1389
  %1912 = vmatprep.subr.bf16.mxu0 0
  %1913 = vmatpush1.bf16.msra.mxu0 %v1390
  %1914 = vmatprep.subr.bf16.mxu0 0
  %1915 = vmatpush1.bf16.msra.mxu0 %v1391
  %1916 = vmatprep.subr.bf16.mxu0 0
  %1917 = vmatpush1.bf16.msra.mxu0 %v1392
  %1918 = vmatprep.subr.bf16.mxu0 0
  %1919 = vmatpush1.bf16.msra.mxu0 %v1393
  %1920 = vmatprep.subr.bf16.mxu0 0
  %1921 = vmatpush1.bf16.msra.mxu0 %v1394
  %1922 = vmatprep.subr.bf16.mxu0 0
  %1923 = vmatpush1.bf16.msra.mxu0 %v1395
  %1924 = vmatprep.subr.bf16.mxu0 0
  %1925 = vmatpush1.bf16.msra.mxu0 %v1396
  %1926 = vmatprep.subr.bf16.mxu0 0
  %1927 = vmatpush1.bf16.msra.mxu0 %v1397
  %1928 = vmatprep.subr.bf16.mxu0 0
  %1929 = vmatpush1.bf16.msra.mxu0 %v1398
  %1930 = vmatprep.subr.bf16.mxu0 0
  %1931 = vmatpush1.bf16.msra.mxu0 %v1399
  %1932 = vmatprep.mubr.bf16.mxu0 %v482
  %1933 = vmatmul.mubr.bf16.gmra.mrb[0].mxu0 %v481
  %v1934 = vpop.f32.mrb[0].mxu0
  %v1935 = vadd.f32 %v1895, %v1934
  %v1936 = vpop.f32.mrb[0].mxu0
  %v1937 = vpop.f32.mrb[0].mxu0
  %v1938 = vpop.f32.mrb[0].mxu0
  %1939 = vdwg.mxu0
  %1940 = vmatprep.subr.bf16.mxu0 0
  %1941 = vmatpush1.bf16.msra.mxu0 %v1400
  %1942 = vmatprep.subr.bf16.mxu0 0
  %1943 = vmatpush1.bf16.msra.mxu0 %v1401
  %1944 = vmatprep.subr.bf16.mxu0 0
  %1945 = vmatpush1.bf16.msra.mxu0 %v1402
  %1946 = vmatprep.subr.bf16.mxu0 0
  %1947 = vmatpush1.bf16.msra.mxu0 %v1403
  %1948 = vmatprep.subr.bf16.mxu0 0
  %1949 = vmatpush1.bf16.msra.mxu0 %v1404
  %1950 = vmatprep.subr.bf16.mxu0 0
  %1951 = vmatpush1.bf16.msra.mxu0 %v1405
  %1952 = vmatprep.subr.bf16.mxu0 0
  %1953 = vmatpush1.bf16.msra.mxu0 %v1406
  %1954 = vmatprep.subr.bf16.mxu0 0
  %1955 = vmatpush1.bf16.msra.mxu0 %v1407
  %1956 = vmatprep.subr.bf16.mxu0 0
  %1957 = vmatpush1.bf16.msra.mxu0 %v1408
  %1958 = vmatprep.subr.bf16.mxu0 0
  %1959 = vmatpush1.bf16.msra.mxu0 %v1409
  %1960 = vmatprep.subr.bf16.mxu0 0
  %1961 = vmatpush1.bf16.msra.mxu0 %v1410
  %1962 = vmatprep.subr.bf16.mxu0 0
  %1963 = vmatpush1.bf16.msra.mxu0 %v1411
  %1964 = vmatprep.subr.bf16.mxu0 0
  %1965 = vmatpush1.bf16.msra.mxu0 %v1412
  %1966 = vmatprep.subr.bf16.mxu0 0
  %1967 = vmatpush1.bf16.msra.mxu0 %v1413
  %1968 = vmatprep.subr.bf16.mxu0 0
  %1969 = vmatpush1.bf16.msra.mxu0 %v1414
  %1970 = vmatprep.subr.bf16.mxu0 0
  %1971 = vmatpush1.bf16.msra.mxu0 %v1415
  %1972 = vmatprep.mubr.bf16.mxu0 %v484
  %1973 = vmatmul.mubr.bf16.gmra.mrb[0].mxu0 %v483
  %v1974 = vpop.f32.mrb[0].mxu0
  %v1975 = vadd.f32 %v1935, %v1974
  %v1976 = vpop.f32.mrb[0].mxu0
  %v1977 = vpop.f32.mrb[0].mxu0
  %v1978 = vpop.f32.mrb[0].mxu0
  %1979 = vdwg.mxu0
  %1980 = vmatprep.subr.bf16.mxu0 0
  %1981 = vmatpush1.bf16.msra.mxu0 %v1416
  %1982 = vmatprep.subr.bf16.mxu0 0
  %1983 = vmatpush1.bf16.msra.mxu0 %v1417
  %1984 = vmatprep.subr.bf16.mxu0 0
  %1985 = vmatpush1.bf16.msra.mxu0 %v1418
  %1986 = vmatprep.subr.bf16.mxu0 0
  %1987 = vmatpush1.bf16.msra.mxu0 %v1419
  %1988 = vmatprep.subr.bf16.mxu0 0
  %1989 = vmatpush1.bf16.msra.mxu0 %v1420
  %1990 = vmatprep.subr.bf16.mxu0 0
  %1991 = vmatpush1.bf16.msra.mxu0 %v1421
  %1992 = vmatprep.subr.bf16.mxu0 0
  %1993 = vmatpush1.bf16.msra.mxu0 %v1422
  %1994 = vmatprep.subr.bf16.mxu0 0
  %1995 = vmatpush1.bf16.msra.mxu0 %v1423
  %1996 = vmatprep.subr.bf16.mxu0 0
  %1997 = vmatpush1.bf16.msra.mxu0 %v1424
  %1998 = vmatprep.subr.bf16.mxu0 0
  %1999 = vmatpush1.bf16.msra.mxu0 %v1425
  %2000 = vmatprep.subr.bf16.mxu0 0
  %2001 = vmatpush1.bf16.msra.mxu0 %v1426
  %2002 = vmatprep.subr.bf16.mxu0 0
  %2003 = vmatpush1.bf16.msra.mxu0 %v1427
  %2004 = vmatprep.subr.bf16.mxu0 0
  %2005 = vmatpush1.bf16.msra.mxu0 %v1428
  %2006 = vmatprep.subr.bf16.mxu0 0
  %2007 = vmatpush1.bf16.msra.mxu0 %v1429
  %2008 = vmatprep.subr.bf16.mxu0 0
  %2009 = vmatpush1.bf16.msra.mxu0 %v1430
  %2010 = vmatprep.subr.bf16.mxu0 0
  %2011 = vmatpush1.bf16.msra.mxu0 %v1431
  %2012 = vmatprep.mubr.bf16.mxu0 %v486
  %2013 = vmatmul.mubr.bf16.gmra.mrb[0].mxu0 %v485
  %v2014 = vpop.f32.mrb[0].mxu0
  %v2015 = vadd.f32 %v1975, %v2014
  %v2016 = vpop.f32.mrb[0].mxu0
  %v2017 = vpop.f32.mrb[0].mxu0
  %v2018 = vpop.f32.mrb[0].mxu0
  %2019 = vdwg.mxu0
  %2020 = vmatprep.subr.bf16.mxu0 0
  %2021 = vmatpush1.bf16.msra.mxu0 %v1432
  %2022 = vmatprep.subr.bf16.mxu0 0
  %2023 = vmatpush1.bf16.msra.mxu0 %v1433
  %2024 = vmatprep.subr.bf16.mxu0 0
  %2025 = vmatpush1.bf16.msra.mxu0 %v1434
  %2026 = vmatprep.subr.bf16.mxu0 0
  %2027 = vmatpush1.bf16.msra.mxu0 %v1435
  %2028 = vmatprep.subr.bf16.mxu0 0
  %2029 = vmatpush1.bf16.msra.mxu0 %v1436
  %2030 = vmatprep.subr.bf16.mxu0 0
  %2031 = vmatpush1.bf16.msra.mxu0 %v1437
  %2032 = vmatprep.subr.bf16.mxu0 0
  %2033 = vmatpush1.bf16.msra.mxu0 %v1438
  %2034 = vmatprep.subr.bf16.mxu0 0
  %2035 = vmatpush1.bf16.msra.mxu0 %v1439
  %2036 = vmatprep.subr.bf16.mxu0 0
  %2037 = vmatpush1.bf16.msra.mxu0 %v1440
  %2038 = vmatprep.subr.bf16.mxu0 0
  %2039 = vmatpush1.bf16.msra.mxu0 %v1441
  %2040 = vmatprep.subr.bf16.mxu0 0
  %2041 = vmatpush1.bf16.msra.mxu0 %v1442
  %2042 = vmatprep.subr.bf16.mxu0 0
  %2043 = vmatpush1.bf16.msra.mxu0 %v1443
  %2044 = vmatprep.subr.bf16.mxu0 0
  %2045 = vmatpush1.bf16.msra.mxu0 %v1444
  %2046 = vmatprep.subr.bf16.mxu0 0
  %2047 = vmatpush1.bf16.msra.mxu0 %v1445
  %2048 = vmatprep.subr.bf16.mxu0 0
  %2049 = vmatpush1.bf16.msra.mxu0 %v1446
  %2050 = vmatprep.subr.bf16.mxu0 0
  %2051 = vmatpush1.bf16.msra.mxu0 %v1447
  %2052 = vmatprep.mubr.bf16.mxu0 %v488
  %2053 = vmatmul.mubr.bf16.gmra.mrb[0].mxu0 %v487
  %v2054 = vpop.f32.mrb[0].mxu0
  %v2055 = vadd.f32 %v2015, %v2054
  %v2056 = vpop.f32.mrb[0].mxu0
  %v2057 = vpop.f32.mrb[0].mxu0
  %v2058 = vpop.f32.mrb[0].mxu0
  %2059 = vdwg.mxu0
  %2060 = vmatprep.subr.bf16.mxu0 0
  %2061 = vmatpush1.bf16.msra.mxu0 %v1448
  %2062 = vmatprep.subr.bf16.mxu0 0
  %2063 = vmatpush1.bf16.msra.mxu0 %v1449
  %2064 = vmatprep.subr.bf16.mxu0 0
  %2065 = vmatpush1.bf16.msra.mxu0 %v1450
  %2066 = vmatprep.subr.bf16.mxu0 0
  %2067 = vmatpush1.bf16.msra.mxu0 %v1451
  %2068 = vmatprep.subr.bf16.mxu0 0
  %2069 = vmatpush1.bf16.msra.mxu0 %v1452
  %2070 = vmatprep.subr.bf16.mxu0 0
  %2071 = vmatpush1.bf16.msra.mxu0 %v1453
  %2072 = vmatprep.subr.bf16.mxu0 0
  %2073 = vmatpush1.bf16.msra.mxu0 %v1454
  %2074 = vmatprep.subr.bf16.mxu0 0
  %2075 = vmatpush1.bf16.msra.mxu0 %v1455
  %2076 = vmatprep.subr.bf16.mxu0 0
  %2077 = vmatpush1.bf16.msra.mxu0 %v1456
  %2078 = vmatprep.subr.bf16.mxu0 0
  %2079 = vmatpush1.bf16.msra.mxu0 %v1457
  %2080 = vmatprep.subr.bf16.mxu0 0
  %2081 = vmatpush1.bf16.msra.mxu0 %v1458
  %2082 = vmatprep.subr.bf16.mxu0 0
  %2083 = vmatpush1.bf16.msra.mxu0 %v1459
  %2084 = vmatprep.subr.bf16.mxu0 0
  %2085 = vmatpush1.bf16.msra.mxu0 %v1460
  %2086 = vmatprep.subr.bf16.mxu0 0
  %2087 = vmatpush1.bf16.msra.mxu0 %v1461
  %2088 = vmatprep.subr.bf16.mxu0 0
  %2089 = vmatpush1.bf16.msra.mxu0 %v1462
  %2090 = vmatprep.subr.bf16.mxu0 0
  %2091 = vmatpush1.bf16.msra.mxu0 %v1463
  %2092 = vmatprep.mubr.bf16.mxu0 %v490
  %2093 = vmatmul.mubr.bf16.gmra.mrb[0].mxu0 %v489
  %v2094 = vpop.f32.mrb[0].mxu0
  %v2095 = vadd.f32 %v2055, %v2094
  %v2096 = vpop.f32.mrb[0].mxu0
  %v2097 = vpop.f32.mrb[0].mxu0
  %v2098 = vpop.f32.mrb[0].mxu0
  %2099 = vdwg.mxu0
  %2100 = vmatprep.subr.bf16.mxu0 0
  %2101 = vmatpush1.bf16.msra.mxu0 %v1464
  %2102 = vmatprep.subr.bf16.mxu0 0
  %2103 = vmatpush1.bf16.msra.mxu0 %v1465
  %2104 = vmatprep.subr.bf16.mxu0 0
  %2105 = vmatpush1.bf16.msra.mxu0 %v1466
  %2106 = vmatprep.subr.bf16.mxu0 0
  %2107 = vmatpush1.bf16.msra.mxu0 %v1467
  %2108 = vmatprep.subr.bf16.mxu0 0
  %2109 = vmatpush1.bf16.msra.mxu0 %v1468
  %2110 = vmatprep.subr.bf16.mxu0 0
  %2111 = vmatpush1.bf16.msra.mxu0 %v1469
  %2112 = vmatprep.subr.bf16.mxu0 0
  %2113 = vmatpush1.bf16.msra.mxu0 %v1470
  %2114 = vmatprep.subr.bf16.mxu0 0
  %2115 = vmatpush1.bf16.msra.mxu0 %v1471
  %2116 = vmatprep.subr.bf16.mxu0 0
  %2117 = vmatpush1.bf16.msra.mxu0 %v1472
  %2118 = vmatprep.subr.bf16.mxu0 0
  %2119 = vmatpush1.bf16.msra.mxu0 %v1473
  %2120 = vmatprep.subr.bf16.mxu0 0
  %2121 = vmatpush1.bf16.msra.mxu0 %v1474
  %2122 = vmatprep.subr.bf16.mxu0 0
  %2123 = vmatpush1.bf16.msra.mxu0 %v1475
  %2124 = vmatprep.subr.bf16.mxu0 0
  %2125 = vmatpush1.bf16.msra.mxu0 %v1476
  %2126 = vmatprep.subr.bf16.mxu0 0
  %2127 = vmatpush1.bf16.msra.mxu0 %v1477
  %2128 = vmatprep.subr.bf16.mxu0 0
  %2129 = vmatpush1.bf16.msra.mxu0 %v1478
  %2130 = vmatprep.subr.bf16.mxu0 0
  %2131 = vmatpush1.bf16.msra.mxu0 %v1479
  %2132 = vmatprep.mubr.bf16.mxu0 %v492
  %2133 = vmatmul.mubr.bf16.gmra.mrb[0].mxu0 %v491
  %v2134 = vpop.f32.mrb[0].mxu0
  %v2135 = vadd.f32 %v2095, %v2134
  %v2136 = vpop.f32.mrb[0].mxu0
  %v2137 = vpop.f32.mrb[0].mxu0
  %v2138 = vpop.f32.mrb[0].mxu0
  %2139 = vdwg.mxu0
  %2140 = vmatprep.subr.bf16.mxu0 0
  %2141 = vmatpush1.bf16.msra.mxu0 %v1480
  %2142 = vmatprep.subr.bf16.mxu0 0
  %2143 = vmatpush1.bf16.msra.mxu0 %v1481
  %2144 = vmatprep.subr.bf16.mxu0 0
  %2145 = vmatpush1.bf16.msra.mxu0 %v1482
  %2146 = vmatprep.subr.bf16.mxu0 0
  %2147 = vmatpush1.bf16.msra.mxu0 %v1483
  %2148 = vmatprep.subr.bf16.mxu0 0
  %2149 = vmatpush1.bf16.msra.mxu0 %v1484
  %2150 = vmatprep.subr.bf16.mxu0 0
  %2151 = vmatpush1.bf16.msra.mxu0 %v1485
  %2152 = vmatprep.subr.bf16.mxu0 0
  %2153 = vmatpush1.bf16.msra.mxu0 %v1486
  %2154 = vmatprep.subr.bf16.mxu0 0
  %2155 = vmatpush1.bf16.msra.mxu0 %v1487
  %2156 = vmatprep.subr.bf16.mxu0 0
  %2157 = vmatpush1.bf16.msra.mxu0 %v1488
  %2158 = vmatprep.subr.bf16.mxu0 0
  %2159 = vmatpush1.bf16.msra.mxu0 %v1489
  %2160 = vmatprep.subr.bf16.mxu0 0
  %2161 = vmatpush1.bf16.msra.mxu0 %v1490
  %2162 = vmatprep.subr.bf16.mxu0 0
  %2163 = vmatpush1.bf16.msra.mxu0 %v1491
  %2164 = vmatprep.subr.bf16.mxu0 0
  %2165 = vmatpush1.bf16.msra.mxu0 %v1492
  %2166 = vmatprep.subr.bf16.mxu0 0
  %2167 = vmatpush1.bf16.msra.mxu0 %v1493
  %2168 = vmatprep.subr.bf16.mxu0 0
  %2169 = vmatpush1.bf16.msra.mxu0 %v1494
  %2170 = vmatprep.subr.bf16.mxu0 0
  %2171 = vmatpush1.bf16.msra.mxu0 %v1495
  %2172 = vmatprep.mubr.bf16.mxu0 %v494
  %2173 = vmatmul.mubr.bf16.gmra.mrb[0].mxu0 %v493
  %v2174 = vpop.f32.mrb[0].mxu0
  %v2175 = vadd.f32 %v2135, %v2174
  %v2176 = vpop.f32.mrb[0].mxu0
  %v2177 = vpop.f32.mrb[0].mxu0
  %v2178 = vpop.f32.mrb[0].mxu0
  %2179 = vdwg.mxu0
  %2180 = vmatprep.subr.bf16.mxu0 0
  %2181 = vmatpush1.bf16.msra.mxu0 %v1496
  %2182 = vmatprep.subr.bf16.mxu0 0
  %2183 = vmatpush1.bf16.msra.mxu0 %v1497
  %2184 = vmatprep.subr.bf16.mxu0 0
  %2185 = vmatpush1.bf16.msra.mxu0 %v1498
  %2186 = vmatprep.subr.bf16.mxu0 0
  %2187 = vmatpush1.bf16.msra.mxu0 %v1499
  %2188 = vmatprep.subr.bf16.mxu0 0
  %2189 = vmatpush1.bf16.msra.mxu0 0
  %2190 = vmatprep.subr.bf16.mxu0 0
  %2191 = vmatpush1.bf16.msra.mxu0 0
  %2192 = vmatprep.subr.bf16.mxu0 0
  %2193 = vmatpush1.bf16.msra.mxu0 0
  %2194 = vmatprep.subr.bf16.mxu0 0
  %2195 = vmatpush1.bf16.msra.mxu0 0
  %2196 = vmatprep.subr.bf16.mxu0 0
  %2197 = vmatpush1.bf16.msra.mxu0 0
  %2198 = vmatprep.subr.bf16.mxu0 0
  %2199 = vmatpush1.bf16.msra.mxu0 0
  %2200 = vmatprep.subr.bf16.mxu0 0
  %2201 = vmatpush1.bf16.msra.mxu0 0
  %2202 = vmatprep.subr.bf16.mxu0 0
  %2203 = vmatpush1.bf16.msra.mxu0 0
  %2204 = vmatprep.subr.bf16.mxu0 0
  %2205 = vmatpush1.bf16.msra.mxu0 0
  %2206 = vmatprep.subr.bf16.mxu0 0
  %2207 = vmatpush1.bf16.msra.mxu0 0
  %2208 = vmatprep.subr.bf16.mxu0 0
  %2209 = vmatpush1.bf16.msra.mxu0 0
  %2210 = vmatprep.subr.bf16.mxu0 0
  %2211 = vmatpush1.bf16.msra.mxu0 0
  %2212 = vmatprep.mubr.bf16.mxu0 0
  %2213 = vmatmul.mubr.bf16.gmra.mrb[0].mxu0 %v1698
  %v2214 = vpop.f32.mrb[0].mxu0
  %v2215 = vadd.f32 %v2175, %v2214
  %v2216 = vpop.f32.mrb[0].mxu0
  %v2217 = vpop.f32.mrb[0].mxu0
  %v2218 = vpop.f32.mrb[0].mxu0
  %2219 = vdwg.mxu0
  %v2220 = vmax.f32 %v2215, 0.0
  %v2221 = vld [vmem:[%s3] sm:$0xff]
  %v2222 = vld [vmem:[%s3 + $0x8] sm:$0xff]
  %v2223 = vld [vmem:[%s3 + $0x10] sm:$0xff]
  %v2224 = vld [vmem:[%s3 + $0x18] sm:$0xff]
  %v2225 = vld [vmem:[%s3 + $0x20] sm:$0xff]
  %v2226 = vld [vmem:[%s3 + $0x28] sm:$0xff]
  %v2227 = vld [vmem:[%s3 + $0x30] sm:$0xff]
  %v2228 = vld [vmem:[%s3 + $0x38] sm:$0xff]
  %v2229 = vld [vmem:[%s3 + $0x40] sm:$0xff]
  %v2230 = vld [vmem:[%s3 + $0x48] sm:$0xff]
  %v2231 = vld [vmem:[%s3 + $0x50] sm:$0xff]
  %v2232 = vld [vmem:[%s3 + $0x58] sm:$0xff]
  %v2233 = vld [vmem:[%s3 + $0x60] sm:$0xff]
  %v2234 = vld [vmem:[%s3 + $0x68] sm:$0xff]
  %v2235 = vld [vmem:[%s3 + $0x70] sm:$0xff]
  %v2236 = vld [vmem:[%s3 + $0x78] sm:$0xff]
  %v2237 = vld [vmem:[%s4] sm:$0x1]
  %v2239 = vlaneseq
  %v2240 = vshrl.u32 %v2239, 7
  %v2241 = vsub.s32 0, %v2240
  %v2242 = vrot.slane %v2237, %v2241
  %2244 = vmatprep.subr.mxu0 0.0
  %2245 = vmatpush1.msra.mxu0 %v2221
  %2246 = vmatprep.subr.mxu0 0.0
  %2247 = vmatpush1.msra.mxu0 %v2222
  %2248 = vmatprep.subr.mxu0 0.0
  %2249 = vmatpush1.msra.mxu0 %v2223
  %2250 = vmatprep.subr.mxu0 0.0
  %2251 = vmatpush1.msra.mxu0 %v2224
  %2252 = vmatprep.subr.mxu0 0.0
  %2253 = vmatpush1.msra.mxu0 %v2225
  %2254 = vmatprep.subr.mxu0 0.0
  %2255 = vmatpush1.msra.mxu0 %v2226
  %2256 = vmatprep.subr.mxu0 0.0
  %2257 = vmatpush1.msra.mxu0 %v2227
  %2258 = vmatprep.subr.mxu0 0.0
  %2259 = vmatpush1.msra.mxu0 %v2228
  %2260 = vmatprep.subr.mxu0 0.0
  %2261 = vmatpush1.msra.mxu0 %v2229
  %2262 = vmatprep.subr.mxu0 0.0
  %2263 = vmatpush1.msra.mxu0 %v2230
  %2264 = vmatprep.subr.mxu0 0.0
  %2265 = vmatpush1.msra.mxu0 %v2231
  %2266 = vmatprep.subr.mxu0 0.0
  %2267 = vmatpush1.msra.mxu0 %v2232
  %2268 = vmatprep.subr.mxu0 0.0
  %2269 = vmatpush1.msra.mxu0 %v2233
  %2270 = vmatprep.subr.mxu0 0.0
  %2271 = vmatpush1.msra.mxu0 %v2234
  %2272 = vmatprep.subr.mxu0 0.0
  %2273 = vmatpush1.msra.mxu0 %v2235
  %2274 = vmatprep.subr.mxu0 0.0
  %2275 = vmatpush1.msra.mxu0 %v2236
  %2276 = vmatprep.subr.mxu0 0.0
  %2277 = vmatpush1.msra.mxu0 0.0
  %2278 = vmatprep.subr.mxu0 0.0
  %2279 = vmatpush1.msra.mxu0 0.0
  %2280 = vmatprep.subr.mxu0 0.0
  %2281 = vmatpush1.msra.mxu0 0.0
  %2282 = vmatprep.subr.mxu0 0.0
  %2283 = vmatpush1.msra.mxu0 0.0
  %2284 = vmatprep.subr.mxu0 0.0
  %2285 = vmatpush1.msra.mxu0 0.0
  %2286 = vmatprep.subr.mxu0 0.0
  %2287 = vmatpush1.msra.mxu0 0.0
  %2288 = vmatprep.subr.mxu0 0.0
  %2289 = vmatpush1.msra.mxu0 0.0
  %2290 = vmatprep.subr.mxu0 0.0
  %2291 = vmatpush1.msra.mxu0 0.0
  %2292 = vmatprep.subr.mxu0 0.0
  %2293 = vmatpush1.msra.mxu0 0.0
  %2294 = vmatprep.subr.mxu0 0.0
  %2295 = vmatpush1.msra.mxu0 0.0
  %2296 = vmatprep.subr.mxu0 0.0
  %2297 = vmatpush1.msra.mxu0 0.0
  %2298 = vmatprep.subr.mxu0 0.0
  %2299 = vmatpush1.msra.mxu0 0.0
  %2300 = vmatprep.subr.mxu0 0.0
  %2301 = vmatpush1.msra.mxu0 0.0
  %2302 = vmatprep.subr.mxu0 0.0
  %2303 = vmatpush1.msra.mxu0 0.0
  %2304 = vmatprep.subr.mxu0 0.0
  %2305 = vmatpush1.msra.mxu0 0.0
  %2306 = vmatprep.subr.mxu0 0.0
  %2307 = vmatpush1.msra.mxu0 0.0
  %2308 = vmatprep.mubr.f32.mxu0 0.0
  %2309 = vmatmul.mubr.f32.gmra.mrb[0].mxu0 %v2220
  %v2310 = vpop.f32.mrb[0].mxu0
  %v2311 = vadd.f32 %v2242, %v2310
  %v2312 = vpop.f32.mrb[0].mxu0
  %2313 = vdwg.mxu0
  %2314 = vst [vmem:[%s5] sm:$0xff] %v2311
  // Predicated region
  $region22: #{cnn_forward.5} parent=0 // pred_check
    _
  $region23: #{cnn_forward.5} parent=0 // pred_check_branch
    %2316 = sbr.rel (0) target = $region25
  $region24: #{cnn_forward.5} parent=0 // pred_region
    _
  $region25: #{cnn_forward.5} parent=0 // pred_fallthru
    _
  // Predicated region
  $region26: #{cnn_forward.5} parent=0 // pred_check
    _
  $region27: #{cnn_forward.5} parent=0 // pred_check_branch
    %2318 = sbr.rel (0) target = $region29
  $region28: #{cnn_forward.5} parent=0 // pred_region
    _
  $region29: #{cnn_forward.5} parent=0 // pred_fallthru
    _

</llo_original>
